<compile_context>
chip_gen: v7x
topology: tpu7x:2x2x1
jax: 0.10.0
libtpu: 0.0.40
codegen_flags: <defaults>
</compile_context>

<pallas_src>
import functools

import jax
import jax.numpy as jnp
import numpy as np
from jax.experimental import pallas as pl
from jax.experimental.pallas import tpu as pltpu

EPS = 1e-5           # nn.InstanceNorm3d default eps
RATES = (3, 6, 12, 18)


def _round_up(x, m):
    return (x + m - 1) // m * m


def _instance_norm_relu(y):
    """Per-channel InstanceNorm (biased, two-pass variance) + ReLU, f32."""
    mean = jnp.mean(y, axis=1, keepdims=True)
    yc = y - mean
    var = jnp.mean(yc * yc, axis=1, keepdims=True)
    return jnp.maximum(yc * jax.lax.rsqrt(var + EPS), 0.0)


# ----------------------------------------------------------------------------
# Fused _DenseASPPBlock kernel: one batch sample per grid step, all branches.
# ----------------------------------------------------------------------------
def _fused_block_kernel(*refs, c0, cm, cout, s, branch_meta):
    """refs = (x_ref,
               w1_0..w1_{B-1},      # (Cm, Cin_b)     bf16, rows in slab order
               w2_0..w2_{B-1},      # (Cout, Kpad_b)  bf16, surviving taps only
               mask_0..mask_{M-1},  # (T_b, S)        f32 {0,1} boundary masks
               o_ref,               # (1, Ctot, S)    f32
               feat_ref,            # (Ctot, S)       f32  VMEM feature slab
               patch_ref)           # (Kmax, S)       bf16 VMEM conv2 patch slab
    """
    nb = len(branch_meta)
    n_masks = sum(1 for (_, mi, _) in branch_meta if mi is not None)
    x_ref = refs[0]
    w1_refs = refs[1:1 + nb]
    w2_refs = refs[1 + nb:1 + 2 * nb]
    mask_refs = refs[1 + 2 * nb:1 + 2 * nb + n_masks]
    o_ref, feat_ref, patch_ref = refs[1 + 2 * nb + n_masks:]
    ctot = c0 + nb * cout

    # Stage x: feature slab (f32) + final output channels [aspp18..aspp3, x].
    x = x_ref[0]                                    # (C0, S) f32
    feat_ref[0:c0, :] = x
    o_ref[0, ctot - c0:ctot, :] = x

    for b, (deltas, mask_idx, all_ones) in enumerate(branch_meta):
        cin_b = c0 + b * cout

        # ---- conv1 (1x1x1): one bf16 MXU matmul over the dense prefix.
        feats = feat_ref[0:cin_b, :].astype(jnp.bfloat16)         # (Cin_b, S)
        y1 = jnp.dot(w1_refs[b][...], feats,
                     preferred_element_type=jnp.float32)          # (Cm, S)
        h1 = _instance_norm_relu(y1)                              # f32

        # ---- conv2 (3x3x3 dilated), dead taps pruned at trace time.
        t = len(deltas)
        if t == 1 and deltas[0] == 0 and all_ones[0]:
            # Only the centre tap survives (rate >= spatial extent): 1x1x1.
            y2 = jnp.dot(w2_refs[b][...], h1.astype(jnp.bfloat16),
                         preferred_element_type=jnp.float32)
        else:
            # Build the bf16 patch slab with in-register lane rolls (XLU) and
            # precomputed boundary masks (f32 multiply).  Taps are written in
            # pairs so every bf16 store is a full 16-row tile-aligned store;
            # an odd tail is padded with a zero window (its weight columns are
            # zero too, so the contribution is exactly 0).
            tp = t + (t % 2)
            for p in range(tp // 2):
                halves = []
                for q in (2 * p, 2 * p + 1):
                    if q < t:
                        delta = deltas[q]
                        shift = (-delta) % s      # exact: |delta| < S after pruning
                        win = h1 if shift == 0 else pltpu.roll(h1, shift, axis=1)
                        if not all_ones[q]:
                            win = win * mask_refs[mask_idx][q:q + 1, :]
                    else:
                        win = jnp.zeros_like(h1)
                    halves.append(win)
                pair = jnp.concatenate(halves, axis=0)             # (2*Cm, S) f32
                patch_ref[2 * p * cm:(2 * p + 2) * cm, :] = pair.astype(jnp.bfloat16)
            # ONE fused matmul over all surviving taps (K = tp*Cm).
            y2 = jnp.dot(w2_refs[b][...], patch_ref[0:tp * cm, :],
                         preferred_element_type=jnp.float32)       # (Cout, S)

        out_b = _instance_norm_relu(y2)                            # (Cout, S) f32
        # TODO(synk): F.dropout(p=0.1) treated as identity (eval semantics).

        # Append to the dense feature slab and write to the torch channel slot.
        feat_ref[cin_b:cin_b + cout, :] = out_b
        o_ref[0, (nb - 1 - b) * cout:(nb - b) * cout, :] = out_b


# ----------------------------------------------------------------------------
# _DenseASPPBlock.forward  (input/output NCDHW like the PyTorch module)
# ----------------------------------------------------------------------------
def dense_aspp_block(x_ncdhw, params_list, rates=RATES):
    n, c0, d, h, w = x_ncdhw.shape
    s = d * h * w
    nb = len(rates)
    cm = params_list[0][0].shape[1]
    cout = params_list[0][2].shape[1]
    ctot = c0 + nb * cout
    assert s % 128 == 0, "D*H*W must be a multiple of 128 (lane axis)"
    assert cm % 8 == 0, "inter_channels1 must be a multiple of 8"

    x_flat = x_ncdhw.reshape(n, c0, s).astype(jnp.float32)

    # Trace-time flat-index -> 3-D coordinate tables (numpy, no in-kernel divmod).
    sidx = np.arange(s)
    didx = sidx // (h * w)
    hidx = (sidx // w) % h
    widx = sidx % w

    w1_list, w2_list, mask_list, branch_meta = [], [], [], []
    for b, (rate, (w1, b1, w2, b2)) in enumerate(zip(rates, params_list)):
        del b1, b2     # conv biases cancel exactly under affine=False InstanceNorm
        cin_b = c0 + b * cout
        assert w1.shape == (cin_b, cm) and w2.shape == (27 * cm, cout)

        # Permute conv1 rows from torch input order [aspp_{b-1},...,aspp_0, x]
        # to the kernel's feature-slab order [x, aspp_0, ..., aspp_{b-1}].
        blocks = [w1[b * cout:b * cout + c0]]
        for j in range(b):
            st = (b - 1 - j) * cout
            blocks.append(w1[st:st + cout])
        w1_perm = blocks[0] if b == 0 else jnp.concatenate(blocks, axis=0)
        w1_list.append(jnp.asarray(w1_perm).T.astype(jnp.bfloat16))   # (Cm, Cin_b)

        # Statically prune dead conv2 taps; precompute boundary masks; select
        # the matching w2 columns (tap-major, channels fastest).
        deltas, all_ones, mask_rows, w2_blocks = [], [], [], []
        tap = 0
        for kd in range(3):
            dd = (kd - 1) * rate
            for kh in range(3):
                dh = (kh - 1) * rate
                for kw in range(3):
                    dw = (kw - 1) * rate
                    if abs(dd) < d and abs(dh) < h and abs(dw) < w:
                        m = ((didx + dd >= 0) & (didx + dd < d) &
                             (hidx + dh >= 0) & (hidx + dh < h) &
                             (widx + dw >= 0) & (widx + dw < w))
                        deltas.append(dd * h * w + dh * w + dw)
                        all_ones.append(bool(m.all()))
                        mask_rows.append(m)
                        w2_blocks.append(w2[tap * cm:(tap + 1) * cm])
                    tap += 1
        t_b = len(deltas)
        center_only = (t_b == 1 and deltas[0] == 0 and all_ones[0])
        w2_sel = w2_blocks[0] if t_b == 1 else jnp.concatenate(w2_blocks, axis=0)
        if not center_only and t_b % 2:
            # pad K to an even tap count (pad rows are written as zeros in VMEM
            # and their weight columns are zero -> exact zero contribution).
            w2_sel = jnp.concatenate(
                [w2_sel, jnp.zeros((cm, cout), w2_sel.dtype)], axis=0)
        w2_list.append(jnp.asarray(w2_sel).T.astype(jnp.bfloat16))    # (Cout, Kpad_b)

        if all(all_ones):
            mask_idx = None
        else:
            mask_idx = len(mask_list)
            mask_list.append(jnp.asarray(np.stack(mask_rows), dtype=jnp.float32))
        branch_meta.append((tuple(deltas), mask_idx, tuple(all_ones)))

    k_max = _round_up(max(len(m[0]) for m in branch_meta), 2) * cm

    kernel = functools.partial(
        _fused_block_kernel, c0=c0, cm=cm, cout=cout, s=s,
        branch_meta=tuple(branch_meta))

    in_specs = [pl.BlockSpec((1, c0, s), lambda i: (i, 0, 0))]
    in_specs += [pl.BlockSpec(a.shape, lambda i: (0, 0)) for a in w1_list]
    in_specs += [pl.BlockSpec(a.shape, lambda i: (0, 0)) for a in w2_list]
    in_specs += [pl.BlockSpec(a.shape, lambda i: (0, 0)) for a in mask_list]

    out = pl.pallas_call(
        kernel,
        out_shape=jax.ShapeDtypeStruct((n, ctot, s), jnp.float32),
        grid=(n,),
        in_specs=in_specs,
        out_specs=pl.BlockSpec((1, ctot, s), lambda i: (i, 0, 0)),
        scratch_shapes=[pltpu.VMEM((ctot, s), jnp.float32),      # feature slab
                        pltpu.VMEM((k_max, s), jnp.bfloat16)],   # conv2 patch slab
        compiler_params=pltpu.CompilerParams(
            # batch axis is independent -> both TensorCores on v7x when N>=2.
            dimension_semantics=("parallel",)),
    )(x_flat, *w1_list, *w2_list, *mask_list)

    return out.reshape(n, ctot, d, h, w)


# ----------------------------------------------------------------------------
# Deterministic synthetic parameters (shapes match the nn.Module).
#   conv1: (Cin -> inter1) 1x1x1, conv2: (inter1 -> inter2) 3x3x3 dilated,
#   conv2 weight stored in im2col layout (27*inter1, inter2), tap-major rows.
# ----------------------------------------------------------------------------
def init_params(key, in_channels, inter1, inter2):
    params = []
    cin = in_channels
    for _ in RATES:
        key, k1, k2, k3, k4 = jax.random.split(key, 5)
        w1 = jax.random.normal(k1, (cin, inter1), jnp.float32) * 0.1
        b1 = jax.random.normal(k2, (inter1,), jnp.float32) * 0.1
        w2 = jax.random.normal(k3, (27 * inter1, inter2), jnp.float32) * 0.05
        b2 = jax.random.normal(k4, (inter2,), jnp.float32) * 0.1
        params.append((w1, b1, w2, b2))
        cin += inter2  # dense connectivity
    return params


# ----------------------------------------------------------------------------
# Pure-JAX reference (channel-last, explicit im2col; mirrors the bf16 matmul-
# operand casts so it validates the kernel structure tightly).  It keeps the
# conv biases, which are mathematically cancelled by the InstanceNorm.
# ----------------------------------------------------------------------------
def _ref_conv_in_relu(x, wt, b):
    y = jnp.einsum("nsc,ck->nsk", x.astype(jnp.bfloat16), wt.astype(jnp.bfloat16),
                   preferred_element_type=jnp.float32) + b[None, None, :]
    mean = jnp.mean(y, axis=1, keepdims=True)
    var = jnp.mean((y - mean) ** 2, axis=1, keepdims=True)
    return jnp.maximum((y - mean) * jax.lax.rsqrt(var + EPS), 0.0)


def im2col_dilated_3x3x3(hvol, rate):
    n, d, hh, ww, c = hvol.shape
    hp = jnp.pad(hvol, ((0, 0), (rate, rate), (rate, rate), (rate, rate), (0, 0)))
    patches = []
    for kd in range(3):
        for kh in range(3):
            for kw in range(3):
                win = hp[:, kd * rate:kd * rate + d,
                         kh * rate:kh * rate + hh,
                         kw * rate:kw * rate + ww, :]
                patches.append(win.reshape(n, d * hh * ww, c))
    return jnp.concatenate(patches, axis=-1)


def _ref_block(x_ncdhw, params_list):
    x = jnp.transpose(x_ncdhw, (0, 2, 3, 4, 1))        # NDHWC
    for rate, (w1, b1, w2, b2) in zip(RATES, params_list):
        n, d, h, w, cin = x.shape
        s = d * h * w
        h1 = _ref_conv_in_relu(x.reshape(n, s, cin), w1, b1)
        h1 = h1.reshape(n, d, h, w, -1)
        patches = im2col_dilated_3x3x3(h1, rate)
        h2 = _ref_conv_in_relu(patches, w2, b2).reshape(n, d, h, w, -1)
        x = jnp.concatenate([h2, x], axis=-1)
    return jnp.transpose(x, (0, 4, 1, 2, 3))


if __name__ == "__main__":
    # Small shapes consistent with a 3D DenseASPP block.
    N, C_IN, D, H, W = 2, 4, 8, 8, 8
    INTER1, INTER2 = 8, 4

    key = jax.random.PRNGKey(0)
    key, kx = jax.random.split(key)
    x = jax.random.normal(kx, (N, C_IN, D, H, W), jnp.float32)  # NCDHW input
    params = init_params(key, C_IN, INTER1, INTER2)

    fwd = jax.jit(functools.partial(dense_aspp_block, params_list=params))
    out = jax.block_until_ready(fwd(x))

    expected_c = C_IN + 4 * INTER2
    assert out.shape == (N, expected_c, D, H, W), out.shape
    assert bool(jnp.all(jnp.isfinite(out)))

    # Correctness check against the independent im2col reference.  Matmul
    # operands are bf16 in both (per perf guidance), so compare with a
    # bf16-scale tolerance; structural bugs (wrong tap shift / roll direction /
    # mask / norm) show up as O(0.1+) mean error, far above these thresholds.
    ref = jax.block_until_ready(_ref_block(x, params))
    err = jnp.abs(out - ref)
    max_err = float(jnp.max(err))
    mean_err = float(jnp.mean(err))
    assert max_err < 5e-2 and mean_err < 2e-3, (max_err, mean_err)

    print("KERNEL_OK")
</pallas_src>

<mosaic_0001>
module attributes {stable_mosaic.version = 11 : i64} {
  func.func @_fused_block_kernel(%arg0: i32, %arg1: memref<1x4x512xf32, #tpu.memory_space<vmem>>, %arg2: memref<8x4xbf16, #tpu.memory_space<vmem>>, %arg3: memref<8x8xbf16, #tpu.memory_space<vmem>>, %arg4: memref<8x12xbf16, #tpu.memory_space<vmem>>, %arg5: memref<8x16xbf16, #tpu.memory_space<vmem>>, %arg6: memref<4x224xbf16, #tpu.memory_space<vmem>>, %arg7: memref<4x224xbf16, #tpu.memory_space<vmem>>, %arg8: memref<4x8xbf16, #tpu.memory_space<vmem>>, %arg9: memref<4x8xbf16, #tpu.memory_space<vmem>>, %arg10: memref<27x512xf32, #tpu.memory_space<vmem>>, %arg11: memref<27x512xf32, #tpu.memory_space<vmem>>, %arg12: memref<1x20x512xf32, #tpu.memory_space<vmem>>, %arg13: memref<20x512xf32, #tpu.memory_space<vmem>>, %arg14: memref<224x512xbf16, #tpu.memory_space<vmem>>) attributes {dimension_semantics = [#tpu.dimension_semantics<parallel>], iteration_bounds = array<i64: 2>, scalar_prefetch = 0 : i64, scratch_operands = 2 : i64, tpu.core_type = #tpu.core_type<tc>, window_params = [{transform_indices = @transform_0, window_bounds = array<i64: 1, 4, 512>}, {pipeline_mode = #tpu.pipeline_mode<synchronous>, transform_indices = @transform_1, window_bounds = array<i64: 8, 4>}, {pipeline_mode = #tpu.pipeline_mode<synchronous>, transform_indices = @transform_2, window_bounds = array<i64: 8, 8>}, {pipeline_mode = #tpu.pipeline_mode<synchronous>, transform_indices = @transform_3, window_bounds = array<i64: 8, 12>}, {pipeline_mode = #tpu.pipeline_mode<synchronous>, transform_indices = @transform_4, window_bounds = array<i64: 8, 16>}, {pipeline_mode = #tpu.pipeline_mode<synchronous>, transform_indices = @transform_5, window_bounds = array<i64: 4, 224>}, {pipeline_mode = #tpu.pipeline_mode<synchronous>, transform_indices = @transform_6, window_bounds = array<i64: 4, 224>}, {pipeline_mode = #tpu.pipeline_mode<synchronous>, transform_indices = @transform_7, window_bounds = array<i64: 4, 8>}, {pipeline_mode = #tpu.pipeline_mode<synchronous>, transform_indices = @transform_8, window_bounds = array<i64: 4, 8>}, {pipeline_mode = #tpu.pipeline_mode<synchronous>, transform_indices = @transform_9, window_bounds = array<i64: 27, 512>}, {pipeline_mode = #tpu.pipeline_mode<synchronous>, transform_indices = @transform_10, window_bounds = array<i64: 27, 512>}, {transform_indices = @transform_11, window_bounds = array<i64: 1, 20, 512>}]} {
    %c0 = arith.constant 0 : index
    %c0_0 = arith.constant 0 : index
    %c0_1 = arith.constant 0 : index
    %0 = vector.load %arg1[%c0, %c0_0, %c0_1] : memref<1x4x512xf32, #tpu.memory_space<vmem>>, vector<1x4x512xf32>
    %1 = vector.shape_cast %0 : vector<1x4x512xf32> to vector<4x512xf32>
    %c0_2 = arith.constant 0 : index
    %c0_3 = arith.constant 0 : index
    %2 = vector.load %arg13[%c0_2, %c0_3] : memref<20x512xf32, #tpu.memory_space<vmem>>, vector<4x512xf32>
    tpu.vector_store %arg13[%c0_2, %c0_3], %1 {strides = array<i32>} : memref<20x512xf32, #tpu.memory_space<vmem>>, vector<4x512xf32>,
    %c0_4 = arith.constant 0 : index
    %c16 = arith.constant 16 : index
    %c0_5 = arith.constant 0 : index
    %3 = vector.load %arg12[%c0_4, %c16, %c0_5] : memref<1x20x512xf32, #tpu.memory_space<vmem>>, vector<1x4x512xf32>
    %4 = vector.shape_cast %3 : vector<1x4x512xf32> to vector<4x512xf32>
    %5 = vector.shape_cast %1 : vector<4x512xf32> to vector<1x4x512xf32>
    tpu.vector_store %arg12[%c0_4, %c16, %c0_5], %5 {strides = array<i32>} : memref<1x20x512xf32, #tpu.memory_space<vmem>>, vector<1x4x512xf32>,
    %c0_6 = arith.constant 0 : index
    %c0_7 = arith.constant 0 : index
    %6 = vector.load %arg13[%c0_6, %c0_7] : memref<20x512xf32, #tpu.memory_space<vmem>>, vector<4x512xf32>
    %7 = arith.truncf %6 : vector<4x512xf32> to vector<4x512xbf16>
    %c0_8 = arith.constant 0 : index
    %c0_9 = arith.constant 0 : index
    %8 = vector.load %arg2[%c0_8, %c0_9] : memref<8x4xbf16, #tpu.memory_space<vmem>>, vector<8x4xbf16>
    %cst = arith.constant dense<0.000000e+00> : vector<8x512xf32>
    %9 = tpu.matmul %8, %7, %cst {dimension_numbers = #tpu.dot_dimension_numbers<[1], [0], [0], [1], [0, 0, 1, 1], [], []>} : vector<8x4xbf16>, vector<4x512xbf16>, vector<8x512xf32> -> vector<8x512xf32>
    %cst_10 = arith.constant dense<0.000000e+00> : vector<8xf32>
    %10 = vector.multi_reduction <add>, %9, %cst_10 [1] : vector<8x512xf32> to vector<8xf32>
    %11 = vector.shape_cast %10 : vector<8xf32> to vector<8x1xf32>
    %cst_11 = arith.constant 5.120000e+02 : f32
    %12 = vector.broadcast %cst_11 : f32 to vector<8x1xf32>
    %13 = arith.divf %11, %12 : vector<8x1xf32>
    %14 = vector.broadcast %13 : vector<8x1xf32> to vector<8x512xf32>
    %15 = arith.subf %9, %14 : vector<8x512xf32>
    %16 = arith.mulf %15, %15 : vector<8x512xf32>
    %cst_12 = arith.constant dense<0.000000e+00> : vector<8xf32>
    %17 = vector.multi_reduction <add>, %16, %cst_12 [1] : vector<8x512xf32> to vector<8xf32>
    %18 = vector.shape_cast %17 : vector<8xf32> to vector<8x1xf32>
    %cst_13 = arith.constant 5.120000e+02 : f32
    %19 = vector.broadcast %cst_13 : f32 to vector<8x1xf32>
    %20 = arith.divf %18, %19 : vector<8x1xf32>
    %cst_14 = arith.constant 9.99999974E-6 : f32
    %21 = vector.broadcast %cst_14 : f32 to vector<8x1xf32>
    %22 = arith.addf %20, %21 : vector<8x1xf32>
    %23 = math.rsqrt %22 : vector<8x1xf32>
    %24 = vector.broadcast %23 : vector<8x1xf32> to vector<8x512xf32>
    %25 = arith.mulf %15, %24 : vector<8x512xf32>
    %cst_15 = arith.constant 0.000000e+00 : f32
    %26 = vector.broadcast %cst_15 : f32 to vector<8x512xf32>
    %27 = arith.maximumf %25, %26 : vector<8x512xf32>
    %c219_i32 = arith.constant 219 : i32
    %28 = tpu.dynamic_rotate %27 by %c219_i32 dim 1 : vector<8x512xf32>, i32 -> vector<8x512xf32>
    %c0_16 = arith.constant 0 : index
    %c0_17 = arith.constant 0 : index
    %29 = vector.load %arg10[%c0_16, %c0_17] : memref<27x512xf32, #tpu.memory_space<vmem>>, vector<1x512xf32>
    %30 = vector.broadcast %29 : vector<1x512xf32> to vector<8x512xf32>
    %31 = arith.mulf %28, %30 : vector<8x512xf32>
    %c216_i32 = arith.constant 216 : i32
    %32 = tpu.dynamic_rotate %27 by %c216_i32 dim 1 : vector<8x512xf32>, i32 -> vector<8x512xf32>
    %c1 = arith.constant 1 : index
    %c0_18 = arith.constant 0 : index
    %33 = vector.load %arg10[%c1, %c0_18] : memref<27x512xf32, #tpu.memory_space<vmem>>, vector<1x512xf32>
    %34 = vector.broadcast %33 : vector<1x512xf32> to vector<8x512xf32>
    %35 = arith.mulf %32, %34 : vector<8x512xf32>
    %36 = tpu.concatenate %31, %35 in 0 : vector<8x512xf32>, vector<8x512xf32> -> vector<16x512xf32>
    %37 = arith.truncf %36 : vector<16x512xf32> to vector<16x512xbf16>
    %c0_19 = arith.constant 0 : index
    %c0_20 = arith.constant 0 : index
    %38 = vector.load %arg14[%c0_19, %c0_20] : memref<224x512xbf16, #tpu.memory_space<vmem>>, vector<16x512xbf16>
    tpu.vector_store %arg14[%c0_19, %c0_20], %37 {strides = array<i32>} : memref<224x512xbf16, #tpu.memory_space<vmem>>, vector<16x512xbf16>,
    %c213_i32 = arith.constant 213 : i32
    %39 = tpu.dynamic_rotate %27 by %c213_i32 dim 1 : vector<8x512xf32>, i32 -> vector<8x512xf32>
    %c2 = arith.constant 2 : index
    %c0_21 = arith.constant 0 : index
    %40 = vector.load %arg10[%c2, %c0_21] : memref<27x512xf32, #tpu.memory_space<vmem>>, vector<1x512xf32>
    %41 = vector.broadcast %40 : vector<1x512xf32> to vector<8x512xf32>
    %42 = arith.mulf %39, %41 : vector<8x512xf32>
    %c195_i32 = arith.constant 195 : i32
    %43 = tpu.dynamic_rotate %27 by %c195_i32 dim 1 : vector<8x512xf32>, i32 -> vector<8x512xf32>
    %c3 = arith.constant 3 : index
    %c0_22 = arith.constant 0 : index
    %44 = vector.load %arg10[%c3, %c0_22] : memref<27x512xf32, #tpu.memory_space<vmem>>, vector<1x512xf32>
    %45 = vector.broadcast %44 : vector<1x512xf32> to vector<8x512xf32>
    %46 = arith.mulf %43, %45 : vector<8x512xf32>
    %47 = tpu.concatenate %42, %46 in 0 : vector<8x512xf32>, vector<8x512xf32> -> vector<16x512xf32>
    %48 = arith.truncf %47 : vector<16x512xf32> to vector<16x512xbf16>
    %c16_23 = arith.constant 16 : index
    %c0_24 = arith.constant 0 : index
    %49 = vector.load %arg14[%c16_23, %c0_24] : memref<224x512xbf16, #tpu.memory_space<vmem>>, vector<16x512xbf16>
    tpu.vector_store %arg14[%c16_23, %c0_24], %48 {strides = array<i32>} : memref<224x512xbf16, #tpu.memory_space<vmem>>, vector<16x512xbf16>,
    %c192_i32 = arith.constant 192 : i32
    %50 = tpu.dynamic_rotate %27 by %c192_i32 dim 1 : vector<8x512xf32>, i32 -> vector<8x512xf32>
    %c4 = arith.constant 4 : index
    %c0_25 = arith.constant 0 : index
    %51 = vector.load %arg10[%c4, %c0_25] : memref<27x512xf32, #tpu.memory_space<vmem>>, vector<1x512xf32>
    %52 = vector.broadcast %51 : vector<1x512xf32> to vector<8x512xf32>
    %53 = arith.mulf %50, %52 : vector<8x512xf32>
    %c189_i32 = arith.constant 189 : i32
    %54 = tpu.dynamic_rotate %27 by %c189_i32 dim 1 : vector<8x512xf32>, i32 -> vector<8x512xf32>
    %c5 = arith.constant 5 : index
    %c0_26 = arith.constant 0 : index
    %55 = vector.load %arg10[%c5, %c0_26] : memref<27x512xf32, #tpu.memory_space<vmem>>, vector<1x512xf32>
    %56 = vector.broadcast %55 : vector<1x512xf32> to vector<8x512xf32>
    %57 = arith.mulf %54, %56 : vector<8x512xf32>
    %58 = tpu.concatenate %53, %57 in 0 : vector<8x512xf32>, vector<8x512xf32> -> vector<16x512xf32>
    %59 = arith.truncf %58 : vector<16x512xf32> to vector<16x512xbf16>
    %c32 = arith.constant 32 : index
    %c0_27 = arith.constant 0 : index
    %60 = vector.load %arg14[%c32, %c0_27] : memref<224x512xbf16, #tpu.memory_space<vmem>>, vector<16x512xbf16>
    tpu.vector_store %arg14[%c32, %c0_27], %59 {strides = array<i32>} : memref<224x512xbf16, #tpu.memory_space<vmem>>, vector<16x512xbf16>,
    %c171_i32 = arith.constant 171 : i32
    %61 = tpu.dynamic_rotate %27 by %c171_i32 dim 1 : vector<8x512xf32>, i32 -> vector<8x512xf32>
    %c6 = arith.constant 6 : index
    %c0_28 = arith.constant 0 : index
    %62 = vector.load %arg10[%c6, %c0_28] : memref<27x512xf32, #tpu.memory_space<vmem>>, vector<1x512xf32>
    %63 = vector.broadcast %62 : vector<1x512xf32> to vector<8x512xf32>
    %64 = arith.mulf %61, %63 : vector<8x512xf32>
    %c168_i32 = arith.constant 168 : i32
    %65 = tpu.dynamic_rotate %27 by %c168_i32 dim 1 : vector<8x512xf32>, i32 -> vector<8x512xf32>
    %c7 = arith.constant 7 : index
    %c0_29 = arith.constant 0 : index
    %66 = vector.load %arg10[%c7, %c0_29] : memref<27x512xf32, #tpu.memory_space<vmem>>, vector<1x512xf32>
    %67 = vector.broadcast %66 : vector<1x512xf32> to vector<8x512xf32>
    %68 = arith.mulf %65, %67 : vector<8x512xf32>
    %69 = tpu.concatenate %64, %68 in 0 : vector<8x512xf32>, vector<8x512xf32> -> vector<16x512xf32>
    %70 = arith.truncf %69 : vector<16x512xf32> to vector<16x512xbf16>
    %c48 = arith.constant 48 : index
    %c0_30 = arith.constant 0 : index
    %71 = vector.load %arg14[%c48, %c0_30] : memref<224x512xbf16, #tpu.memory_space<vmem>>, vector<16x512xbf16>
    tpu.vector_store %arg14[%c48, %c0_30], %70 {strides = array<i32>} : memref<224x512xbf16, #tpu.memory_space<vmem>>, vector<16x512xbf16>,
    %c165_i32 = arith.constant 165 : i32
    %72 = tpu.dynamic_rotate %27 by %c165_i32 dim 1 : vector<8x512xf32>, i32 -> vector<8x512xf32>
    %c8 = arith.constant 8 : index
    %c0_31 = arith.constant 0 : index
    %73 = vector.load %arg10[%c8, %c0_31] : memref<27x512xf32, #tpu.memory_space<vmem>>, vector<1x512xf32>
    %74 = vector.broadcast %73 : vector<1x512xf32> to vector<8x512xf32>
    %75 = arith.mulf %72, %74 : vector<8x512xf32>
    %c27_i32 = arith.constant 27 : i32
    %76 = tpu.dynamic_rotate %27 by %c27_i32 dim 1 : vector<8x512xf32>, i32 -> vector<8x512xf32>
    %c9 = arith.constant 9 : index
    %c0_32 = arith.constant 0 : index
    %77 = vector.load %arg10[%c9, %c0_32] : memref<27x512xf32, #tpu.memory_space<vmem>>, vector<1x512xf32>
    %78 = vector.broadcast %77 : vector<1x512xf32> to vector<8x512xf32>
    %79 = arith.mulf %76, %78 : vector<8x512xf32>
    %80 = tpu.concatenate %75, %79 in 0 : vector<8x512xf32>, vector<8x512xf32> -> vector<16x512xf32>
    %81 = arith.truncf %80 : vector<16x512xf32> to vector<16x512xbf16>
    %c64 = arith.constant 64 : index
    %c0_33 = arith.constant 0 : index
    %82 = vector.load %arg14[%c64, %c0_33] : memref<224x512xbf16, #tpu.memory_space<vmem>>, vector<16x512xbf16>
    tpu.vector_store %arg14[%c64, %c0_33], %81 {strides = array<i32>} : memref<224x512xbf16, #tpu.memory_space<vmem>>, vector<16x512xbf16>,
    %c24_i32 = arith.constant 24 : i32
    %83 = tpu.dynamic_rotate %27 by %c24_i32 dim 1 : vector<8x512xf32>, i32 -> vector<8x512xf32>
    %c10 = arith.constant 10 : index
    %c0_34 = arith.constant 0 : index
    %84 = vector.load %arg10[%c10, %c0_34] : memref<27x512xf32, #tpu.memory_space<vmem>>, vector<1x512xf32>
    %85 = vector.broadcast %84 : vector<1x512xf32> to vector<8x512xf32>
    %86 = arith.mulf %83, %85 : vector<8x512xf32>
    %c21_i32 = arith.constant 21 : i32
    %87 = tpu.dynamic_rotate %27 by %c21_i32 dim 1 : vector<8x512xf32>, i32 -> vector<8x512xf32>
    %c11 = arith.constant 11 : index
    %c0_35 = arith.constant 0 : index
    %88 = vector.load %arg10[%c11, %c0_35] : memref<27x512xf32, #tpu.memory_space<vmem>>, vector<1x512xf32>
    %89 = vector.broadcast %88 : vector<1x512xf32> to vector<8x512xf32>
    %90 = arith.mulf %87, %89 : vector<8x512xf32>
    %91 = tpu.concatenate %86, %90 in 0 : vector<8x512xf32>, vector<8x512xf32> -> vector<16x512xf32>
    %92 = arith.truncf %91 : vector<16x512xf32> to vector<16x512xbf16>
    %c80 = arith.constant 80 : index
    %c0_36 = arith.constant 0 : index
    %93 = vector.load %arg14[%c80, %c0_36] : memref<224x512xbf16, #tpu.memory_space<vmem>>, vector<16x512xbf16>
    tpu.vector_store %arg14[%c80, %c0_36], %92 {strides = array<i32>} : memref<224x512xbf16, #tpu.memory_space<vmem>>, vector<16x512xbf16>,
    %c3_i32 = arith.constant 3 : i32
    %94 = tpu.dynamic_rotate %27 by %c3_i32 dim 1 : vector<8x512xf32>, i32 -> vector<8x512xf32>
    %c12 = arith.constant 12 : index
    %c0_37 = arith.constant 0 : index
    %95 = vector.load %arg10[%c12, %c0_37] : memref<27x512xf32, #tpu.memory_space<vmem>>, vector<1x512xf32>
    %96 = vector.broadcast %95 : vector<1x512xf32> to vector<8x512xf32>
    %97 = arith.mulf %94, %96 : vector<8x512xf32>
    %98 = tpu.concatenate %97, %27 in 0 : vector<8x512xf32>, vector<8x512xf32> -> vector<16x512xf32>
    %99 = arith.truncf %98 : vector<16x512xf32> to vector<16x512xbf16>
    %c96 = arith.constant 96 : index
    %c0_38 = arith.constant 0 : index
    %100 = vector.load %arg14[%c96, %c0_38] : memref<224x512xbf16, #tpu.memory_space<vmem>>, vector<16x512xbf16>
    tpu.vector_store %arg14[%c96, %c0_38], %99 {strides = array<i32>} : memref<224x512xbf16, #tpu.memory_space<vmem>>, vector<16x512xbf16>,
    %c509_i32 = arith.constant 509 : i32
    %101 = tpu.dynamic_rotate %27 by %c509_i32 dim 1 : vector<8x512xf32>, i32 -> vector<8x512xf32>
    %c14 = arith.constant 14 : index
    %c0_39 = arith.constant 0 : index
    %102 = vector.load %arg10[%c14, %c0_39] : memref<27x512xf32, #tpu.memory_space<vmem>>, vector<1x512xf32>
    %103 = vector.broadcast %102 : vector<1x512xf32> to vector<8x512xf32>
    %104 = arith.mulf %101, %103 : vector<8x512xf32>
    %c491_i32 = arith.constant 491 : i32
    %105 = tpu.dynamic_rotate %27 by %c491_i32 dim 1 : vector<8x512xf32>, i32 -> vector<8x512xf32>
    %c15 = arith.constant 15 : index
    %c0_40 = arith.constant 0 : index
    %106 = vector.load %arg10[%c15, %c0_40] : memref<27x512xf32, #tpu.memory_space<vmem>>, vector<1x512xf32>
    %107 = vector.broadcast %106 : vector<1x512xf32> to vector<8x512xf32>
    %108 = arith.mulf %105, %107 : vector<8x512xf32>
    %109 = tpu.concatenate %104, %108 in 0 : vector<8x512xf32>, vector<8x512xf32> -> vector<16x512xf32>
    %110 = arith.truncf %109 : vector<16x512xf32> to vector<16x512xbf16>
    %c112 = arith.constant 112 : index
    %c0_41 = arith.constant 0 : index
    %111 = vector.load %arg14[%c112, %c0_41] : memref<224x512xbf16, #tpu.memory_space<vmem>>, vector<16x512xbf16>
    tpu.vector_store %arg14[%c112, %c0_41], %110 {strides = array<i32>} : memref<224x512xbf16, #tpu.memory_space<vmem>>, vector<16x512xbf16>,
    %c488_i32 = arith.constant 488 : i32
    %112 = tpu.dynamic_rotate %27 by %c488_i32 dim 1 : vector<8x512xf32>, i32 -> vector<8x512xf32>
    %c16_42 = arith.constant 16 : index
    %c0_43 = arith.constant 0 : index
    %113 = vector.load %arg10[%c16_42, %c0_43] : memref<27x512xf32, #tpu.memory_space<vmem>>, vector<1x512xf32>
    %114 = vector.broadcast %113 : vector<1x512xf32> to vector<8x512xf32>
    %115 = arith.mulf %112, %114 : vector<8x512xf32>
    %c485_i32 = arith.constant 485 : i32
    %116 = tpu.dynamic_rotate %27 by %c485_i32 dim 1 : vector<8x512xf32>, i32 -> vector<8x512xf32>
    %c17 = arith.constant 17 : index
    %c0_44 = arith.constant 0 : index
    %117 = vector.load %arg10[%c17, %c0_44] : memref<27x512xf32, #tpu.memory_space<vmem>>, vector<1x512xf32>
    %118 = vector.broadcast %117 : vector<1x512xf32> to vector<8x512xf32>
    %119 = arith.mulf %116, %118 : vector<8x512xf32>
    %120 = tpu.concatenate %115, %119 in 0 : vector<8x512xf32>, vector<8x512xf32> -> vector<16x512xf32>
    %121 = arith.truncf %120 : vector<16x512xf32> to vector<16x512xbf16>
    %c128 = arith.constant 128 : index
    %c0_45 = arith.constant 0 : index
    %122 = vector.load %arg14[%c128, %c0_45] : memref<224x512xbf16, #tpu.memory_space<vmem>>, vector<16x512xbf16>
    tpu.vector_store %arg14[%c128, %c0_45], %121 {strides = array<i32>} : memref<224x512xbf16, #tpu.memory_space<vmem>>, vector<16x512xbf16>,
    %c347_i32 = arith.constant 347 : i32
    %123 = tpu.dynamic_rotate %27 by %c347_i32 dim 1 : vector<8x512xf32>, i32 -> vector<8x512xf32>
    %c18 = arith.constant 18 : index
    %c0_46 = arith.constant 0 : index
    %124 = vector.load %arg10[%c18, %c0_46] : memref<27x512xf32, #tpu.memory_space<vmem>>, vector<1x512xf32>
    %125 = vector.broadcast %124 : vector<1x512xf32> to vector<8x512xf32>
    %126 = arith.mulf %123, %125 : vector<8x512xf32>
    %c344_i32 = arith.constant 344 : i32
    %127 = tpu.dynamic_rotate %27 by %c344_i32 dim 1 : vector<8x512xf32>, i32 -> vector<8x512xf32>
    %c19 = arith.constant 19 : index
    %c0_47 = arith.constant 0 : index
    %128 = vector.load %arg10[%c19, %c0_47] : memref<27x512xf32, #tpu.memory_space<vmem>>, vector<1x512xf32>
    %129 = vector.broadcast %128 : vector<1x512xf32> to vector<8x512xf32>
    %130 = arith.mulf %127, %129 : vector<8x512xf32>
    %131 = tpu.concatenate %126, %130 in 0 : vector<8x512xf32>, vector<8x512xf32> -> vector<16x512xf32>
    %132 = arith.truncf %131 : vector<16x512xf32> to vector<16x512xbf16>
    %c144 = arith.constant 144 : index
    %c0_48 = arith.constant 0 : index
    %133 = vector.load %arg14[%c144, %c0_48] : memref<224x512xbf16, #tpu.memory_space<vmem>>, vector<16x512xbf16>
    tpu.vector_store %arg14[%c144, %c0_48], %132 {strides = array<i32>} : memref<224x512xbf16, #tpu.memory_space<vmem>>, vector<16x512xbf16>,
    %c341_i32 = arith.constant 341 : i32
    %134 = tpu.dynamic_rotate %27 by %c341_i32 dim 1 : vector<8x512xf32>, i32 -> vector<8x512xf32>
    %c20 = arith.constant 20 : index
    %c0_49 = arith.constant 0 : index
    %135 = vector.load %arg10[%c20, %c0_49] : memref<27x512xf32, #tpu.memory_space<vmem>>, vector<1x512xf32>
    %136 = vector.broadcast %135 : vector<1x512xf32> to vector<8x512xf32>
    %137 = arith.mulf %134, %136 : vector<8x512xf32>
    %c323_i32 = arith.constant 323 : i32
    %138 = tpu.dynamic_rotate %27 by %c323_i32 dim 1 : vector<8x512xf32>, i32 -> vector<8x512xf32>
    %c21 = arith.constant 21 : index
    %c0_50 = arith.constant 0 : index
    %139 = vector.load %arg10[%c21, %c0_50] : memref<27x512xf32, #tpu.memory_space<vmem>>, vector<1x512xf32>
    %140 = vector.broadcast %139 : vector<1x512xf32> to vector<8x512xf32>
    %141 = arith.mulf %138, %140 : vector<8x512xf32>
    %142 = tpu.concatenate %137, %141 in 0 : vector<8x512xf32>, vector<8x512xf32> -> vector<16x512xf32>
    %143 = arith.truncf %142 : vector<16x512xf32> to vector<16x512xbf16>
    %c160 = arith.constant 160 : index
    %c0_51 = arith.constant 0 : index
    %144 = vector.load %arg14[%c160, %c0_51] : memref<224x512xbf16, #tpu.memory_space<vmem>>, vector<16x512xbf16>
    tpu.vector_store %arg14[%c160, %c0_51], %143 {strides = array<i32>} : memref<224x512xbf16, #tpu.memory_space<vmem>>, vector<16x512xbf16>,
    %c320_i32 = arith.constant 320 : i32
    %145 = tpu.dynamic_rotate %27 by %c320_i32 dim 1 : vector<8x512xf32>, i32 -> vector<8x512xf32>
    %c22 = arith.constant 22 : index
    %c0_52 = arith.constant 0 : index
    %146 = vector.load %arg10[%c22, %c0_52] : memref<27x512xf32, #tpu.memory_space<vmem>>, vector<1x512xf32>
    %147 = vector.broadcast %146 : vector<1x512xf32> to vector<8x512xf32>
    %148 = arith.mulf %145, %147 : vector<8x512xf32>
    %c317_i32 = arith.constant 317 : i32
    %149 = tpu.dynamic_rotate %27 by %c317_i32 dim 1 : vector<8x512xf32>, i32 -> vector<8x512xf32>
    %c23 = arith.constant 23 : index
    %c0_53 = arith.constant 0 : index
    %150 = vector.load %arg10[%c23, %c0_53] : memref<27x512xf32, #tpu.memory_space<vmem>>, vector<1x512xf32>
    %151 = vector.broadcast %150 : vector<1x512xf32> to vector<8x512xf32>
    %152 = arith.mulf %149, %151 : vector<8x512xf32>
    %153 = tpu.concatenate %148, %152 in 0 : vector<8x512xf32>, vector<8x512xf32> -> vector<16x512xf32>
    %154 = arith.truncf %153 : vector<16x512xf32> to vector<16x512xbf16>
    %c176 = arith.constant 176 : index
    %c0_54 = arith.constant 0 : index
    %155 = vector.load %arg14[%c176, %c0_54] : memref<224x512xbf16, #tpu.memory_space<vmem>>, vector<16x512xbf16>
    tpu.vector_store %arg14[%c176, %c0_54], %154 {strides = array<i32>} : memref<224x512xbf16, #tpu.memory_space<vmem>>, vector<16x512xbf16>,
    %c299_i32 = arith.constant 299 : i32
    %156 = tpu.dynamic_rotate %27 by %c299_i32 dim 1 : vector<8x512xf32>, i32 -> vector<8x512xf32>
    %c24 = arith.constant 24 : index
    %c0_55 = arith.constant 0 : index
    %157 = vector.load %arg10[%c24, %c0_55] : memref<27x512xf32, #tpu.memory_space<vmem>>, vector<1x512xf32>
    %158 = vector.broadcast %157 : vector<1x512xf32> to vector<8x512xf32>
    %159 = arith.mulf %156, %158 : vector<8x512xf32>
    %c296_i32 = arith.constant 296 : i32
    %160 = tpu.dynamic_rotate %27 by %c296_i32 dim 1 : vector<8x512xf32>, i32 -> vector<8x512xf32>
    %c25 = arith.constant 25 : index
    %c0_56 = arith.constant 0 : index
    %161 = vector.load %arg10[%c25, %c0_56] : memref<27x512xf32, #tpu.memory_space<vmem>>, vector<1x512xf32>
    %162 = vector.broadcast %161 : vector<1x512xf32> to vector<8x512xf32>
    %163 = arith.mulf %160, %162 : vector<8x512xf32>
    %164 = tpu.concatenate %159, %163 in 0 : vector<8x512xf32>, vector<8x512xf32> -> vector<16x512xf32>
    %165 = arith.truncf %164 : vector<16x512xf32> to vector<16x512xbf16>
    %c192 = arith.constant 192 : index
    %c0_57 = arith.constant 0 : index
    %166 = vector.load %arg14[%c192, %c0_57] : memref<224x512xbf16, #tpu.memory_space<vmem>>, vector<16x512xbf16>
    tpu.vector_store %arg14[%c192, %c0_57], %165 {strides = array<i32>} : memref<224x512xbf16, #tpu.memory_space<vmem>>, vector<16x512xbf16>,
    %c293_i32 = arith.constant 293 : i32
    %167 = tpu.dynamic_rotate %27 by %c293_i32 dim 1 : vector<8x512xf32>, i32 -> vector<8x512xf32>
    %c26 = arith.constant 26 : index
    %c0_58 = arith.constant 0 : index
    %168 = vector.load %arg10[%c26, %c0_58] : memref<27x512xf32, #tpu.memory_space<vmem>>, vector<1x512xf32>
    %169 = vector.broadcast %168 : vector<1x512xf32> to vector<8x512xf32>
    %170 = arith.mulf %167, %169 : vector<8x512xf32>
    %cst_59 = arith.constant 0.000000e+00 : f32
    %171 = vector.broadcast %cst_59 : f32 to vector<8x512xf32>
    %172 = tpu.concatenate %170, %171 in 0 : vector<8x512xf32>, vector<8x512xf32> -> vector<16x512xf32>
    %173 = arith.truncf %172 : vector<16x512xf32> to vector<16x512xbf16>
    %c208 = arith.constant 208 : index
    %c0_60 = arith.constant 0 : index
    %174 = vector.load %arg14[%c208, %c0_60] : memref<224x512xbf16, #tpu.memory_space<vmem>>, vector<16x512xbf16>
    tpu.vector_store %arg14[%c208, %c0_60], %173 {strides = array<i32>} : memref<224x512xbf16, #tpu.memory_space<vmem>>, vector<16x512xbf16>,
    %c0_61 = arith.constant 0 : index
    %c0_62 = arith.constant 0 : index
    %175 = vector.load %arg6[%c0_61, %c0_62] : memref<4x224xbf16, #tpu.memory_space<vmem>>, vector<4x224xbf16>
    %c0_63 = arith.constant 0 : index
    %c0_64 = arith.constant 0 : index
    %176 = vector.load %arg14[%c0_63, %c0_64] : memref<224x512xbf16, #tpu.memory_space<vmem>>, vector<224x512xbf16>
    %cst_65 = arith.constant dense<0.000000e+00> : vector<4x512xf32>
    %177 = tpu.matmul %175, %176, %cst_65 {dimension_numbers = #tpu.dot_dimension_numbers<[1], [0], [0], [1], [0, 0, 1, 1], [], []>} : vector<4x224xbf16>, vector<224x512xbf16>, vector<4x512xf32> -> vector<4x512xf32>
    %cst_66 = arith.constant dense<0.000000e+00> : vector<4xf32>
    %178 = vector.multi_reduction <add>, %177, %cst_66 [1] : vector<4x512xf32> to vector<4xf32>
    %179 = vector.shape_cast %178 : vector<4xf32> to vector<4x1xf32>
    %cst_67 = arith.constant 5.120000e+02 : f32
    %180 = vector.broadcast %cst_67 : f32 to vector<4x1xf32>
    %181 = arith.divf %179, %180 : vector<4x1xf32>
    %182 = vector.broadcast %181 : vector<4x1xf32> to vector<4x512xf32>
    %183 = arith.subf %177, %182 : vector<4x512xf32>
    %184 = arith.mulf %183, %183 : vector<4x512xf32>
    %cst_68 = arith.constant dense<0.000000e+00> : vector<4xf32>
    %185 = vector.multi_reduction <add>, %184, %cst_68 [1] : vector<4x512xf32> to vector<4xf32>
    %186 = vector.shape_cast %185 : vector<4xf32> to vector<4x1xf32>
    %cst_69 = arith.constant 5.120000e+02 : f32
    %187 = vector.broadcast %cst_69 : f32 to vector<4x1xf32>
    %188 = arith.divf %186, %187 : vector<4x1xf32>
    %cst_70 = arith.constant 9.99999974E-6 : f32
    %189 = vector.broadcast %cst_70 : f32 to vector<4x1xf32>
    %190 = arith.addf %188, %189 : vector<4x1xf32>
    %191 = math.rsqrt %190 : vector<4x1xf32>
    %192 = vector.broadcast %191 : vector<4x1xf32> to vector<4x512xf32>
    %193 = arith.mulf %183, %192 : vector<4x512xf32>
    %cst_71 = arith.constant 0.000000e+00 : f32
    %194 = vector.broadcast %cst_71 : f32 to vector<4x512xf32>
    %195 = arith.maximumf %193, %194 : vector<4x512xf32>
    %c4_72 = arith.constant 4 : index
    %c0_73 = arith.constant 0 : index
    %196 = vector.load %arg13[%c4_72, %c0_73] : memref<20x512xf32, #tpu.memory_space<vmem>>, vector<4x512xf32>
    tpu.vector_store %arg13[%c4_72, %c0_73], %195 {strides = array<i32>} : memref<20x512xf32, #tpu.memory_space<vmem>>, vector<4x512xf32>,
    %c0_74 = arith.constant 0 : index
    %c12_75 = arith.constant 12 : index
    %c0_76 = arith.constant 0 : index
    %197 = vector.load %arg12[%c0_74, %c12_75, %c0_76] : memref<1x20x512xf32, #tpu.memory_space<vmem>>, vector<1x4x512xf32>
    %198 = vector.shape_cast %197 : vector<1x4x512xf32> to vector<4x512xf32>
    %199 = vector.shape_cast %195 : vector<4x512xf32> to vector<1x4x512xf32>
    tpu.vector_store %arg12[%c0_74, %c12_75, %c0_76], %199 {strides = array<i32>} : memref<1x20x512xf32, #tpu.memory_space<vmem>>, vector<1x4x512xf32>,
    %c0_77 = arith.constant 0 : index
    %c0_78 = arith.constant 0 : index
    %200 = vector.load %arg13[%c0_77, %c0_78] : memref<20x512xf32, #tpu.memory_space<vmem>>, vector<8x512xf32>
    %201 = arith.truncf %200 : vector<8x512xf32> to vector<8x512xbf16>
    %c0_79 = arith.constant 0 : index
    %c0_80 = arith.constant 0 : index
    %202 = vector.load %arg3[%c0_79, %c0_80] : memref<8x8xbf16, #tpu.memory_space<vmem>>, vector<8x8xbf16>
    %cst_81 = arith.constant dense<0.000000e+00> : vector<8x512xf32>
    %203 = tpu.matmul %202, %201, %cst_81 {dimension_numbers = #tpu.dot_dimension_numbers<[1], [0], [0], [1], [0, 0, 1, 1], [], []>} : vector<8x8xbf16>, vector<8x512xbf16>, vector<8x512xf32> -> vector<8x512xf32>
    %cst_82 = arith.constant dense<0.000000e+00> : vector<8xf32>
    %204 = vector.multi_reduction <add>, %203, %cst_82 [1] : vector<8x512xf32> to vector<8xf32>
    %205 = vector.shape_cast %204 : vector<8xf32> to vector<8x1xf32>
    %cst_83 = arith.constant 5.120000e+02 : f32
    %206 = vector.broadcast %cst_83 : f32 to vector<8x1xf32>
    %207 = arith.divf %205, %206 : vector<8x1xf32>
    %208 = vector.broadcast %207 : vector<8x1xf32> to vector<8x512xf32>
    %209 = arith.subf %203, %208 : vector<8x512xf32>
    %210 = arith.mulf %209, %209 : vector<8x512xf32>
    %cst_84 = arith.constant dense<0.000000e+00> : vector<8xf32>
    %211 = vector.multi_reduction <add>, %210, %cst_84 [1] : vector<8x512xf32> to vector<8xf32>
    %212 = vector.shape_cast %211 : vector<8xf32> to vector<8x1xf32>
    %cst_85 = arith.constant 5.120000e+02 : f32
    %213 = vector.broadcast %cst_85 : f32 to vector<8x1xf32>
    %214 = arith.divf %212, %213 : vector<8x1xf32>
    %cst_86 = arith.constant 9.99999974E-6 : f32
    %215 = vector.broadcast %cst_86 : f32 to vector<8x1xf32>
    %216 = arith.addf %214, %215 : vector<8x1xf32>
    %217 = math.rsqrt %216 : vector<8x1xf32>
    %218 = vector.broadcast %217 : vector<8x1xf32> to vector<8x512xf32>
    %219 = arith.mulf %209, %218 : vector<8x512xf32>
    %cst_87 = arith.constant 0.000000e+00 : f32
    %220 = vector.broadcast %cst_87 : f32 to vector<8x512xf32>
    %221 = arith.maximumf %219, %220 : vector<8x512xf32>
    %c438_i32 = arith.constant 438 : i32
    %222 = tpu.dynamic_rotate %221 by %c438_i32 dim 1 : vector<8x512xf32>, i32 -> vector<8x512xf32>
    %c0_88 = arith.constant 0 : index
    %c0_89 = arith.constant 0 : index
    %223 = vector.load %arg11[%c0_88, %c0_89] : memref<27x512xf32, #tpu.memory_space<vmem>>, vector<1x512xf32>
    %224 = vector.broadcast %223 : vector<1x512xf32> to vector<8x512xf32>
    %225 = arith.mulf %222, %224 : vector<8x512xf32>
    %c432_i32 = arith.constant 432 : i32
    %226 = tpu.dynamic_rotate %221 by %c432_i32 dim 1 : vector<8x512xf32>, i32 -> vector<8x512xf32>
    %c1_90 = arith.constant 1 : index
    %c0_91 = arith.constant 0 : index
    %227 = vector.load %arg11[%c1_90, %c0_91] : memref<27x512xf32, #tpu.memory_space<vmem>>, vector<1x512xf32>
    %228 = vector.broadcast %227 : vector<1x512xf32> to vector<8x512xf32>
    %229 = arith.mulf %226, %228 : vector<8x512xf32>
    %230 = tpu.concatenate %225, %229 in 0 : vector<8x512xf32>, vector<8x512xf32> -> vector<16x512xf32>
    %231 = arith.truncf %230 : vector<16x512xf32> to vector<16x512xbf16>
    %c0_92 = arith.constant 0 : index
    %c0_93 = arith.constant 0 : index
    %232 = vector.load %arg14[%c0_92, %c0_93] : memref<224x512xbf16, #tpu.memory_space<vmem>>, vector<16x512xbf16>
    tpu.vector_store %arg14[%c0_92, %c0_93], %231 {strides = array<i32>} : memref<224x512xbf16, #tpu.memory_space<vmem>>, vector<16x512xbf16>,
    %c426_i32 = arith.constant 426 : i32
    %233 = tpu.dynamic_rotate %221 by %c426_i32 dim 1 : vector<8x512xf32>, i32 -> vector<8x512xf32>
    %c2_94 = arith.constant 2 : index
    %c0_95 = arith.constant 0 : index
    %234 = vector.load %arg11[%c2_94, %c0_95] : memref<27x512xf32, #tpu.memory_space<vmem>>, vector<1x512xf32>
    %235 = vector.broadcast %234 : vector<1x512xf32> to vector<8x512xf32>
    %236 = arith.mulf %233, %235 : vector<8x512xf32>
    %c390_i32 = arith.constant 390 : i32
    %237 = tpu.dynamic_rotate %221 by %c390_i32 dim 1 : vector<8x512xf32>, i32 -> vector<8x512xf32>
    %c3_96 = arith.constant 3 : index
    %c0_97 = arith.constant 0 : index
    %238 = vector.load %arg11[%c3_96, %c0_97] : memref<27x512xf32, #tpu.memory_space<vmem>>, vector<1x512xf32>
    %239 = vector.broadcast %238 : vector<1x512xf32> to vector<8x512xf32>
    %240 = arith.mulf %237, %239 : vector<8x512xf32>
    %241 = tpu.concatenate %236, %240 in 0 : vector<8x512xf32>, vector<8x512xf32> -> vector<16x512xf32>
    %242 = arith.truncf %241 : vector<16x512xf32> to vector<16x512xbf16>
    %c16_98 = arith.constant 16 : index
    %c0_99 = arith.constant 0 : index
    %243 = vector.load %arg14[%c16_98, %c0_99] : memref<224x512xbf16, #tpu.memory_space<vmem>>, vector<16x512xbf16>
    tpu.vector_store %arg14[%c16_98, %c0_99], %242 {strides = array<i32>} : memref<224x512xbf16, #tpu.memory_space<vmem>>, vector<16x512xbf16>,
    %c384_i32 = arith.constant 384 : i32
    %244 = tpu.dynamic_rotate %221 by %c384_i32 dim 1 : vector<8x512xf32>, i32 -> vector<8x512xf32>
    %c4_100 = arith.constant 4 : index
    %c0_101 = arith.constant 0 : index
    %245 = vector.load %arg11[%c4_100, %c0_101] : memref<27x512xf32, #tpu.memory_space<vmem>>, vector<1x512xf32>
    %246 = vector.broadcast %245 : vector<1x512xf32> to vector<8x512xf32>
    %247 = arith.mulf %244, %246 : vector<8x512xf32>
    %c378_i32 = arith.constant 378 : i32
    %248 = tpu.dynamic_rotate %221 by %c378_i32 dim 1 : vector<8x512xf32>, i32 -> vector<8x512xf32>
    %c5_102 = arith.constant 5 : index
    %c0_103 = arith.constant 0 : index
    %249 = vector.load %arg11[%c5_102, %c0_103] : memref<27x512xf32, #tpu.memory_space<vmem>>, vector<1x512xf32>
    %250 = vector.broadcast %249 : vector<1x512xf32> to vector<8x512xf32>
    %251 = arith.mulf %248, %250 : vector<8x512xf32>
    %252 = tpu.concatenate %247, %251 in 0 : vector<8x512xf32>, vector<8x512xf32> -> vector<16x512xf32>
    %253 = arith.truncf %252 : vector<16x512xf32> to vector<16x512xbf16>
    %c32_104 = arith.constant 32 : index
    %c0_105 = arith.constant 0 : index
    %254 = vector.load %arg14[%c32_104, %c0_105] : memref<224x512xbf16, #tpu.memory_space<vmem>>, vector<16x512xbf16>
    tpu.vector_store %arg14[%c32_104, %c0_105], %253 {strides = array<i32>} : memref<224x512xbf16, #tpu.memory_space<vmem>>, vector<16x512xbf16>,
    %c342_i32 = arith.constant 342 : i32
    %255 = tpu.dynamic_rotate %221 by %c342_i32 dim 1 : vector<8x512xf32>, i32 -> vector<8x512xf32>
    %c6_106 = arith.constant 6 : index
    %c0_107 = arith.constant 0 : index
    %256 = vector.load %arg11[%c6_106, %c0_107] : memref<27x512xf32, #tpu.memory_space<vmem>>, vector<1x512xf32>
    %257 = vector.broadcast %256 : vector<1x512xf32> to vector<8x512xf32>
    %258 = arith.mulf %255, %257 : vector<8x512xf32>
    %c336_i32 = arith.constant 336 : i32
    %259 = tpu.dynamic_rotate %221 by %c336_i32 dim 1 : vector<8x512xf32>, i32 -> vector<8x512xf32>
    %c7_108 = arith.constant 7 : index
    %c0_109 = arith.constant 0 : index
    %260 = vector.load %arg11[%c7_108, %c0_109] : memref<27x512xf32, #tpu.memory_space<vmem>>, vector<1x512xf32>
    %261 = vector.broadcast %260 : vector<1x512xf32> to vector<8x512xf32>
    %262 = arith.mulf %259, %261 : vector<8x512xf32>
    %263 = tpu.concatenate %258, %262 in 0 : vector<8x512xf32>, vector<8x512xf32> -> vector<16x512xf32>
    %264 = arith.truncf %263 : vector<16x512xf32> to vector<16x512xbf16>
    %c48_110 = arith.constant 48 : index
    %c0_111 = arith.constant 0 : index
    %265 = vector.load %arg14[%c48_110, %c0_111] : memref<224x512xbf16, #tpu.memory_space<vmem>>, vector<16x512xbf16>
    tpu.vector_store %arg14[%c48_110, %c0_111], %264 {strides = array<i32>} : memref<224x512xbf16, #tpu.memory_space<vmem>>, vector<16x512xbf16>,
    %c330_i32 = arith.constant 330 : i32
    %266 = tpu.dynamic_rotate %221 by %c330_i32 dim 1 : vector<8x512xf32>, i32 -> vector<8x512xf32>
    %c8_112 = arith.constant 8 : index
    %c0_113 = arith.constant 0 : index
    %267 = vector.load %arg11[%c8_112, %c0_113] : memref<27x512xf32, #tpu.memory_space<vmem>>, vector<1x512xf32>
    %268 = vector.broadcast %267 : vector<1x512xf32> to vector<8x512xf32>
    %269 = arith.mulf %266, %268 : vector<8x512xf32>
    %c54_i32 = arith.constant 54 : i32
    %270 = tpu.dynamic_rotate %221 by %c54_i32 dim 1 : vector<8x512xf32>, i32 -> vector<8x512xf32>
    %c9_114 = arith.constant 9 : index
    %c0_115 = arith.constant 0 : index
    %271 = vector.load %arg11[%c9_114, %c0_115] : memref<27x512xf32, #tpu.memory_space<vmem>>, vector<1x512xf32>
    %272 = vector.broadcast %271 : vector<1x512xf32> to vector<8x512xf32>
    %273 = arith.mulf %270, %272 : vector<8x512xf32>
    %274 = tpu.concatenate %269, %273 in 0 : vector<8x512xf32>, vector<8x512xf32> -> vector<16x512xf32>
    %275 = arith.truncf %274 : vector<16x512xf32> to vector<16x512xbf16>
    %c64_116 = arith.constant 64 : index
    %c0_117 = arith.constant 0 : index
    %276 = vector.load %arg14[%c64_116, %c0_117] : memref<224x512xbf16, #tpu.memory_space<vmem>>, vector<16x512xbf16>
    tpu.vector_store %arg14[%c64_116, %c0_117], %275 {strides = array<i32>} : memref<224x512xbf16, #tpu.memory_space<vmem>>, vector<16x512xbf16>,
    %c48_i32 = arith.constant 48 : i32
    %277 = tpu.dynamic_rotate %221 by %c48_i32 dim 1 : vector<8x512xf32>, i32 -> vector<8x512xf32>
    %c10_118 = arith.constant 10 : index
    %c0_119 = arith.constant 0 : index
    %278 = vector.load %arg11[%c10_118, %c0_119] : memref<27x512xf32, #tpu.memory_space<vmem>>, vector<1x512xf32>
    %279 = vector.broadcast %278 : vector<1x512xf32> to vector<8x512xf32>
    %280 = arith.mulf %277, %279 : vector<8x512xf32>
    %c42_i32 = arith.constant 42 : i32
    %281 = tpu.dynamic_rotate %221 by %c42_i32 dim 1 : vector<8x512xf32>, i32 -> vector<8x512xf32>
    %c11_120 = arith.constant 11 : index
    %c0_121 = arith.constant 0 : index
    %282 = vector.load %arg11[%c11_120, %c0_121] : memref<27x512xf32, #tpu.memory_space<vmem>>, vector<1x512xf32>
    %283 = vector.broadcast %282 : vector<1x512xf32> to vector<8x512xf32>
    %284 = arith.mulf %281, %283 : vector<8x512xf32>
    %285 = tpu.concatenate %280, %284 in 0 : vector<8x512xf32>, vector<8x512xf32> -> vector<16x512xf32>
    %286 = arith.truncf %285 : vector<16x512xf32> to vector<16x512xbf16>
    %c80_122 = arith.constant 80 : index
    %c0_123 = arith.constant 0 : index
    %287 = vector.load %arg14[%c80_122, %c0_123] : memref<224x512xbf16, #tpu.memory_space<vmem>>, vector<16x512xbf16>
    tpu.vector_store %arg14[%c80_122, %c0_123], %286 {strides = array<i32>} : memref<224x512xbf16, #tpu.memory_space<vmem>>, vector<16x512xbf16>,
    %c6_i32 = arith.constant 6 : i32
    %288 = tpu.dynamic_rotate %221 by %c6_i32 dim 1 : vector<8x512xf32>, i32 -> vector<8x512xf32>
    %c12_124 = arith.constant 12 : index
    %c0_125 = arith.constant 0 : index
    %289 = vector.load %arg11[%c12_124, %c0_125] : memref<27x512xf32, #tpu.memory_space<vmem>>, vector<1x512xf32>
    %290 = vector.broadcast %289 : vector<1x512xf32> to vector<8x512xf32>
    %291 = arith.mulf %288, %290 : vector<8x512xf32>
    %292 = tpu.concatenate %291, %221 in 0 : vector<8x512xf32>, vector<8x512xf32> -> vector<16x512xf32>
    %293 = arith.truncf %292 : vector<16x512xf32> to vector<16x512xbf16>
    %c96_126 = arith.constant 96 : index
    %c0_127 = arith.constant 0 : index
    %294 = vector.load %arg14[%c96_126, %c0_127] : memref<224x512xbf16, #tpu.memory_space<vmem>>, vector<16x512xbf16>
    tpu.vector_store %arg14[%c96_126, %c0_127], %293 {strides = array<i32>} : memref<224x512xbf16, #tpu.memory_space<vmem>>, vector<16x512xbf16>,
    %c506_i32 = arith.constant 506 : i32
    %295 = tpu.dynamic_rotate %221 by %c506_i32 dim 1 : vector<8x512xf32>, i32 -> vector<8x512xf32>
    %c14_128 = arith.constant 14 : index
    %c0_129 = arith.constant 0 : index
    %296 = vector.load %arg11[%c14_128, %c0_129] : memref<27x512xf32, #tpu.memory_space<vmem>>, vector<1x512xf32>
    %297 = vector.broadcast %296 : vector<1x512xf32> to vector<8x512xf32>
    %298 = arith.mulf %295, %297 : vector<8x512xf32>
    %c470_i32 = arith.constant 470 : i32
    %299 = tpu.dynamic_rotate %221 by %c470_i32 dim 1 : vector<8x512xf32>, i32 -> vector<8x512xf32>
    %c15_130 = arith.constant 15 : index
    %c0_131 = arith.constant 0 : index
    %300 = vector.load %arg11[%c15_130, %c0_131] : memref<27x512xf32, #tpu.memory_space<vmem>>, vector<1x512xf32>
    %301 = vector.broadcast %300 : vector<1x512xf32> to vector<8x512xf32>
    %302 = arith.mulf %299, %301 : vector<8x512xf32>
    %303 = tpu.concatenate %298, %302 in 0 : vector<8x512xf32>, vector<8x512xf32> -> vector<16x512xf32>
    %304 = arith.truncf %303 : vector<16x512xf32> to vector<16x512xbf16>
    %c112_132 = arith.constant 112 : index
    %c0_133 = arith.constant 0 : index
    %305 = vector.load %arg14[%c112_132, %c0_133] : memref<224x512xbf16, #tpu.memory_space<vmem>>, vector<16x512xbf16>
    tpu.vector_store %arg14[%c112_132, %c0_133], %304 {strides = array<i32>} : memref<224x512xbf16, #tpu.memory_space<vmem>>, vector<16x512xbf16>,
    %c464_i32 = arith.constant 464 : i32
    %306 = tpu.dynamic_rotate %221 by %c464_i32 dim 1 : vector<8x512xf32>, i32 -> vector<8x512xf32>
    %c16_134 = arith.constant 16 : index
    %c0_135 = arith.constant 0 : index
    %307 = vector.load %arg11[%c16_134, %c0_135] : memref<27x512xf32, #tpu.memory_space<vmem>>, vector<1x512xf32>
    %308 = vector.broadcast %307 : vector<1x512xf32> to vector<8x512xf32>
    %309 = arith.mulf %306, %308 : vector<8x512xf32>
    %c458_i32 = arith.constant 458 : i32
    %310 = tpu.dynamic_rotate %221 by %c458_i32 dim 1 : vector<8x512xf32>, i32 -> vector<8x512xf32>
    %c17_136 = arith.constant 17 : index
    %c0_137 = arith.constant 0 : index
    %311 = vector.load %arg11[%c17_136, %c0_137] : memref<27x512xf32, #tpu.memory_space<vmem>>, vector<1x512xf32>
    %312 = vector.broadcast %311 : vector<1x512xf32> to vector<8x512xf32>
    %313 = arith.mulf %310, %312 : vector<8x512xf32>
    %314 = tpu.concatenate %309, %313 in 0 : vector<8x512xf32>, vector<8x512xf32> -> vector<16x512xf32>
    %315 = arith.truncf %314 : vector<16x512xf32> to vector<16x512xbf16>
    %c128_138 = arith.constant 128 : index
    %c0_139 = arith.constant 0 : index
    %316 = vector.load %arg14[%c128_138, %c0_139] : memref<224x512xbf16, #tpu.memory_space<vmem>>, vector<16x512xbf16>
    tpu.vector_store %arg14[%c128_138, %c0_139], %315 {strides = array<i32>} : memref<224x512xbf16, #tpu.memory_space<vmem>>, vector<16x512xbf16>,
    %c182_i32 = arith.constant 182 : i32
    %317 = tpu.dynamic_rotate %221 by %c182_i32 dim 1 : vector<8x512xf32>, i32 -> vector<8x512xf32>
    %c18_140 = arith.constant 18 : index
    %c0_141 = arith.constant 0 : index
    %318 = vector.load %arg11[%c18_140, %c0_141] : memref<27x512xf32, #tpu.memory_space<vmem>>, vector<1x512xf32>
    %319 = vector.broadcast %318 : vector<1x512xf32> to vector<8x512xf32>
    %320 = arith.mulf %317, %319 : vector<8x512xf32>
    %c176_i32 = arith.constant 176 : i32
    %321 = tpu.dynamic_rotate %221 by %c176_i32 dim 1 : vector<8x512xf32>, i32 -> vector<8x512xf32>
    %c19_142 = arith.constant 19 : index
    %c0_143 = arith.constant 0 : index
    %322 = vector.load %arg11[%c19_142, %c0_143] : memref<27x512xf32, #tpu.memory_space<vmem>>, vector<1x512xf32>
    %323 = vector.broadcast %322 : vector<1x512xf32> to vector<8x512xf32>
    %324 = arith.mulf %321, %323 : vector<8x512xf32>
    %325 = tpu.concatenate %320, %324 in 0 : vector<8x512xf32>, vector<8x512xf32> -> vector<16x512xf32>
    %326 = arith.truncf %325 : vector<16x512xf32> to vector<16x512xbf16>
    %c144_144 = arith.constant 144 : index
    %c0_145 = arith.constant 0 : index
    %327 = vector.load %arg14[%c144_144, %c0_145] : memref<224x512xbf16, #tpu.memory_space<vmem>>, vector<16x512xbf16>
    tpu.vector_store %arg14[%c144_144, %c0_145], %326 {strides = array<i32>} : memref<224x512xbf16, #tpu.memory_space<vmem>>, vector<16x512xbf16>,
    %c170_i32 = arith.constant 170 : i32
    %328 = tpu.dynamic_rotate %221 by %c170_i32 dim 1 : vector<8x512xf32>, i32 -> vector<8x512xf32>
    %c20_146 = arith.constant 20 : index
    %c0_147 = arith.constant 0 : index
    %329 = vector.load %arg11[%c20_146, %c0_147] : memref<27x512xf32, #tpu.memory_space<vmem>>, vector<1x512xf32>
    %330 = vector.broadcast %329 : vector<1x512xf32> to vector<8x512xf32>
    %331 = arith.mulf %328, %330 : vector<8x512xf32>
    %c134_i32 = arith.constant 134 : i32
    %332 = tpu.dynamic_rotate %221 by %c134_i32 dim 1 : vector<8x512xf32>, i32 -> vector<8x512xf32>
    %c21_148 = arith.constant 21 : index
    %c0_149 = arith.constant 0 : index
    %333 = vector.load %arg11[%c21_148, %c0_149] : memref<27x512xf32, #tpu.memory_space<vmem>>, vector<1x512xf32>
    %334 = vector.broadcast %333 : vector<1x512xf32> to vector<8x512xf32>
    %335 = arith.mulf %332, %334 : vector<8x512xf32>
    %336 = tpu.concatenate %331, %335 in 0 : vector<8x512xf32>, vector<8x512xf32> -> vector<16x512xf32>
    %337 = arith.truncf %336 : vector<16x512xf32> to vector<16x512xbf16>
    %c160_150 = arith.constant 160 : index
    %c0_151 = arith.constant 0 : index
    %338 = vector.load %arg14[%c160_150, %c0_151] : memref<224x512xbf16, #tpu.memory_space<vmem>>, vector<16x512xbf16>
    tpu.vector_store %arg14[%c160_150, %c0_151], %337 {strides = array<i32>} : memref<224x512xbf16, #tpu.memory_space<vmem>>, vector<16x512xbf16>,
    %c128_i32 = arith.constant 128 : i32
    %339 = tpu.dynamic_rotate %221 by %c128_i32 dim 1 : vector<8x512xf32>, i32 -> vector<8x512xf32>
    %c22_152 = arith.constant 22 : index
    %c0_153 = arith.constant 0 : index
    %340 = vector.load %arg11[%c22_152, %c0_153] : memref<27x512xf32, #tpu.memory_space<vmem>>, vector<1x512xf32>
    %341 = vector.broadcast %340 : vector<1x512xf32> to vector<8x512xf32>
    %342 = arith.mulf %339, %341 : vector<8x512xf32>
    %c122_i32 = arith.constant 122 : i32
    %343 = tpu.dynamic_rotate %221 by %c122_i32 dim 1 : vector<8x512xf32>, i32 -> vector<8x512xf32>
    %c23_154 = arith.constant 23 : index
    %c0_155 = arith.constant 0 : index
    %344 = vector.load %arg11[%c23_154, %c0_155] : memref<27x512xf32, #tpu.memory_space<vmem>>, vector<1x512xf32>
    %345 = vector.broadcast %344 : vector<1x512xf32> to vector<8x512xf32>
    %346 = arith.mulf %343, %345 : vector<8x512xf32>
    %347 = tpu.concatenate %342, %346 in 0 : vector<8x512xf32>, vector<8x512xf32> -> vector<16x512xf32>
    %348 = arith.truncf %347 : vector<16x512xf32> to vector<16x512xbf16>
    %c176_156 = arith.constant 176 : index
    %c0_157 = arith.constant 0 : index
    %349 = vector.load %arg14[%c176_156, %c0_157] : memref<224x512xbf16, #tpu.memory_space<vmem>>, vector<16x512xbf16>
    tpu.vector_store %arg14[%c176_156, %c0_157], %348 {strides = array<i32>} : memref<224x512xbf16, #tpu.memory_space<vmem>>, vector<16x512xbf16>,
    %c86_i32 = arith.constant 86 : i32
    %350 = tpu.dynamic_rotate %221 by %c86_i32 dim 1 : vector<8x512xf32>, i32 -> vector<8x512xf32>
    %c24_158 = arith.constant 24 : index
    %c0_159 = arith.constant 0 : index
    %351 = vector.load %arg11[%c24_158, %c0_159] : memref<27x512xf32, #tpu.memory_space<vmem>>, vector<1x512xf32>
    %352 = vector.broadcast %351 : vector<1x512xf32> to vector<8x512xf32>
    %353 = arith.mulf %350, %352 : vector<8x512xf32>
    %c80_i32 = arith.constant 80 : i32
    %354 = tpu.dynamic_rotate %221 by %c80_i32 dim 1 : vector<8x512xf32>, i32 -> vector<8x512xf32>
    %c25_160 = arith.constant 25 : index
    %c0_161 = arith.constant 0 : index
    %355 = vector.load %arg11[%c25_160, %c0_161] : memref<27x512xf32, #tpu.memory_space<vmem>>, vector<1x512xf32>
    %356 = vector.broadcast %355 : vector<1x512xf32> to vector<8x512xf32>
    %357 = arith.mulf %354, %356 : vector<8x512xf32>
    %358 = tpu.concatenate %353, %357 in 0 : vector<8x512xf32>, vector<8x512xf32> -> vector<16x512xf32>
    %359 = arith.truncf %358 : vector<16x512xf32> to vector<16x512xbf16>
    %c192_162 = arith.constant 192 : index
    %c0_163 = arith.constant 0 : index
    %360 = vector.load %arg14[%c192_162, %c0_163] : memref<224x512xbf16, #tpu.memory_space<vmem>>, vector<16x512xbf16>
    tpu.vector_store %arg14[%c192_162, %c0_163], %359 {strides = array<i32>} : memref<224x512xbf16, #tpu.memory_space<vmem>>, vector<16x512xbf16>,
    %c74_i32 = arith.constant 74 : i32
    %361 = tpu.dynamic_rotate %221 by %c74_i32 dim 1 : vector<8x512xf32>, i32 -> vector<8x512xf32>
    %c26_164 = arith.constant 26 : index
    %c0_165 = arith.constant 0 : index
    %362 = vector.load %arg11[%c26_164, %c0_165] : memref<27x512xf32, #tpu.memory_space<vmem>>, vector<1x512xf32>
    %363 = vector.broadcast %362 : vector<1x512xf32> to vector<8x512xf32>
    %364 = arith.mulf %361, %363 : vector<8x512xf32>
    %cst_166 = arith.constant 0.000000e+00 : f32
    %365 = vector.broadcast %cst_166 : f32 to vector<8x512xf32>
    %366 = tpu.concatenate %364, %365 in 0 : vector<8x512xf32>, vector<8x512xf32> -> vector<16x512xf32>
    %367 = arith.truncf %366 : vector<16x512xf32> to vector<16x512xbf16>
    %c208_167 = arith.constant 208 : index
    %c0_168 = arith.constant 0 : index
    %368 = vector.load %arg14[%c208_167, %c0_168] : memref<224x512xbf16, #tpu.memory_space<vmem>>, vector<16x512xbf16>
    tpu.vector_store %arg14[%c208_167, %c0_168], %367 {strides = array<i32>} : memref<224x512xbf16, #tpu.memory_space<vmem>>, vector<16x512xbf16>,
    %c0_169 = arith.constant 0 : index
    %c0_170 = arith.constant 0 : index
    %369 = vector.load %arg7[%c0_169, %c0_170] : memref<4x224xbf16, #tpu.memory_space<vmem>>, vector<4x224xbf16>
    %c0_171 = arith.constant 0 : index
    %c0_172 = arith.constant 0 : index
    %370 = vector.load %arg14[%c0_171, %c0_172] : memref<224x512xbf16, #tpu.memory_space<vmem>>, vector<224x512xbf16>
    %cst_173 = arith.constant dense<0.000000e+00> : vector<4x512xf32>
    %371 = tpu.matmul %369, %370, %cst_173 {dimension_numbers = #tpu.dot_dimension_numbers<[1], [0], [0], [1], [0, 0, 1, 1], [], []>} : vector<4x224xbf16>, vector<224x512xbf16>, vector<4x512xf32> -> vector<4x512xf32>
    %cst_174 = arith.constant dense<0.000000e+00> : vector<4xf32>
    %372 = vector.multi_reduction <add>, %371, %cst_174 [1] : vector<4x512xf32> to vector<4xf32>
    %373 = vector.shape_cast %372 : vector<4xf32> to vector<4x1xf32>
    %cst_175 = arith.constant 5.120000e+02 : f32
    %374 = vector.broadcast %cst_175 : f32 to vector<4x1xf32>
    %375 = arith.divf %373, %374 : vector<4x1xf32>
    %376 = vector.broadcast %375 : vector<4x1xf32> to vector<4x512xf32>
    %377 = arith.subf %371, %376 : vector<4x512xf32>
    %378 = arith.mulf %377, %377 : vector<4x512xf32>
    %cst_176 = arith.constant dense<0.000000e+00> : vector<4xf32>
    %379 = vector.multi_reduction <add>, %378, %cst_176 [1] : vector<4x512xf32> to vector<4xf32>
    %380 = vector.shape_cast %379 : vector<4xf32> to vector<4x1xf32>
    %cst_177 = arith.constant 5.120000e+02 : f32
    %381 = vector.broadcast %cst_177 : f32 to vector<4x1xf32>
    %382 = arith.divf %380, %381 : vector<4x1xf32>
    %cst_178 = arith.constant 9.99999974E-6 : f32
    %383 = vector.broadcast %cst_178 : f32 to vector<4x1xf32>
    %384 = arith.addf %382, %383 : vector<4x1xf32>
    %385 = math.rsqrt %384 : vector<4x1xf32>
    %386 = vector.broadcast %385 : vector<4x1xf32> to vector<4x512xf32>
    %387 = arith.mulf %377, %386 : vector<4x512xf32>
    %cst_179 = arith.constant 0.000000e+00 : f32
    %388 = vector.broadcast %cst_179 : f32 to vector<4x512xf32>
    %389 = arith.maximumf %387, %388 : vector<4x512xf32>
    %c8_180 = arith.constant 8 : index
    %c0_181 = arith.constant 0 : index
    %390 = vector.load %arg13[%c8_180, %c0_181] : memref<20x512xf32, #tpu.memory_space<vmem>>, vector<4x512xf32>
    tpu.vector_store %arg13[%c8_180, %c0_181], %389 {strides = array<i32>} : memref<20x512xf32, #tpu.memory_space<vmem>>, vector<4x512xf32>,
    %c0_182 = arith.constant 0 : index
    %c8_183 = arith.constant 8 : index
    %c0_184 = arith.constant 0 : index
    %391 = vector.load %arg12[%c0_182, %c8_183, %c0_184] : memref<1x20x512xf32, #tpu.memory_space<vmem>>, vector<1x4x512xf32>
    %392 = vector.shape_cast %391 : vector<1x4x512xf32> to vector<4x512xf32>
    %393 = vector.shape_cast %389 : vector<4x512xf32> to vector<1x4x512xf32>
    tpu.vector_store %arg12[%c0_182, %c8_183, %c0_184], %393 {strides = array<i32>} : memref<1x20x512xf32, #tpu.memory_space<vmem>>, vector<1x4x512xf32>,
    %c0_185 = arith.constant 0 : index
    %c0_186 = arith.constant 0 : index
    %394 = vector.load %arg13[%c0_185, %c0_186] : memref<20x512xf32, #tpu.memory_space<vmem>>, vector<12x512xf32>
    %395 = arith.truncf %394 : vector<12x512xf32> to vector<12x512xbf16>
    %c0_187 = arith.constant 0 : index
    %c0_188 = arith.constant 0 : index
    %396 = vector.load %arg4[%c0_187, %c0_188] : memref<8x12xbf16, #tpu.memory_space<vmem>>, vector<8x12xbf16>
    %cst_189 = arith.constant dense<0.000000e+00> : vector<8x512xf32>
    %397 = tpu.matmul %396, %395, %cst_189 {dimension_numbers = #tpu.dot_dimension_numbers<[1], [0], [0], [1], [0, 0, 1, 1], [], []>} : vector<8x12xbf16>, vector<12x512xbf16>, vector<8x512xf32> -> vector<8x512xf32>
    %cst_190 = arith.constant dense<0.000000e+00> : vector<8xf32>
    %398 = vector.multi_reduction <add>, %397, %cst_190 [1] : vector<8x512xf32> to vector<8xf32>
    %399 = vector.shape_cast %398 : vector<8xf32> to vector<8x1xf32>
    %cst_191 = arith.constant 5.120000e+02 : f32
    %400 = vector.broadcast %cst_191 : f32 to vector<8x1xf32>
    %401 = arith.divf %399, %400 : vector<8x1xf32>
    %402 = vector.broadcast %401 : vector<8x1xf32> to vector<8x512xf32>
    %403 = arith.subf %397, %402 : vector<8x512xf32>
    %404 = arith.mulf %403, %403 : vector<8x512xf32>
    %cst_192 = arith.constant dense<0.000000e+00> : vector<8xf32>
    %405 = vector.multi_reduction <add>, %404, %cst_192 [1] : vector<8x512xf32> to vector<8xf32>
    %406 = vector.shape_cast %405 : vector<8xf32> to vector<8x1xf32>
    %cst_193 = arith.constant 5.120000e+02 : f32
    %407 = vector.broadcast %cst_193 : f32 to vector<8x1xf32>
    %408 = arith.divf %406, %407 : vector<8x1xf32>
    %cst_194 = arith.constant 9.99999974E-6 : f32
    %409 = vector.broadcast %cst_194 : f32 to vector<8x1xf32>
    %410 = arith.addf %408, %409 : vector<8x1xf32>
    %411 = math.rsqrt %410 : vector<8x1xf32>
    %412 = vector.broadcast %411 : vector<8x1xf32> to vector<8x512xf32>
    %413 = arith.mulf %403, %412 : vector<8x512xf32>
    %cst_195 = arith.constant 0.000000e+00 : f32
    %414 = vector.broadcast %cst_195 : f32 to vector<8x512xf32>
    %415 = arith.maximumf %413, %414 : vector<8x512xf32>
    %c0_196 = arith.constant 0 : index
    %c0_197 = arith.constant 0 : index
    %416 = vector.load %arg8[%c0_196, %c0_197] : memref<4x8xbf16, #tpu.memory_space<vmem>>, vector<4x8xbf16>
    %417 = arith.truncf %415 : vector<8x512xf32> to vector<8x512xbf16>
    %cst_198 = arith.constant dense<0.000000e+00> : vector<4x512xf32>
    %418 = tpu.matmul %416, %417, %cst_198 {dimension_numbers = #tpu.dot_dimension_numbers<[1], [0], [0], [1], [0, 0, 1, 1], [], []>} : vector<4x8xbf16>, vector<8x512xbf16>, vector<4x512xf32> -> vector<4x512xf32>
    %cst_199 = arith.constant dense<0.000000e+00> : vector<4xf32>
    %419 = vector.multi_reduction <add>, %418, %cst_199 [1] : vector<4x512xf32> to vector<4xf32>
    %420 = vector.shape_cast %419 : vector<4xf32> to vector<4x1xf32>
    %cst_200 = arith.constant 5.120000e+02 : f32
    %421 = vector.broadcast %cst_200 : f32 to vector<4x1xf32>
    %422 = arith.divf %420, %421 : vector<4x1xf32>
    %423 = vector.broadcast %422 : vector<4x1xf32> to vector<4x512xf32>
    %424 = arith.subf %418, %423 : vector<4x512xf32>
    %425 = arith.mulf %424, %424 : vector<4x512xf32>
    %cst_201 = arith.constant dense<0.000000e+00> : vector<4xf32>
    %426 = vector.multi_reduction <add>, %425, %cst_201 [1] : vector<4x512xf32> to vector<4xf32>
    %427 = vector.shape_cast %426 : vector<4xf32> to vector<4x1xf32>
    %cst_202 = arith.constant 5.120000e+02 : f32
    %428 = vector.broadcast %cst_202 : f32 to vector<4x1xf32>
    %429 = arith.divf %427, %428 : vector<4x1xf32>
    %cst_203 = arith.constant 9.99999974E-6 : f32
    %430 = vector.broadcast %cst_203 : f32 to vector<4x1xf32>
    %431 = arith.addf %429, %430 : vector<4x1xf32>
    %432 = math.rsqrt %431 : vector<4x1xf32>
    %433 = vector.broadcast %432 : vector<4x1xf32> to vector<4x512xf32>
    %434 = arith.mulf %424, %433 : vector<4x512xf32>
    %cst_204 = arith.constant 0.000000e+00 : f32
    %435 = vector.broadcast %cst_204 : f32 to vector<4x512xf32>
    %436 = arith.maximumf %434, %435 : vector<4x512xf32>
    %c12_205 = arith.constant 12 : index
    %c0_206 = arith.constant 0 : index
    %437 = vector.load %arg13[%c12_205, %c0_206] : memref<20x512xf32, #tpu.memory_space<vmem>>, vector<4x512xf32>
    tpu.vector_store %arg13[%c12_205, %c0_206], %436 {strides = array<i32>} : memref<20x512xf32, #tpu.memory_space<vmem>>, vector<4x512xf32>,
    %c0_207 = arith.constant 0 : index
    %c4_208 = arith.constant 4 : index
    %c0_209 = arith.constant 0 : index
    %438 = vector.load %arg12[%c0_207, %c4_208, %c0_209] : memref<1x20x512xf32, #tpu.memory_space<vmem>>, vector<1x4x512xf32>
    %439 = vector.shape_cast %438 : vector<1x4x512xf32> to vector<4x512xf32>
    %440 = vector.shape_cast %436 : vector<4x512xf32> to vector<1x4x512xf32>
    tpu.vector_store %arg12[%c0_207, %c4_208, %c0_209], %440 {strides = array<i32>} : memref<1x20x512xf32, #tpu.memory_space<vmem>>, vector<1x4x512xf32>,
    %c0_210 = arith.constant 0 : index
    %c0_211 = arith.constant 0 : index
    %441 = vector.load %arg13[%c0_210, %c0_211] : memref<20x512xf32, #tpu.memory_space<vmem>>, vector<16x512xf32>
    %442 = arith.truncf %441 : vector<16x512xf32> to vector<16x512xbf16>
    %c0_212 = arith.constant 0 : index
    %c0_213 = arith.constant 0 : index
    %443 = vector.load %arg5[%c0_212, %c0_213] : memref<8x16xbf16, #tpu.memory_space<vmem>>, vector<8x16xbf16>
    %cst_214 = arith.constant dense<0.000000e+00> : vector<8x512xf32>
    %444 = tpu.matmul %443, %442, %cst_214 {dimension_numbers = #tpu.dot_dimension_numbers<[1], [0], [0], [1], [0, 0, 1, 1], [], []>} : vector<8x16xbf16>, vector<16x512xbf16>, vector<8x512xf32> -> vector<8x512xf32>
    %cst_215 = arith.constant dense<0.000000e+00> : vector<8xf32>
    %445 = vector.multi_reduction <add>, %444, %cst_215 [1] : vector<8x512xf32> to vector<8xf32>
    %446 = vector.shape_cast %445 : vector<8xf32> to vector<8x1xf32>
    %cst_216 = arith.constant 5.120000e+02 : f32
    %447 = vector.broadcast %cst_216 : f32 to vector<8x1xf32>
    %448 = arith.divf %446, %447 : vector<8x1xf32>
    %449 = vector.broadcast %448 : vector<8x1xf32> to vector<8x512xf32>
    %450 = arith.subf %444, %449 : vector<8x512xf32>
    %451 = arith.mulf %450, %450 : vector<8x512xf32>
    %cst_217 = arith.constant dense<0.000000e+00> : vector<8xf32>
    %452 = vector.multi_reduction <add>, %451, %cst_217 [1] : vector<8x512xf32> to vector<8xf32>
    %453 = vector.shape_cast %452 : vector<8xf32> to vector<8x1xf32>
    %cst_218 = arith.constant 5.120000e+02 : f32
    %454 = vector.broadcast %cst_218 : f32 to vector<8x1xf32>
    %455 = arith.divf %453, %454 : vector<8x1xf32>
    %cst_219 = arith.constant 9.99999974E-6 : f32
    %456 = vector.broadcast %cst_219 : f32 to vector<8x1xf32>
    %457 = arith.addf %455, %456 : vector<8x1xf32>
    %458 = math.rsqrt %457 : vector<8x1xf32>
    %459 = vector.broadcast %458 : vector<8x1xf32> to vector<8x512xf32>
    %460 = arith.mulf %450, %459 : vector<8x512xf32>
    %cst_220 = arith.constant 0.000000e+00 : f32
    %461 = vector.broadcast %cst_220 : f32 to vector<8x512xf32>
    %462 = arith.maximumf %460, %461 : vector<8x512xf32>
    %c0_221 = arith.constant 0 : index
    %c0_222 = arith.constant 0 : index
    %463 = vector.load %arg9[%c0_221, %c0_222] : memref<4x8xbf16, #tpu.memory_space<vmem>>, vector<4x8xbf16>
    %464 = arith.truncf %462 : vector<8x512xf32> to vector<8x512xbf16>
    %cst_223 = arith.constant dense<0.000000e+00> : vector<4x512xf32>
    %465 = tpu.matmul %463, %464, %cst_223 {dimension_numbers = #tpu.dot_dimension_numbers<[1], [0], [0], [1], [0, 0, 1, 1], [], []>} : vector<4x8xbf16>, vector<8x512xbf16>, vector<4x512xf32> -> vector<4x512xf32>
    %cst_224 = arith.constant dense<0.000000e+00> : vector<4xf32>
    %466 = vector.multi_reduction <add>, %465, %cst_224 [1] : vector<4x512xf32> to vector<4xf32>
    %467 = vector.shape_cast %466 : vector<4xf32> to vector<4x1xf32>
    %cst_225 = arith.constant 5.120000e+02 : f32
    %468 = vector.broadcast %cst_225 : f32 to vector<4x1xf32>
    %469 = arith.divf %467, %468 : vector<4x1xf32>
    %470 = vector.broadcast %469 : vector<4x1xf32> to vector<4x512xf32>
    %471 = arith.subf %465, %470 : vector<4x512xf32>
    %472 = arith.mulf %471, %471 : vector<4x512xf32>
    %cst_226 = arith.constant dense<0.000000e+00> : vector<4xf32>
    %473 = vector.multi_reduction <add>, %472, %cst_226 [1] : vector<4x512xf32> to vector<4xf32>
    %474 = vector.shape_cast %473 : vector<4xf32> to vector<4x1xf32>
    %cst_227 = arith.constant 5.120000e+02 : f32
    %475 = vector.broadcast %cst_227 : f32 to vector<4x1xf32>
    %476 = arith.divf %474, %475 : vector<4x1xf32>
    %cst_228 = arith.constant 9.99999974E-6 : f32
    %477 = vector.broadcast %cst_228 : f32 to vector<4x1xf32>
    %478 = arith.addf %476, %477 : vector<4x1xf32>
    %479 = math.rsqrt %478 : vector<4x1xf32>
    %480 = vector.broadcast %479 : vector<4x1xf32> to vector<4x512xf32>
    %481 = arith.mulf %471, %480 : vector<4x512xf32>
    %cst_229 = arith.constant 0.000000e+00 : f32
    %482 = vector.broadcast %cst_229 : f32 to vector<4x512xf32>
    %483 = arith.maximumf %481, %482 : vector<4x512xf32>
    %c16_230 = arith.constant 16 : index
    %c0_231 = arith.constant 0 : index
    %484 = vector.load %arg13[%c16_230, %c0_231] : memref<20x512xf32, #tpu.memory_space<vmem>>, vector<4x512xf32>
    tpu.vector_store %arg13[%c16_230, %c0_231], %483 {strides = array<i32>} : memref<20x512xf32, #tpu.memory_space<vmem>>, vector<4x512xf32>,
    %c0_232 = arith.constant 0 : index
    %c0_233 = arith.constant 0 : index
    %c0_234 = arith.constant 0 : index
    %485 = vector.load %arg12[%c0_232, %c0_233, %c0_234] : memref<1x20x512xf32, #tpu.memory_space<vmem>>, vector<1x4x512xf32>
    %486 = vector.shape_cast %485 : vector<1x4x512xf32> to vector<4x512xf32>
    %487 = vector.shape_cast %483 : vector<4x512xf32> to vector<1x4x512xf32>
    tpu.vector_store %arg12[%c0_232, %c0_233, %c0_234], %487 {strides = array<i32>} : memref<1x20x512xf32, #tpu.memory_space<vmem>>, vector<1x4x512xf32>,
    return
  }
  func.func @transform_0(%arg0: i32) -> (i32, i32, i32) {
    %c0_i32 = arith.constant 0 : i32
    %c0_i32_0 = arith.constant 0 : i32
    %c0_i32_1 = arith.constant 0 : i32
    return %arg0, %c0_i32, %c0_i32_0 : i32, i32, i32
  }
  func.func @transform_1(%arg0: i32) -> (i32, i32) {
    %c0_i32 = arith.constant 0 : i32
    %c0_i32_0 = arith.constant 0 : i32
    %c0_i32_1 = arith.constant 0 : i32
    return %c0_i32, %c0_i32_0 : i32, i32
  }
  func.func @transform_2(%arg0: i32) -> (i32, i32) {
    %c0_i32 = arith.constant 0 : i32
    %c0_i32_0 = arith.constant 0 : i32
    %c0_i32_1 = arith.constant 0 : i32
    return %c0_i32, %c0_i32_0 : i32, i32
  }
  func.func @transform_3(%arg0: i32) -> (i32, i32) {
    %c0_i32 = arith.constant 0 : i32
    %c0_i32_0 = arith.constant 0 : i32
    %c0_i32_1 = arith.constant 0 : i32
    return %c0_i32, %c0_i32_0 : i32, i32
  }
  func.func @transform_4(%arg0: i32) -> (i32, i32) {
    %c0_i32 = arith.constant 0 : i32
    %c0_i32_0 = arith.constant 0 : i32
    %c0_i32_1 = arith.constant 0 : i32
    return %c0_i32, %c0_i32_0 : i32, i32
  }
  func.func @transform_5(%arg0: i32) -> (i32, i32) {
    %c0_i32 = arith.constant 0 : i32
    %c0_i32_0 = arith.constant 0 : i32
    %c0_i32_1 = arith.constant 0 : i32
    return %c0_i32, %c0_i32_0 : i32, i32
  }
  func.func @transform_6(%arg0: i32) -> (i32, i32) {
    %c0_i32 = arith.constant 0 : i32
    %c0_i32_0 = arith.constant 0 : i32
    %c0_i32_1 = arith.constant 0 : i32
    return %c0_i32, %c0_i32_0 : i32, i32
  }
  func.func @transform_7(%arg0: i32) -> (i32, i32) {
    %c0_i32 = arith.constant 0 : i32
    %c0_i32_0 = arith.constant 0 : i32
    %c0_i32_1 = arith.constant 0 : i32
    return %c0_i32, %c0_i32_0 : i32, i32
  }
  func.func @transform_8(%arg0: i32) -> (i32, i32) {
    %c0_i32 = arith.constant 0 : i32
    %c0_i32_0 = arith.constant 0 : i32
    %c0_i32_1 = arith.constant 0 : i32
    return %c0_i32, %c0_i32_0 : i32, i32
  }
  func.func @transform_9(%arg0: i32) -> (i32, i32) {
    %c0_i32 = arith.constant 0 : i32
    %c0_i32_0 = arith.constant 0 : i32
    %c0_i32_1 = arith.constant 0 : i32
    return %c0_i32, %c0_i32_0 : i32, i32
  }
  func.func @transform_10(%arg0: i32) -> (i32, i32) {
    %c0_i32 = arith.constant 0 : i32
    %c0_i32_0 = arith.constant 0 : i32
    %c0_i32_1 = arith.constant 0 : i32
    return %c0_i32, %c0_i32_0 : i32, i32
  }
  func.func @transform_11(%arg0: i32) -> (i32, i32, i32) {
    %c0_i32 = arith.constant 0 : i32
    %c0_i32_0 = arith.constant 0 : i32
    %c0_i32_1 = arith.constant 0 : i32
    return %arg0, %c0_i32, %c0_i32_0 : i32, i32, i32
  }
}

</mosaic_0001>

<llo_original>
// kernel: dense_aspp_block.1
$region0: #{dense_aspp_block.1}
  #allocation0 [shape = 'u32[]', space=smem, size = 0x4, offset = 0x4, fixed_abs, tag = 'smem constant byte address 0x4 - core index']
  #allocation1 [shape = 'u32[144,128]{1,0:T(1,128)}', space=vmem, size = 0x12000, scoped, tag = 'internal scratch']
  #allocation2 [shape = 'f32[20,512]{1,0:T(8,128)}', space=vmem, size = 0xc000, scoped, tag = 'scratch operand']
  #allocation3 [shape = 'bf16[224,512]{1,0:T(16,128)(2,1)}', space=vmem, size = 0x38000, scoped, tag = 'scratch operand']
  %s0 = inlined_call_operand.vmem [shape: f32[2,4,512], index: 0, kind: input, shape index: {}]
  %s1 = inlined_call_operand.vmem [shape: bf16[8,4], index: 1, kind: input, shape index: {}]
  %s2 = inlined_call_operand.vmem [shape: bf16[8,8], index: 2, kind: input, shape index: {}]
  %s3 = inlined_call_operand.vmem [shape: bf16[8,12], index: 3, kind: input, shape index: {}]
  %s4 = inlined_call_operand.vmem [shape: bf16[8,16], index: 4, kind: input, shape index: {}]
  %s5 = inlined_call_operand.vmem [shape: bf16[4,224], index: 5, kind: input, shape index: {}]
  %s6 = inlined_call_operand.vmem [shape: bf16[4,224], index: 6, kind: input, shape index: {}]
  %s7 = inlined_call_operand.vmem [shape: bf16[4,8], index: 7, kind: input, shape index: {}]
  %s8 = inlined_call_operand.vmem [shape: bf16[4,8], index: 8, kind: input, shape index: {}]
  %s9 = inlined_call_operand.vmem [shape: f32[27,512], index: 9, kind: input, shape index: {}]
  %s10 = inlined_call_operand.vmem [shape: f32[27,512], index: 10, kind: input, shape index: {}]
  %s11 = inlined_call_operand.vmem [shape: f32[2,20,512], index: 11, kind: output, shape index: {}]
  %s12 = sld [smem:[#allocation0]]
  $region77: #{dense_aspp_block.1} parent=0
    _
  %s14 = ssub.s32 1, %s12
  %s15 = scalar_select 0, %s14, %s12
  loop: start=0, step=1, limit=4
  $region2: #{dense_aspp_block.1} parent=0 // loop_pre_header
    _
  $region3: #{dense_aspp_block.1} parent=0 // loop_header
    %s17 = sphi 0, %s21
    %p18 = scmp.ge.s32.totalorder %s17, 4
    %s27 = sphi 0, %s29
    %s30 = sphi 0, %s27
    %s31 = sphi 0, %s30
    %s47 = sphi 0, %s31
    %s51 = sphi 0, %s51
    %s53 = sphi 0, %s51
    %s54 = sphi 0, %s53
    %s68 = sphi 0, %s54
    %s72 = sphi 0, %s72
    %s74 = sphi 0, %s72
    %s75 = sphi 0, %s74
    %s89 = sphi 0, %s75
    %s93 = sphi 0, %s93
    %s95 = sphi 0, %s93
    %s96 = sphi 0, %s95
    %s110 = sphi 0, %s96
    %s114 = sphi 0, %s114
    %s116 = sphi 0, %s114
    %s117 = sphi 0, %s116
    %s131 = sphi 0, %s117
    %s135 = sphi 0, %s135
    %s137 = sphi 0, %s135
    %s138 = sphi 0, %s137
    %s152 = sphi 0, %s138
    %s156 = sphi 0, %s156
    %s158 = sphi 0, %s156
    %s159 = sphi 0, %s158
    %s173 = sphi 0, %s159
    %s177 = sphi 0, %s177
    %s179 = sphi 0, %s177
    %s180 = sphi 0, %s179
    %s194 = sphi 0, %s180
    %s198 = sphi 0, %s198
    %s200 = sphi 0, %s198
    %s201 = sphi 0, %s200
    %s215 = sphi 0, %s201
    %s219 = sphi 0, %s219
    %s221 = sphi 0, %s219
    %s222 = sphi 0, %s221
    %s236 = sphi 0, %s222
    %s240 = sphi 0, %s240
    %s242 = sphi 0, %s240
    %s243 = sphi 0, %s242
    %s257 = sphi 0, %s243
    %s263 = sphi 0, %s265
    %s266 = sphi 0, %s263
    %s267 = sphi 0, %s266
    %s283 = sphi 0, %s267
  $region4: #{dense_aspp_block.1} parent=0 // loop_header_branch
    %20 = sbr.rel (%p18) target = $region8
  $region5: #{dense_aspp_block.1} parent=0 // loop_body
    %s22 = ssub.s32 %s17, 1
    %s23 = ssub.s32 %s17, 2
    %s24 = sadd.s32 %s17, 1
    %s25 = ssub.s32 %s17, %s24
    %p26 = scmp.eq.s32.totalorder %s25, 0
    %s28 = sadd.s32 %s27, 1
    %s29 = scalar_select %p26, %s27, %s28
    %p32 = pneg %p26
    %p33 = scmp.eq.s32.totalorder %s17, 1
    %p34 = por %p32, %p33
    %p35 = scmp.ne.s32.totalorder %s27, %s30
    %p36 = scmp.eq.s32.totalorder %s17, 0
    %p37 = por %p35, %p36
    %p38 = scmp.ne.s32.totalorder %s27, %s30
    %p39 = scmp.eq.s32.totalorder %s22, 1
    %p40 = por %p38, %p39
    %p41 = scmp.ne.s32.totalorder %s30, %s31
    %p42 = scmp.eq.s32.totalorder %s22, 0
    %p43 = por %p41, %p42
    %p44 = scmp.ne.s32.totalorder %s30, %s31
    %p45 = scmp.eq.s32.totalorder %s23, 1
    %p46 = por %p44, %p45
    %p48 = scmp.ne.s32.totalorder %s31, %s47
    %p49 = scmp.eq.s32.totalorder %s23, 0
    %p50 = por %p48, %p49
    %s52 = sadd.s32 %s51, 1
    %p55 = scmp.eq.s32.totalorder %s17, 1
    %p56 = scmp.ne.s32.totalorder %s51, %s53
    %p57 = scmp.eq.s32.totalorder %s17, 0
    %p58 = por %p56, %p57
    %p59 = scmp.ne.s32.totalorder %s51, %s53
    %p60 = scmp.eq.s32.totalorder %s22, 1
    %p61 = por %p59, %p60
    %p62 = scmp.ne.s32.totalorder %s53, %s54
    %p63 = scmp.eq.s32.totalorder %s22, 0
    %p64 = por %p62, %p63
    %p65 = scmp.ne.s32.totalorder %s53, %s54
    %p66 = scmp.eq.s32.totalorder %s23, 1
    %p67 = por %p65, %p66
    %p69 = scmp.ne.s32.totalorder %s54, %s68
    %p70 = scmp.eq.s32.totalorder %s23, 0
    %p71 = por %p69, %p70
    %s73 = sadd.s32 %s72, 1
    %p76 = scmp.eq.s32.totalorder %s17, 1
    %p77 = scmp.ne.s32.totalorder %s72, %s74
    %p78 = scmp.eq.s32.totalorder %s17, 0
    %p79 = por %p77, %p78
    %p80 = scmp.ne.s32.totalorder %s72, %s74
    %p81 = scmp.eq.s32.totalorder %s22, 1
    %p82 = por %p80, %p81
    %p83 = scmp.ne.s32.totalorder %s74, %s75
    %p84 = scmp.eq.s32.totalorder %s22, 0
    %p85 = por %p83, %p84
    %p86 = scmp.ne.s32.totalorder %s74, %s75
    %p87 = scmp.eq.s32.totalorder %s23, 1
    %p88 = por %p86, %p87
    %p90 = scmp.ne.s32.totalorder %s75, %s89
    %p91 = scmp.eq.s32.totalorder %s23, 0
    %p92 = por %p90, %p91
    %s94 = sadd.s32 %s93, 1
    %p97 = scmp.eq.s32.totalorder %s17, 1
    %p98 = scmp.ne.s32.totalorder %s93, %s95
    %p99 = scmp.eq.s32.totalorder %s17, 0
    %p100 = por %p98, %p99
    %p101 = scmp.ne.s32.totalorder %s93, %s95
    %p102 = scmp.eq.s32.totalorder %s22, 1
    %p103 = por %p101, %p102
    %p104 = scmp.ne.s32.totalorder %s95, %s96
    %p105 = scmp.eq.s32.totalorder %s22, 0
    %p106 = por %p104, %p105
    %p107 = scmp.ne.s32.totalorder %s95, %s96
    %p108 = scmp.eq.s32.totalorder %s23, 1
    %p109 = por %p107, %p108
    %p111 = scmp.ne.s32.totalorder %s96, %s110
    %p112 = scmp.eq.s32.totalorder %s23, 0
    %p113 = por %p111, %p112
    %s115 = sadd.s32 %s114, 1
    %p118 = scmp.eq.s32.totalorder %s17, 1
    %p119 = scmp.ne.s32.totalorder %s114, %s116
    %p120 = scmp.eq.s32.totalorder %s17, 0
    %p121 = por %p119, %p120
    %p122 = scmp.ne.s32.totalorder %s114, %s116
    %p123 = scmp.eq.s32.totalorder %s22, 1
    %p124 = por %p122, %p123
    %p125 = scmp.ne.s32.totalorder %s116, %s117
    %p126 = scmp.eq.s32.totalorder %s22, 0
    %p127 = por %p125, %p126
    %p128 = scmp.ne.s32.totalorder %s116, %s117
    %p129 = scmp.eq.s32.totalorder %s23, 1
    %p130 = por %p128, %p129
    %p132 = scmp.ne.s32.totalorder %s117, %s131
    %p133 = scmp.eq.s32.totalorder %s23, 0
    %p134 = por %p132, %p133
    %s136 = sadd.s32 %s135, 1
    %p139 = scmp.eq.s32.totalorder %s17, 1
    %p140 = scmp.ne.s32.totalorder %s135, %s137
    %p141 = scmp.eq.s32.totalorder %s17, 0
    %p142 = por %p140, %p141
    %p143 = scmp.ne.s32.totalorder %s135, %s137
    %p144 = scmp.eq.s32.totalorder %s22, 1
    %p145 = por %p143, %p144
    %p146 = scmp.ne.s32.totalorder %s137, %s138
    %p147 = scmp.eq.s32.totalorder %s22, 0
    %p148 = por %p146, %p147
    %p149 = scmp.ne.s32.totalorder %s137, %s138
    %p150 = scmp.eq.s32.totalorder %s23, 1
    %p151 = por %p149, %p150
    %p153 = scmp.ne.s32.totalorder %s138, %s152
    %p154 = scmp.eq.s32.totalorder %s23, 0
    %p155 = por %p153, %p154
    %s157 = sadd.s32 %s156, 1
    %p160 = scmp.eq.s32.totalorder %s17, 1
    %p161 = scmp.ne.s32.totalorder %s156, %s158
    %p162 = scmp.eq.s32.totalorder %s17, 0
    %p163 = por %p161, %p162
    %p164 = scmp.ne.s32.totalorder %s156, %s158
    %p165 = scmp.eq.s32.totalorder %s22, 1
    %p166 = por %p164, %p165
    %p167 = scmp.ne.s32.totalorder %s158, %s159
    %p168 = scmp.eq.s32.totalorder %s22, 0
    %p169 = por %p167, %p168
    %p170 = scmp.ne.s32.totalorder %s158, %s159
    %p171 = scmp.eq.s32.totalorder %s23, 1
    %p172 = por %p170, %p171
    %p174 = scmp.ne.s32.totalorder %s159, %s173
    %p175 = scmp.eq.s32.totalorder %s23, 0
    %p176 = por %p174, %p175
    %s178 = sadd.s32 %s177, 1
    %p181 = scmp.eq.s32.totalorder %s17, 1
    %p182 = scmp.ne.s32.totalorder %s177, %s179
    %p183 = scmp.eq.s32.totalorder %s17, 0
    %p184 = por %p182, %p183
    %p185 = scmp.ne.s32.totalorder %s177, %s179
    %p186 = scmp.eq.s32.totalorder %s22, 1
    %p187 = por %p185, %p186
    %p188 = scmp.ne.s32.totalorder %s179, %s180
    %p189 = scmp.eq.s32.totalorder %s22, 0
    %p190 = por %p188, %p189
    %p191 = scmp.ne.s32.totalorder %s179, %s180
    %p192 = scmp.eq.s32.totalorder %s23, 1
    %p193 = por %p191, %p192
    %p195 = scmp.ne.s32.totalorder %s180, %s194
    %p196 = scmp.eq.s32.totalorder %s23, 0
    %p197 = por %p195, %p196
    %s199 = sadd.s32 %s198, 1
    %p202 = scmp.eq.s32.totalorder %s17, 1
    %p203 = scmp.ne.s32.totalorder %s198, %s200
    %p204 = scmp.eq.s32.totalorder %s17, 0
    %p205 = por %p203, %p204
    %p206 = scmp.ne.s32.totalorder %s198, %s200
    %p207 = scmp.eq.s32.totalorder %s22, 1
    %p208 = por %p206, %p207
    %p209 = scmp.ne.s32.totalorder %s200, %s201
    %p210 = scmp.eq.s32.totalorder %s22, 0
    %p211 = por %p209, %p210
    %p212 = scmp.ne.s32.totalorder %s200, %s201
    %p213 = scmp.eq.s32.totalorder %s23, 1
    %p214 = por %p212, %p213
    %p216 = scmp.ne.s32.totalorder %s201, %s215
    %p217 = scmp.eq.s32.totalorder %s23, 0
    %p218 = por %p216, %p217
    %s220 = sadd.s32 %s219, 1
    %p223 = scmp.eq.s32.totalorder %s17, 1
    %p224 = scmp.ne.s32.totalorder %s219, %s221
    %p225 = scmp.eq.s32.totalorder %s17, 0
    %p226 = por %p224, %p225
    %p227 = scmp.ne.s32.totalorder %s219, %s221
    %p228 = scmp.eq.s32.totalorder %s22, 1
    %p229 = por %p227, %p228
    %p230 = scmp.ne.s32.totalorder %s221, %s222
    %p231 = scmp.eq.s32.totalorder %s22, 0
    %p232 = por %p230, %p231
    %p233 = scmp.ne.s32.totalorder %s221, %s222
    %p234 = scmp.eq.s32.totalorder %s23, 1
    %p235 = por %p233, %p234
    %p237 = scmp.ne.s32.totalorder %s222, %s236
    %p238 = scmp.eq.s32.totalorder %s23, 0
    %p239 = por %p237, %p238
    %s241 = sadd.s32 %s240, 1
    %p244 = scmp.eq.s32.totalorder %s17, 1
    %p245 = scmp.ne.s32.totalorder %s240, %s242
    %p246 = scmp.eq.s32.totalorder %s17, 0
    %p247 = por %p245, %p246
    %p248 = scmp.ne.s32.totalorder %s240, %s242
    %p249 = scmp.eq.s32.totalorder %s22, 1
    %p250 = por %p248, %p249
    %p251 = scmp.ne.s32.totalorder %s242, %s243
    %p252 = scmp.eq.s32.totalorder %s22, 0
    %p253 = por %p251, %p252
    %p254 = scmp.ne.s32.totalorder %s242, %s243
    %p255 = scmp.eq.s32.totalorder %s23, 1
    %p256 = por %p254, %p255
    %p258 = scmp.ne.s32.totalorder %s243, %s257
    %p259 = scmp.eq.s32.totalorder %s23, 0
    %p260 = por %p258, %p259
    %s261 = ssub.s32 %s17, %s24
    %p262 = scmp.eq.s32.totalorder %s261, 0
    %s264 = sadd.s32 %s263, 1
    %s265 = scalar_select %p262, %s263, %s264
    %p268 = pneg %p262
    %p269 = scmp.eq.s32.totalorder %s17, 1
    %p270 = por %p268, %p269
    %p271 = scmp.ne.s32.totalorder %s263, %s266
    %p272 = scmp.eq.s32.totalorder %s17, 0
    %p273 = por %p271, %p272
    %p274 = scmp.ne.s32.totalorder %s263, %s266
    %p275 = scmp.eq.s32.totalorder %s22, 1
    %p276 = por %p274, %p275
    %p277 = scmp.ne.s32.totalorder %s266, %s267
    %p278 = scmp.eq.s32.totalorder %s22, 0
    %p279 = por %p277, %p278
    %p280 = scmp.ne.s32.totalorder %s266, %s267
    %p281 = scmp.eq.s32.totalorder %s23, 1
    %p282 = por %p280, %p281
    %p284 = scmp.ne.s32.totalorder %s267, %s283
    %p285 = scmp.eq.s32.totalorder %s23, 0
    %p286 = por %p284, %p285
    %p287 = scmp.le.s32.totalorder 1, %s17
    %p288 = scmp.lt.s32.totalorder %s17, 3
    %p289 = pnand %p287, %p288
    %p290 = pneg %p289
    // Predicated region
    $region9: #{dense_aspp_block.1} parent=5 // pred_check
      _
    $region10: #{dense_aspp_block.1} parent=5 // pred_check_branch
      %292 = sbr.rel (%p289) target = $region12
    $region11: #{dense_aspp_block.1} parent=5 // pred_region
      %s293 = ssub.s32 %s17, 1
      // Predicated region
      $region13: #{dense_aspp_block.1} parent=11 // pred_check
        %p294 = pneg %p64
      $region14: #{dense_aspp_block.1} parent=11 // pred_check_branch
        %296 = sbr.rel (%p294) target = $region16
      $region15: #{dense_aspp_block.1} parent=11 // pred_region
        _
      $region16: #{dense_aspp_block.1} parent=11 // pred_fallthru
        _
      // Predicated region
      $region17: #{dense_aspp_block.1} parent=11 // pred_check
        %p297 = pneg %p85
      $region18: #{dense_aspp_block.1} parent=11 // pred_check_branch
        %299 = sbr.rel (%p297) target = $region20
      $region19: #{dense_aspp_block.1} parent=11 // pred_region
        _
      $region20: #{dense_aspp_block.1} parent=11 // pred_fallthru
        _
      // Predicated region
      $region21: #{dense_aspp_block.1} parent=11 // pred_check
        %p300 = pneg %p106
      $region22: #{dense_aspp_block.1} parent=11 // pred_check_branch
        %302 = sbr.rel (%p300) target = $region24
      $region23: #{dense_aspp_block.1} parent=11 // pred_region
        _
      $region24: #{dense_aspp_block.1} parent=11 // pred_fallthru
        _
      // Predicated region
      $region25: #{dense_aspp_block.1} parent=11 // pred_check
        %p303 = pneg %p127
      $region26: #{dense_aspp_block.1} parent=11 // pred_check_branch
        %305 = sbr.rel (%p303) target = $region28
      $region27: #{dense_aspp_block.1} parent=11 // pred_region
        _
      $region28: #{dense_aspp_block.1} parent=11 // pred_fallthru
        _
      // Predicated region
      $region29: #{dense_aspp_block.1} parent=11 // pred_check
        %p306 = pneg %p148
      $region30: #{dense_aspp_block.1} parent=11 // pred_check_branch
        %308 = sbr.rel (%p306) target = $region32
      $region31: #{dense_aspp_block.1} parent=11 // pred_region
        _
      $region32: #{dense_aspp_block.1} parent=11 // pred_fallthru
        _
      // Predicated region
      $region33: #{dense_aspp_block.1} parent=11 // pred_check
        %p309 = pneg %p169
      $region34: #{dense_aspp_block.1} parent=11 // pred_check_branch
        %311 = sbr.rel (%p309) target = $region36
      $region35: #{dense_aspp_block.1} parent=11 // pred_region
        _
      $region36: #{dense_aspp_block.1} parent=11 // pred_fallthru
        _
      // Predicated region
      $region37: #{dense_aspp_block.1} parent=11 // pred_check
        %p312 = pneg %p190
      $region38: #{dense_aspp_block.1} parent=11 // pred_check_branch
        %314 = sbr.rel (%p312) target = $region40
      $region39: #{dense_aspp_block.1} parent=11 // pred_region
        _
      $region40: #{dense_aspp_block.1} parent=11 // pred_fallthru
        _
      // Predicated region
      $region41: #{dense_aspp_block.1} parent=11 // pred_check
        %p315 = pneg %p211
      $region42: #{dense_aspp_block.1} parent=11 // pred_check_branch
        %317 = sbr.rel (%p315) target = $region44
      $region43: #{dense_aspp_block.1} parent=11 // pred_region
        _
      $region44: #{dense_aspp_block.1} parent=11 // pred_fallthru
        _
      // Predicated region
      $region45: #{dense_aspp_block.1} parent=11 // pred_check
        %p318 = pneg %p232
      $region46: #{dense_aspp_block.1} parent=11 // pred_check_branch
        %320 = sbr.rel (%p318) target = $region48
      $region47: #{dense_aspp_block.1} parent=11 // pred_region
        _
      $region48: #{dense_aspp_block.1} parent=11 // pred_fallthru
        _
      // Predicated region
      $region49: #{dense_aspp_block.1} parent=11 // pred_check
        %p321 = pneg %p253
      $region50: #{dense_aspp_block.1} parent=11 // pred_check_branch
        %323 = sbr.rel (%p321) target = $region52
      $region51: #{dense_aspp_block.1} parent=11 // pred_region
        _
      $region52: #{dense_aspp_block.1} parent=11 // pred_fallthru
        _
    $region12: #{dense_aspp_block.1} parent=5 // pred_fallthru
      _
    %p324 = scmp.lt.s32.totalorder %s17, 2
    // Predicated region
    $region53: #{dense_aspp_block.1} parent=5 // pred_check
      %p325 = pneg %p324
    $region54: #{dense_aspp_block.1} parent=5 // pred_check_branch
      %327 = sbr.rel (%p325) target = $region56
    $region55: #{dense_aspp_block.1} parent=5 // pred_region
      // Predicated region
      $region57: #{dense_aspp_block.1} parent=55 // pred_check
        %p328 = pneg %p37
      $region58: #{dense_aspp_block.1} parent=55 // pred_check_branch
        %330 = sbr.rel (%p328) target = $region60
      $region59: #{dense_aspp_block.1} parent=55 // pred_region
        %p331 = scmp.lt.s32.totalorder %s17, 1
        %s332 = scalar_select %p331, %s17, 1
        %s333 = smul.addr %s332, 4
        %s334 = smul.addr %s333, 4
        %s335 = scalar_lea.vmem %s0, %s334
      $region60: #{dense_aspp_block.1} parent=55 // pred_fallthru
        _
    $region56: #{dense_aspp_block.1} parent=5 // pred_fallthru
      _
    %p336 = scmp.le.s32.totalorder 1, %s17
    %p337 = scmp.lt.s32.totalorder %s17, 3
    %p338 = pnand %p336, %p337
    %p339 = pneg %p338
    // Predicated region
    $region61: #{dense_aspp_block.1} parent=5 // pred_check
      _
    $region62: #{dense_aspp_block.1} parent=5 // pred_check_branch
      %341 = sbr.rel (%p338) target = $region64
    $region63: #{dense_aspp_block.1} parent=5 // pred_region
      %s342 = ssub.s32 %s17, 1
      %p343 = scmp.lt.s32.totalorder %s22, 1
      %s344 = scalar_select %p343, %s22, 1
      %s345 = smul.addr %s344, 4
      %s346 = smul.addr %s345, 4
      %s347 = scalar_lea.vmem %s0, %s346
      %p348 = pneg %p43
      %p349 = pneg %p40
      %p350 = pneg %p64
      %p351 = pneg %p61
      %p352 = pneg %p85
      %p353 = pneg %p82
      %p354 = pneg %p106
      %p355 = pneg %p103
      %p356 = pneg %p127
      %p357 = pneg %p124
      %p358 = pneg %p148
      %p359 = pneg %p145
      %p360 = pneg %p169
      %p361 = pneg %p166
      %p362 = pneg %p190
      %p363 = pneg %p187
      %p364 = pneg %p211
      %p365 = pneg %p208
      %p366 = pneg %p232
      %p367 = pneg %p229
      %p368 = pneg %p253
      %p369 = pneg %p250
      %p370 = pneg %p279
      %p371 = pneg %p276
      %p372 = scmp.lt.s32.totalorder %s22, 1
      %s373 = scalar_select %p372, %s22, 1
      %s374 = smul.addr %s373, 12
      %s375 = smul.addr %s374, 8
      %s376 = scalar_lea.vmem %s11, %s375
      %p377 = scmp.lt.s32.totalorder %s22, 1
      %s378 = scalar_select %p377, %s22, 1
      %s379 = smul.addr %s378, 4
      %s380 = smul.addr %s379, 4
      %s381 = scalar_lea.vmem %s0, %s380
      %p382 = scmp.lt.s32.totalorder %s22, 1
      %s383 = scalar_select %p382, %s22, 1
      %s384 = smul.addr %s383, 12
      %s385 = smul.addr %s384, 8
      %s386 = scalar_lea.vmem %s11, %s385
      %v388 = vld [vmem:[%s381] sm:$0xff]
      %v389 = vld [vmem:[%s381 + $0x8] sm:$0xff]
      %v392 = vcombine.high %v388, %v388
      %v393 = vcombine.high %v389, %v389
      %396 = vst [vmem:[#allocation2] sm:$0xf] %v388
      %397 = vst [vmem:[#allocation2 + $0x8] sm:$0xf] %v392
      %398 = vst [vmem:[#allocation2 + $0x10] sm:$0xf] %v389
      %399 = vst [vmem:[#allocation2 + $0x18] sm:$0xf] %v393
      %400 = vst [vmem:[%s386 + $0x40] sm:$0xf] %v388
      %401 = vst [vmem:[%s386 + $0x48] sm:$0xf] %v392
      %402 = vst [vmem:[%s386 + $0x50] sm:$0xf] %v389
      %403 = vst [vmem:[%s386 + $0x58] sm:$0xf] %v393
      %v404 = vld [vmem:[#allocation2] sm:$0xf]
      %v405 = vld [vmem:[#allocation2 + $0x8] sm:$0xf]
      %v406 = vld [vmem:[#allocation2 + $0x10] sm:$0xf]
      %v407 = vld [vmem:[#allocation2 + $0x18] sm:$0xf]
      %v408 = vpack.c.bf16 %v404, %v404
      %v409 = vpack.c.bf16 %v405, %v405
      %v410 = vpack.c.bf16 %v406, %v406
      %v411 = vpack.c.bf16 %v407, %v407
      %v412 = vld [vmem:[%s1] sm:$0xf]
      %vm413 = vcmask 31744
      %v415 = vsel %vm413, %v412, 0
      %vm417 = vcmask 1041408
      %v419 = vsel %vm417, %v408, 0
      %v422 = vsel %vm417, %v409, 0
      %v425 = vsel %vm417, %v410, 0
      %v428 = vsel %vm417, %v411, 0
      %430 = vmatprep.subr.bf16.mxu0 %v422
      %431 = vmatpush1.bf16.msra.mxu0 %v419
      %432 = vmatprep.subr.bf16.mxu0 0
      %433 = vmatpush1.bf16.msra.mxu0 0
      %434 = vmatprep.subr.bf16.mxu0 0
      %435 = vmatpush1.bf16.msra.mxu0 0
      %436 = vmatprep.subr.bf16.mxu0 0
      %437 = vmatpush1.bf16.msra.mxu0 0
      %438 = vmatprep.subr.bf16.mxu0 0
      %439 = vmatpush1.bf16.msra.mxu0 0
      %440 = vmatprep.subr.bf16.mxu0 0
      %441 = vmatpush1.bf16.msra.mxu0 0
      %442 = vmatprep.subr.bf16.mxu0 0
      %443 = vmatpush1.bf16.msra.mxu0 0
      %444 = vmatprep.subr.bf16.mxu0 0
      %445 = vmatpush1.bf16.msra.mxu0 0
      %446 = vmatprep.subr.bf16.mxu0 0
      %447 = vmatpush1.bf16.msra.mxu0 0
      %448 = vmatprep.subr.bf16.mxu0 0
      %449 = vmatpush1.bf16.msra.mxu0 0
      %450 = vmatprep.subr.bf16.mxu0 0
      %451 = vmatpush1.bf16.msra.mxu0 0
      %452 = vmatprep.subr.bf16.mxu0 0
      %453 = vmatpush1.bf16.msra.mxu0 0
      %454 = vmatprep.subr.bf16.mxu0 0
      %455 = vmatpush1.bf16.msra.mxu0 0
      %456 = vmatprep.subr.bf16.mxu0 0
      %457 = vmatpush1.bf16.msra.mxu0 0
      %458 = vmatprep.subr.bf16.mxu0 0
      %459 = vmatpush1.bf16.msra.mxu0 0
      %460 = vmatprep.subr.bf16.mxu0 0
      %461 = vmatpush1.bf16.msra.mxu0 0
      %462 = vmatprep.mubr.bf16.mxu0 0
      %463 = vmatmul.mubr.bf16.gmra.mrb[0].mxu0 %v415
      %v464 = vpop.f32.mrb[0].mxu0
      %v465 = vadd.f32 0.0, %v464
      %v466 = vpop.f32.mrb[0].mxu0
      %v467 = vadd.f32 0.0, %v466
      %v468 = vpop.f32.mrb[0].mxu0
      %v469 = vpop.f32.mrb[0].mxu0
      %470 = vdwg.mxu0
      %471 = vmatprep.subr.bf16.mxu0 %v428
      %472 = vmatpush1.bf16.msra.mxu0 %v425
      %473 = vmatprep.subr.bf16.mxu0 0
      %474 = vmatpush1.bf16.msra.mxu0 0
      %475 = vmatprep.subr.bf16.mxu0 0
      %476 = vmatpush1.bf16.msra.mxu0 0
      %477 = vmatprep.subr.bf16.mxu0 0
      %478 = vmatpush1.bf16.msra.mxu0 0
      %479 = vmatprep.subr.bf16.mxu0 0
      %480 = vmatpush1.bf16.msra.mxu0 0
      %481 = vmatprep.subr.bf16.mxu0 0
      %482 = vmatpush1.bf16.msra.mxu0 0
      %483 = vmatprep.subr.bf16.mxu0 0
      %484 = vmatpush1.bf16.msra.mxu0 0
      %485 = vmatprep.subr.bf16.mxu0 0
      %486 = vmatpush1.bf16.msra.mxu0 0
      %487 = vmatprep.subr.bf16.mxu0 0
      %488 = vmatpush1.bf16.msra.mxu0 0
      %489 = vmatprep.subr.bf16.mxu0 0
      %490 = vmatpush1.bf16.msra.mxu0 0
      %491 = vmatprep.subr.bf16.mxu0 0
      %492 = vmatpush1.bf16.msra.mxu0 0
      %493 = vmatprep.subr.bf16.mxu0 0
      %494 = vmatpush1.bf16.msra.mxu0 0
      %495 = vmatprep.subr.bf16.mxu0 0
      %496 = vmatpush1.bf16.msra.mxu0 0
      %497 = vmatprep.subr.bf16.mxu0 0
      %498 = vmatpush1.bf16.msra.mxu0 0
      %499 = vmatprep.subr.bf16.mxu0 0
      %500 = vmatpush1.bf16.msra.mxu0 0
      %501 = vmatprep.subr.bf16.mxu0 0
      %502 = vmatpush1.bf16.msra.mxu0 0
      %503 = vmatprep.mubr.bf16.mxu0 0
      %504 = vmatmul.mubr.bf16.gmra.mrb[0].mxu0 %v415
      %v505 = vpop.f32.mrb[0].mxu0
      %v506 = vadd.f32 0.0, %v505
      %v507 = vpop.f32.mrb[0].mxu0
      %v508 = vadd.f32 0.0, %v507
      %v509 = vpop.f32.mrb[0].mxu0
      %v510 = vpop.f32.mrb[0].mxu0
      %511 = vdwg.mxu0
      %v512 = vadd.f32 %v465, %v467
      %v513 = vadd.f32 %v512, %v506
      %v514 = vadd.f32 %v513, %v508
      %515 = vadd.xlane.f32.xlu0 %v514
      %v516 = vpop.xlane.xlu0 %515
      %v517 = vrcp.pop 512.0
      %v518 = vmul.f32 %v516, %v517
      %v519 = vsub.f32 %v465, %v518
      %v520 = vsub.f32 %v467, %v518
      %v521 = vsub.f32 %v506, %v518
      %v522 = vsub.f32 %v508, %v518
      %v523 = vmul.f32 %v519, %v519
      %v524 = vmul.f32 %v520, %v520
      %v525 = vmul.f32 %v521, %v521
      %v526 = vmul.f32 %v522, %v522
      %v527 = vadd.f32 %v523, %v524
      %v528 = vadd.f32 %v527, %v525
      %v529 = vadd.f32 %v528, %v526
      %530 = vadd.xlane.f32.xlu0 %v529
      %v531 = vpop.xlane.xlu0 %530
      %v532 = vmul.f32 %v531, %v517
      %v533 = vadd.f32 %v532, 1e-05
      %v534 = vrsqrt.pop %v533
      %v535 = vmul.f32 %v519, %v534
      %v536 = vmul.f32 %v520, %v534
      %v537 = vmul.f32 %v521, %v534
      %v538 = vmul.f32 %v522, %v534
      %v539 = vmax.f32 %v535, 0.0
      %v540 = vmax.f32 %v536, 0.0
      %v541 = vmax.f32 %v537, 0.0
      %v542 = vmax.f32 %v538, 0.0
      %543 = vrot.lane.b32.xlu0 %v539, 91
      %v544 = vpop.permute.xlu0 %543
      %545 = vrot.lane.b32.xlu0 %v540, 91
      %v546 = vpop.permute.xlu0 %545
      %547 = vrot.lane.b32.xlu0 %v541, 91
      %v548 = vpop.permute.xlu0 %547
      %549 = vrot.lane.b32.xlu0 %v542, 91
      %v550 = vpop.permute.xlu0 %549
      %v551 = vlaneseq
      %v552 = vand.u32 %v551, 127
      %vm553 = vcmp.lt.s32.totalorder %v552, 91
      %v554 = vsel %vm553, %v548, %v550
      %v555 = vsel %vm553, %v546, %v548
      %v556 = vsel %vm553, %v544, %v546
      %v557 = vsel %vm553, %v550, %v544
      %v558 = vld [vmem:[%s9] ss:$8 sm:$0xf]
      %v560 = vlaneseq
      %v561 = vshrl.u32 %v560, 7
      %v562 = vsub.s32 0, %v561
      %v563 = vrot.slane %v558, %v562
      %v564 = vlaneseq
      %v565 = vshrl.u32 %v564, 7
      %v566 = vsub.s32 1, %v565
      %v567 = vrot.slane %v558, %v566
      %v568 = vlaneseq
      %v569 = vshrl.u32 %v568, 7
      %v570 = vsub.s32 2, %v569
      %v571 = vrot.slane %v558, %v570
      %v572 = vlaneseq
      %v573 = vshrl.u32 %v572, 7
      %v574 = vsub.s32 3, %v573
      %v575 = vrot.slane %v558, %v574
      %v580 = vmul.f32 %v554, %v563
      %v581 = vmul.f32 %v557, %v567
      %v582 = vmul.f32 %v556, %v571
      %v583 = vmul.f32 %v555, %v575
      %584 = vrot.lane.b32.xlu0 %v539, 88
      %v585 = vpop.permute.xlu0 %584
      %586 = vrot.lane.b32.xlu0 %v540, 88
      %v587 = vpop.permute.xlu0 %586
      %588 = vrot.lane.b32.xlu0 %v541, 88
      %v589 = vpop.permute.xlu0 %588
      %590 = vrot.lane.b32.xlu0 %v542, 88
      %v591 = vpop.permute.xlu0 %590
      %vm592 = vcmp.lt.s32.totalorder %v552, 88
      %v593 = vsel %vm592, %v589, %v591
      %v594 = vsel %vm592, %v587, %v589
      %v595 = vsel %vm592, %v585, %v587
      %v596 = vsel %vm592, %v591, %v585
      %s597 = scalar_lea.vmem %s9, 1
      %v598 = vld [vmem:[%s597] ss:$8 sm:$0xf]
      %v600 = vlaneseq
      %v601 = vshrl.u32 %v600, 7
      %v602 = vsub.s32 0, %v601
      %v603 = vrot.slane %v598, %v602
      %v604 = vlaneseq
      %v605 = vshrl.u32 %v604, 7
      %v606 = vsub.s32 1, %v605
      %v607 = vrot.slane %v598, %v606
      %v608 = vlaneseq
      %v609 = vshrl.u32 %v608, 7
      %v610 = vsub.s32 2, %v609
      %v611 = vrot.slane %v598, %v610
      %v612 = vlaneseq
      %v613 = vshrl.u32 %v612, 7
      %v614 = vsub.s32 3, %v613
      %v615 = vrot.slane %v598, %v614
      %v620 = vmul.f32 %v593, %v603
      %v621 = vmul.f32 %v596, %v607
      %v622 = vmul.f32 %v595, %v611
      %v623 = vmul.f32 %v594, %v615
      %v624 = vpack.c.bf16 %v620, %v580
      %v625 = vpack.c.bf16 %v621, %v581
      %v626 = vpack.c.bf16 %v622, %v582
      %v627 = vpack.c.bf16 %v623, %v583
      %628 = vst [vmem:[#allocation3] sm:$0xff] %v624
      %629 = vst [vmem:[#allocation3 + $0x8] sm:$0xff] %v625
      %630 = vst [vmem:[#allocation3 + $0x10] sm:$0xff] %v626
      %631 = vst [vmem:[#allocation3 + $0x18] sm:$0xff] %v627
      %632 = vrot.lane.b32.xlu0 %v539, 85
      %v633 = vpop.permute.xlu0 %632
      %634 = vrot.lane.b32.xlu0 %v540, 85
      %v635 = vpop.permute.xlu0 %634
      %636 = vrot.lane.b32.xlu0 %v541, 85
      %v637 = vpop.permute.xlu0 %636
      %638 = vrot.lane.b32.xlu0 %v542, 85
      %v639 = vpop.permute.xlu0 %638
      %vm640 = vcmp.lt.s32.totalorder %v552, 85
      %v641 = vsel %vm640, %v637, %v639
      %v642 = vsel %vm640, %v635, %v637
      %v643 = vsel %vm640, %v633, %v635
      %v644 = vsel %vm640, %v639, %v633
      %s645 = scalar_lea.vmem %s9, 2
      %v646 = vld [vmem:[%s645] ss:$8 sm:$0xf]
      %v648 = vlaneseq
      %v649 = vshrl.u32 %v648, 7
      %v650 = vsub.s32 0, %v649
      %v651 = vrot.slane %v646, %v650
      %v652 = vlaneseq
      %v653 = vshrl.u32 %v652, 7
      %v654 = vsub.s32 1, %v653
      %v655 = vrot.slane %v646, %v654
      %v656 = vlaneseq
      %v657 = vshrl.u32 %v656, 7
      %v658 = vsub.s32 2, %v657
      %v659 = vrot.slane %v646, %v658
      %v660 = vlaneseq
      %v661 = vshrl.u32 %v660, 7
      %v662 = vsub.s32 3, %v661
      %v663 = vrot.slane %v646, %v662
      %v668 = vmul.f32 %v641, %v651
      %v669 = vmul.f32 %v644, %v655
      %v670 = vmul.f32 %v643, %v659
      %v671 = vmul.f32 %v642, %v663
      %672 = vrot.lane.b32.xlu0 %v539, 67
      %v673 = vpop.permute.xlu0 %672
      %674 = vrot.lane.b32.xlu0 %v540, 67
      %v675 = vpop.permute.xlu0 %674
      %676 = vrot.lane.b32.xlu0 %v541, 67
      %v677 = vpop.permute.xlu0 %676
      %678 = vrot.lane.b32.xlu0 %v542, 67
      %v679 = vpop.permute.xlu0 %678
      %vm680 = vcmp.lt.s32.totalorder %v552, 67
      %v681 = vsel %vm680, %v677, %v679
      %v682 = vsel %vm680, %v675, %v677
      %v683 = vsel %vm680, %v673, %v675
      %v684 = vsel %vm680, %v679, %v673
      %s685 = scalar_lea.vmem %s9, 3
      %v686 = vld [vmem:[%s685] ss:$8 sm:$0xf]
      %v688 = vlaneseq
      %v689 = vshrl.u32 %v688, 7
      %v690 = vsub.s32 0, %v689
      %v691 = vrot.slane %v686, %v690
      %v692 = vlaneseq
      %v693 = vshrl.u32 %v692, 7
      %v694 = vsub.s32 1, %v693
      %v695 = vrot.slane %v686, %v694
      %v696 = vlaneseq
      %v697 = vshrl.u32 %v696, 7
      %v698 = vsub.s32 2, %v697
      %v699 = vrot.slane %v686, %v698
      %v700 = vlaneseq
      %v701 = vshrl.u32 %v700, 7
      %v702 = vsub.s32 3, %v701
      %v703 = vrot.slane %v686, %v702
      %v708 = vmul.f32 %v681, %v691
      %v709 = vmul.f32 %v684, %v695
      %v710 = vmul.f32 %v683, %v699
      %v711 = vmul.f32 %v682, %v703
      %v712 = vpack.c.bf16 %v708, %v668
      %v713 = vpack.c.bf16 %v709, %v669
      %v714 = vpack.c.bf16 %v710, %v670
      %v715 = vpack.c.bf16 %v711, %v671
      %716 = vst [vmem:[#allocation3 + $0x20] sm:$0xff] %v712
      %717 = vst [vmem:[#allocation3 + $0x28] sm:$0xff] %v713
      %718 = vst [vmem:[#allocation3 + $0x30] sm:$0xff] %v714
      %719 = vst [vmem:[#allocation3 + $0x38] sm:$0xff] %v715
      %720 = vrot.lane.b32.xlu0 %v539, 64
      %v721 = vpop.permute.xlu0 %720
      %722 = vrot.lane.b32.xlu0 %v540, 64
      %v723 = vpop.permute.xlu0 %722
      %724 = vrot.lane.b32.xlu0 %v541, 64
      %v725 = vpop.permute.xlu0 %724
      %726 = vrot.lane.b32.xlu0 %v542, 64
      %v727 = vpop.permute.xlu0 %726
      %vm728 = vcmp.lt.s32.totalorder %v552, 64
      %v729 = vsel %vm728, %v725, %v727
      %v730 = vsel %vm728, %v723, %v725
      %v731 = vsel %vm728, %v721, %v723
      %v732 = vsel %vm728, %v727, %v721
      %s733 = scalar_lea.vmem %s9, 4
      %v734 = vld [vmem:[%s733] ss:$8 sm:$0xf]
      %v736 = vlaneseq
      %v737 = vshrl.u32 %v736, 7
      %v738 = vsub.s32 0, %v737
      %v739 = vrot.slane %v734, %v738
      %v740 = vlaneseq
      %v741 = vshrl.u32 %v740, 7
      %v742 = vsub.s32 1, %v741
      %v743 = vrot.slane %v734, %v742
      %v744 = vlaneseq
      %v745 = vshrl.u32 %v744, 7
      %v746 = vsub.s32 2, %v745
      %v747 = vrot.slane %v734, %v746
      %v748 = vlaneseq
      %v749 = vshrl.u32 %v748, 7
      %v750 = vsub.s32 3, %v749
      %v751 = vrot.slane %v734, %v750
      %v756 = vmul.f32 %v729, %v739
      %v757 = vmul.f32 %v732, %v743
      %v758 = vmul.f32 %v731, %v747
      %v759 = vmul.f32 %v730, %v751
      %760 = vrot.lane.b32.xlu0 %v539, 61
      %v761 = vpop.permute.xlu0 %760
      %762 = vrot.lane.b32.xlu0 %v540, 61
      %v763 = vpop.permute.xlu0 %762
      %764 = vrot.lane.b32.xlu0 %v541, 61
      %v765 = vpop.permute.xlu0 %764
      %766 = vrot.lane.b32.xlu0 %v542, 61
      %v767 = vpop.permute.xlu0 %766
      %vm768 = vcmp.lt.s32.totalorder %v552, 61
      %v769 = vsel %vm768, %v765, %v767
      %v770 = vsel %vm768, %v763, %v765
      %v771 = vsel %vm768, %v761, %v763
      %v772 = vsel %vm768, %v767, %v761
      %s773 = scalar_lea.vmem %s9, 5
      %v774 = vld [vmem:[%s773] ss:$8 sm:$0xf]
      %v776 = vlaneseq
      %v777 = vshrl.u32 %v776, 7
      %v778 = vsub.s32 0, %v777
      %v779 = vrot.slane %v774, %v778
      %v780 = vlaneseq
      %v781 = vshrl.u32 %v780, 7
      %v782 = vsub.s32 1, %v781
      %v783 = vrot.slane %v774, %v782
      %v784 = vlaneseq
      %v785 = vshrl.u32 %v784, 7
      %v786 = vsub.s32 2, %v785
      %v787 = vrot.slane %v774, %v786
      %v788 = vlaneseq
      %v789 = vshrl.u32 %v788, 7
      %v790 = vsub.s32 3, %v789
      %v791 = vrot.slane %v774, %v790
      %v796 = vmul.f32 %v769, %v779
      %v797 = vmul.f32 %v772, %v783
      %v798 = vmul.f32 %v771, %v787
      %v799 = vmul.f32 %v770, %v791
      %v800 = vpack.c.bf16 %v796, %v756
      %v801 = vpack.c.bf16 %v797, %v757
      %v802 = vpack.c.bf16 %v798, %v758
      %v803 = vpack.c.bf16 %v799, %v759
      %804 = vst [vmem:[#allocation3 + $0x40] sm:$0xff] %v800
      %805 = vst [vmem:[#allocation3 + $0x48] sm:$0xff] %v801
      %806 = vst [vmem:[#allocation3 + $0x50] sm:$0xff] %v802
      %807 = vst [vmem:[#allocation3 + $0x58] sm:$0xff] %v803
      %808 = vrot.lane.b32.xlu0 %v539, 43
      %v809 = vpop.permute.xlu0 %808
      %810 = vrot.lane.b32.xlu0 %v540, 43
      %v811 = vpop.permute.xlu0 %810
      %812 = vrot.lane.b32.xlu0 %v541, 43
      %v813 = vpop.permute.xlu0 %812
      %814 = vrot.lane.b32.xlu0 %v542, 43
      %v815 = vpop.permute.xlu0 %814
      %vm816 = vcmp.lt.s32.totalorder %v552, 43
      %v817 = vsel %vm816, %v813, %v815
      %v818 = vsel %vm816, %v811, %v813
      %v819 = vsel %vm816, %v809, %v811
      %v820 = vsel %vm816, %v815, %v809
      %s821 = scalar_lea.vmem %s9, 6
      %v822 = vld [vmem:[%s821] ss:$8 sm:$0xf]
      %v824 = vlaneseq
      %v825 = vshrl.u32 %v824, 7
      %v826 = vsub.s32 0, %v825
      %v827 = vrot.slane %v822, %v826
      %v828 = vlaneseq
      %v829 = vshrl.u32 %v828, 7
      %v830 = vsub.s32 1, %v829
      %v831 = vrot.slane %v822, %v830
      %v832 = vlaneseq
      %v833 = vshrl.u32 %v832, 7
      %v834 = vsub.s32 2, %v833
      %v835 = vrot.slane %v822, %v834
      %v836 = vlaneseq
      %v837 = vshrl.u32 %v836, 7
      %v838 = vsub.s32 3, %v837
      %v839 = vrot.slane %v822, %v838
      %v844 = vmul.f32 %v817, %v827
      %v845 = vmul.f32 %v820, %v831
      %v846 = vmul.f32 %v819, %v835
      %v847 = vmul.f32 %v818, %v839
      %848 = vrot.lane.b32.xlu0 %v539, 40
      %v849 = vpop.permute.xlu0 %848
      %850 = vrot.lane.b32.xlu0 %v540, 40
      %v851 = vpop.permute.xlu0 %850
      %852 = vrot.lane.b32.xlu0 %v541, 40
      %v853 = vpop.permute.xlu0 %852
      %854 = vrot.lane.b32.xlu0 %v542, 40
      %v855 = vpop.permute.xlu0 %854
      %vm856 = vcmp.lt.s32.totalorder %v552, 40
      %v857 = vsel %vm856, %v853, %v855
      %v858 = vsel %vm856, %v851, %v853
      %v859 = vsel %vm856, %v849, %v851
      %v860 = vsel %vm856, %v855, %v849
      %s861 = scalar_lea.vmem %s9, 7
      %v862 = vld [vmem:[%s861] ss:$8 sm:$0xf]
      %v864 = vlaneseq
      %v865 = vshrl.u32 %v864, 7
      %v866 = vsub.s32 0, %v865
      %v867 = vrot.slane %v862, %v866
      %v868 = vlaneseq
      %v869 = vshrl.u32 %v868, 7
      %v870 = vsub.s32 1, %v869
      %v871 = vrot.slane %v862, %v870
      %v872 = vlaneseq
      %v873 = vshrl.u32 %v872, 7
      %v874 = vsub.s32 2, %v873
      %v875 = vrot.slane %v862, %v874
      %v876 = vlaneseq
      %v877 = vshrl.u32 %v876, 7
      %v878 = vsub.s32 3, %v877
      %v879 = vrot.slane %v862, %v878
      %v884 = vmul.f32 %v857, %v867
      %v885 = vmul.f32 %v860, %v871
      %v886 = vmul.f32 %v859, %v875
      %v887 = vmul.f32 %v858, %v879
      %v888 = vpack.c.bf16 %v884, %v844
      %v889 = vpack.c.bf16 %v885, %v845
      %v890 = vpack.c.bf16 %v886, %v846
      %v891 = vpack.c.bf16 %v887, %v847
      %892 = vst [vmem:[#allocation3 + $0x60] sm:$0xff] %v888
      %893 = vst [vmem:[#allocation3 + $0x68] sm:$0xff] %v889
      %894 = vst [vmem:[#allocation3 + $0x70] sm:$0xff] %v890
      %895 = vst [vmem:[#allocation3 + $0x78] sm:$0xff] %v891
      %896 = vrot.lane.b32.xlu0 %v539, 37
      %v897 = vpop.permute.xlu0 %896
      %898 = vrot.lane.b32.xlu0 %v540, 37
      %v899 = vpop.permute.xlu0 %898
      %900 = vrot.lane.b32.xlu0 %v541, 37
      %v901 = vpop.permute.xlu0 %900
      %902 = vrot.lane.b32.xlu0 %v542, 37
      %v903 = vpop.permute.xlu0 %902
      %vm904 = vcmp.lt.s32.totalorder %v552, 37
      %v905 = vsel %vm904, %v901, %v903
      %v906 = vsel %vm904, %v899, %v901
      %v907 = vsel %vm904, %v897, %v899
      %v908 = vsel %vm904, %v903, %v897
      %s909 = scalar_lea.vmem %s9, 32
      %v910 = vld [vmem:[%s909] ss:$8 sm:$0xf]
      %v912 = vlaneseq
      %v913 = vshrl.u32 %v912, 7
      %v914 = vsub.s32 0, %v913
      %v915 = vrot.slane %v910, %v914
      %v916 = vlaneseq
      %v917 = vshrl.u32 %v916, 7
      %v918 = vsub.s32 1, %v917
      %v919 = vrot.slane %v910, %v918
      %v920 = vlaneseq
      %v921 = vshrl.u32 %v920, 7
      %v922 = vsub.s32 2, %v921
      %v923 = vrot.slane %v910, %v922
      %v924 = vlaneseq
      %v925 = vshrl.u32 %v924, 7
      %v926 = vsub.s32 3, %v925
      %v927 = vrot.slane %v910, %v926
      %v932 = vmul.f32 %v905, %v915
      %v933 = vmul.f32 %v908, %v919
      %v934 = vmul.f32 %v907, %v923
      %v935 = vmul.f32 %v906, %v927
      %936 = vrot.lane.b32.xlu0 %v539, 27
      %v937 = vpop.permute.xlu0 %936
      %938 = vrot.lane.b32.xlu0 %v540, 27
      %v939 = vpop.permute.xlu0 %938
      %940 = vrot.lane.b32.xlu0 %v541, 27
      %v941 = vpop.permute.xlu0 %940
      %942 = vrot.lane.b32.xlu0 %v542, 27
      %v943 = vpop.permute.xlu0 %942
      %vm944 = vcmp.lt.s32.totalorder %v552, 27
      %v945 = vsel %vm944, %v941, %v943
      %v946 = vsel %vm944, %v939, %v941
      %v947 = vsel %vm944, %v937, %v939
      %v948 = vsel %vm944, %v943, %v937
      %s949 = scalar_lea.vmem %s9, 33
      %v950 = vld [vmem:[%s949] ss:$8 sm:$0xf]
      %v952 = vlaneseq
      %v953 = vshrl.u32 %v952, 7
      %v954 = vsub.s32 0, %v953
      %v955 = vrot.slane %v950, %v954
      %v956 = vlaneseq
      %v957 = vshrl.u32 %v956, 7
      %v958 = vsub.s32 1, %v957
      %v959 = vrot.slane %v950, %v958
      %v960 = vlaneseq
      %v961 = vshrl.u32 %v960, 7
      %v962 = vsub.s32 2, %v961
      %v963 = vrot.slane %v950, %v962
      %v964 = vlaneseq
      %v965 = vshrl.u32 %v964, 7
      %v966 = vsub.s32 3, %v965
      %v967 = vrot.slane %v950, %v966
      %v972 = vmul.f32 %v948, %v955
      %v973 = vmul.f32 %v947, %v959
      %v974 = vmul.f32 %v946, %v963
      %v975 = vmul.f32 %v945, %v967
      %v976 = vpack.c.bf16 %v972, %v932
      %v977 = vpack.c.bf16 %v973, %v933
      %v978 = vpack.c.bf16 %v974, %v934
      %v979 = vpack.c.bf16 %v975, %v935
      %980 = vst [vmem:[#allocation3 + $0x80] sm:$0xff] %v976
      %981 = vst [vmem:[#allocation3 + $0x88] sm:$0xff] %v977
      %982 = vst [vmem:[#allocation3 + $0x90] sm:$0xff] %v978
      %983 = vst [vmem:[#allocation3 + $0x98] sm:$0xff] %v979
      %984 = vrot.lane.b32.xlu0 %v539, 24
      %v985 = vpop.permute.xlu0 %984
      %986 = vrot.lane.b32.xlu0 %v540, 24
      %v987 = vpop.permute.xlu0 %986
      %988 = vrot.lane.b32.xlu0 %v541, 24
      %v989 = vpop.permute.xlu0 %988
      %990 = vrot.lane.b32.xlu0 %v542, 24
      %v991 = vpop.permute.xlu0 %990
      %vm992 = vcmp.lt.s32.totalorder %v552, 24
      %v993 = vsel %vm992, %v989, %v991
      %v994 = vsel %vm992, %v987, %v989
      %v995 = vsel %vm992, %v985, %v987
      %v996 = vsel %vm992, %v991, %v985
      %s997 = scalar_lea.vmem %s9, 34
      %v998 = vld [vmem:[%s997] ss:$8 sm:$0xf]
      %v1000 = vlaneseq
      %v1001 = vshrl.u32 %v1000, 7
      %v1002 = vsub.s32 0, %v1001
      %v1003 = vrot.slane %v998, %v1002
      %v1004 = vlaneseq
      %v1005 = vshrl.u32 %v1004, 7
      %v1006 = vsub.s32 1, %v1005
      %v1007 = vrot.slane %v998, %v1006
      %v1008 = vlaneseq
      %v1009 = vshrl.u32 %v1008, 7
      %v1010 = vsub.s32 2, %v1009
      %v1011 = vrot.slane %v998, %v1010
      %v1012 = vlaneseq
      %v1013 = vshrl.u32 %v1012, 7
      %v1014 = vsub.s32 3, %v1013
      %v1015 = vrot.slane %v998, %v1014
      %v1020 = vmul.f32 %v996, %v1003
      %v1021 = vmul.f32 %v995, %v1007
      %v1022 = vmul.f32 %v994, %v1011
      %v1023 = vmul.f32 %v993, %v1015
      %1024 = vrot.lane.b32.xlu0 %v539, 21
      %v1025 = vpop.permute.xlu0 %1024
      %1026 = vrot.lane.b32.xlu0 %v540, 21
      %v1027 = vpop.permute.xlu0 %1026
      %1028 = vrot.lane.b32.xlu0 %v541, 21
      %v1029 = vpop.permute.xlu0 %1028
      %1030 = vrot.lane.b32.xlu0 %v542, 21
      %v1031 = vpop.permute.xlu0 %1030
      %vm1032 = vcmp.lt.s32.totalorder %v552, 21
      %v1033 = vsel %vm1032, %v1029, %v1031
      %v1034 = vsel %vm1032, %v1027, %v1029
      %v1035 = vsel %vm1032, %v1025, %v1027
      %v1036 = vsel %vm1032, %v1031, %v1025
      %s1037 = scalar_lea.vmem %s9, 35
      %v1038 = vld [vmem:[%s1037] ss:$8 sm:$0xf]
      %v1040 = vlaneseq
      %v1041 = vshrl.u32 %v1040, 7
      %v1042 = vsub.s32 0, %v1041
      %v1043 = vrot.slane %v1038, %v1042
      %v1044 = vlaneseq
      %v1045 = vshrl.u32 %v1044, 7
      %v1046 = vsub.s32 1, %v1045
      %v1047 = vrot.slane %v1038, %v1046
      %v1048 = vlaneseq
      %v1049 = vshrl.u32 %v1048, 7
      %v1050 = vsub.s32 2, %v1049
      %v1051 = vrot.slane %v1038, %v1050
      %v1052 = vlaneseq
      %v1053 = vshrl.u32 %v1052, 7
      %v1054 = vsub.s32 3, %v1053
      %v1055 = vrot.slane %v1038, %v1054
      %v1060 = vmul.f32 %v1036, %v1043
      %v1061 = vmul.f32 %v1035, %v1047
      %v1062 = vmul.f32 %v1034, %v1051
      %v1063 = vmul.f32 %v1033, %v1055
      %v1064 = vpack.c.bf16 %v1060, %v1020
      %v1065 = vpack.c.bf16 %v1061, %v1021
      %v1066 = vpack.c.bf16 %v1062, %v1022
      %v1067 = vpack.c.bf16 %v1063, %v1023
      %1068 = vst [vmem:[#allocation3 + $0xa0] sm:$0xff] %v1064
      %1069 = vst [vmem:[#allocation3 + $0xa8] sm:$0xff] %v1065
      %1070 = vst [vmem:[#allocation3 + $0xb0] sm:$0xff] %v1066
      %1071 = vst [vmem:[#allocation3 + $0xb8] sm:$0xff] %v1067
      %1072 = vrot.lane.b32.xlu0 %v539, 3
      %v1073 = vpop.permute.xlu0 %1072
      %1074 = vrot.lane.b32.xlu0 %v540, 3
      %v1075 = vpop.permute.xlu0 %1074
      %1076 = vrot.lane.b32.xlu0 %v541, 3
      %v1077 = vpop.permute.xlu0 %1076
      %1078 = vrot.lane.b32.xlu0 %v542, 3
      %v1079 = vpop.permute.xlu0 %1078
      %vm1080 = vcmp.lt.s32.totalorder %v552, 3
      %v1081 = vsel %vm1080, %v1077, %v1079
      %v1082 = vsel %vm1080, %v1075, %v1077
      %v1083 = vsel %vm1080, %v1073, %v1075
      %v1084 = vsel %vm1080, %v1079, %v1073
      %s1085 = scalar_lea.vmem %s9, 36
      %v1086 = vld [vmem:[%s1085] ss:$8 sm:$0xf]
      %v1088 = vlaneseq
      %v1089 = vshrl.u32 %v1088, 7
      %v1090 = vsub.s32 0, %v1089
      %v1091 = vrot.slane %v1086, %v1090
      %v1092 = vlaneseq
      %v1093 = vshrl.u32 %v1092, 7
      %v1094 = vsub.s32 1, %v1093
      %v1095 = vrot.slane %v1086, %v1094
      %v1096 = vlaneseq
      %v1097 = vshrl.u32 %v1096, 7
      %v1098 = vsub.s32 2, %v1097
      %v1099 = vrot.slane %v1086, %v1098
      %v1100 = vlaneseq
      %v1101 = vshrl.u32 %v1100, 7
      %v1102 = vsub.s32 3, %v1101
      %v1103 = vrot.slane %v1086, %v1102
      %v1108 = vmul.f32 %v1084, %v1091
      %v1109 = vmul.f32 %v1083, %v1095
      %v1110 = vmul.f32 %v1082, %v1099
      %v1111 = vmul.f32 %v1081, %v1103
      %v1112 = vpack.c.bf16 %v539, %v1108
      %v1113 = vpack.c.bf16 %v540, %v1109
      %v1114 = vpack.c.bf16 %v541, %v1110
      %v1115 = vpack.c.bf16 %v542, %v1111
      %1116 = vst [vmem:[#allocation3 + $0xc0] sm:$0xff] %v1112
      %1117 = vst [vmem:[#allocation3 + $0xc8] sm:$0xff] %v1113
      %1118 = vst [vmem:[#allocation3 + $0xd0] sm:$0xff] %v1114
      %1119 = vst [vmem:[#allocation3 + $0xd8] sm:$0xff] %v1115
      %1120 = vrot.lane.b32.xlu0 %v539, 125
      %v1121 = vpop.permute.xlu0 %1120
      %1122 = vrot.lane.b32.xlu0 %v540, 125
      %v1123 = vpop.permute.xlu0 %1122
      %1124 = vrot.lane.b32.xlu0 %v541, 125
      %v1125 = vpop.permute.xlu0 %1124
      %1126 = vrot.lane.b32.xlu0 %v542, 125
      %v1127 = vpop.permute.xlu0 %1126
      %vm1128 = vcmp.lt.s32.totalorder %v552, 125
      %v1129 = vsel %vm1128, %v1125, %v1127
      %v1130 = vsel %vm1128, %v1123, %v1125
      %v1131 = vsel %vm1128, %v1121, %v1123
      %v1132 = vsel %vm1128, %v1127, %v1121
      %s1133 = scalar_lea.vmem %s9, 38
      %v1134 = vld [vmem:[%s1133] ss:$8 sm:$0xf]
      %v1136 = vlaneseq
      %v1137 = vshrl.u32 %v1136, 7
      %v1138 = vsub.s32 0, %v1137
      %v1139 = vrot.slane %v1134, %v1138
      %v1140 = vlaneseq
      %v1141 = vshrl.u32 %v1140, 7
      %v1142 = vsub.s32 1, %v1141
      %v1143 = vrot.slane %v1134, %v1142
      %v1144 = vlaneseq
      %v1145 = vshrl.u32 %v1144, 7
      %v1146 = vsub.s32 2, %v1145
      %v1147 = vrot.slane %v1134, %v1146
      %v1148 = vlaneseq
      %v1149 = vshrl.u32 %v1148, 7
      %v1150 = vsub.s32 3, %v1149
      %v1151 = vrot.slane %v1134, %v1150
      %v1156 = vmul.f32 %v1131, %v1139
      %v1157 = vmul.f32 %v1130, %v1143
      %v1158 = vmul.f32 %v1129, %v1147
      %v1159 = vmul.f32 %v1132, %v1151
      %1160 = vrot.lane.b32.xlu0 %v539, 107
      %v1161 = vpop.permute.xlu0 %1160
      %1162 = vrot.lane.b32.xlu0 %v540, 107
      %v1163 = vpop.permute.xlu0 %1162
      %1164 = vrot.lane.b32.xlu0 %v541, 107
      %v1165 = vpop.permute.xlu0 %1164
      %1166 = vrot.lane.b32.xlu0 %v542, 107
      %v1167 = vpop.permute.xlu0 %1166
      %vm1168 = vcmp.lt.s32.totalorder %v552, 107
      %v1169 = vsel %vm1168, %v1165, %v1167
      %v1170 = vsel %vm1168, %v1163, %v1165
      %v1171 = vsel %vm1168, %v1161, %v1163
      %v1172 = vsel %vm1168, %v1167, %v1161
      %s1173 = scalar_lea.vmem %s9, 39
      %v1174 = vld [vmem:[%s1173] ss:$8 sm:$0xf]
      %v1176 = vlaneseq
      %v1177 = vshrl.u32 %v1176, 7
      %v1178 = vsub.s32 0, %v1177
      %v1179 = vrot.slane %v1174, %v1178
      %v1180 = vlaneseq
      %v1181 = vshrl.u32 %v1180, 7
      %v1182 = vsub.s32 1, %v1181
      %v1183 = vrot.slane %v1174, %v1182
      %v1184 = vlaneseq
      %v1185 = vshrl.u32 %v1184, 7
      %v1186 = vsub.s32 2, %v1185
      %v1187 = vrot.slane %v1174, %v1186
      %v1188 = vlaneseq
      %v1189 = vshrl.u32 %v1188, 7
      %v1190 = vsub.s32 3, %v1189
      %v1191 = vrot.slane %v1174, %v1190
      %v1196 = vmul.f32 %v1171, %v1179
      %v1197 = vmul.f32 %v1170, %v1183
      %v1198 = vmul.f32 %v1169, %v1187
      %v1199 = vmul.f32 %v1172, %v1191
      %v1200 = vpack.c.bf16 %v1196, %v1156
      %v1201 = vpack.c.bf16 %v1197, %v1157
      %v1202 = vpack.c.bf16 %v1198, %v1158
      %v1203 = vpack.c.bf16 %v1199, %v1159
      %1204 = vst [vmem:[#allocation3 + $0xe0] sm:$0xff] %v1200
      %1205 = vst [vmem:[#allocation3 + $0xe8] sm:$0xff] %v1201
      %1206 = vst [vmem:[#allocation3 + $0xf0] sm:$0xff] %v1202
      %1207 = vst [vmem:[#allocation3 + $0xf8] sm:$0xff] %v1203
      %1208 = vrot.lane.b32.xlu0 %v539, 104
      %v1209 = vpop.permute.xlu0 %1208
      %1210 = vrot.lane.b32.xlu0 %v540, 104
      %v1211 = vpop.permute.xlu0 %1210
      %1212 = vrot.lane.b32.xlu0 %v541, 104
      %v1213 = vpop.permute.xlu0 %1212
      %1214 = vrot.lane.b32.xlu0 %v542, 104
      %v1215 = vpop.permute.xlu0 %1214
      %vm1216 = vcmp.lt.s32.totalorder %v552, 104
      %v1217 = vsel %vm1216, %v1213, %v1215
      %v1218 = vsel %vm1216, %v1211, %v1213
      %v1219 = vsel %vm1216, %v1209, %v1211
      %v1220 = vsel %vm1216, %v1215, %v1209
      %s1221 = scalar_lea.vmem %s9, 64
      %v1222 = vld [vmem:[%s1221] ss:$8 sm:$0xf]
      %v1224 = vlaneseq
      %v1225 = vshrl.u32 %v1224, 7
      %v1226 = vsub.s32 0, %v1225
      %v1227 = vrot.slane %v1222, %v1226
      %v1228 = vlaneseq
      %v1229 = vshrl.u32 %v1228, 7
      %v1230 = vsub.s32 1, %v1229
      %v1231 = vrot.slane %v1222, %v1230
      %v1232 = vlaneseq
      %v1233 = vshrl.u32 %v1232, 7
      %v1234 = vsub.s32 2, %v1233
      %v1235 = vrot.slane %v1222, %v1234
      %v1236 = vlaneseq
      %v1237 = vshrl.u32 %v1236, 7
      %v1238 = vsub.s32 3, %v1237
      %v1239 = vrot.slane %v1222, %v1238
      %v1244 = vmul.f32 %v1219, %v1227
      %v1245 = vmul.f32 %v1218, %v1231
      %v1246 = vmul.f32 %v1217, %v1235
      %v1247 = vmul.f32 %v1220, %v1239
      %1248 = vrot.lane.b32.xlu0 %v539, 101
      %v1249 = vpop.permute.xlu0 %1248
      %1250 = vrot.lane.b32.xlu0 %v540, 101
      %v1251 = vpop.permute.xlu0 %1250
      %1252 = vrot.lane.b32.xlu0 %v541, 101
      %v1253 = vpop.permute.xlu0 %1252
      %1254 = vrot.lane.b32.xlu0 %v542, 101
      %v1255 = vpop.permute.xlu0 %1254
      %vm1256 = vcmp.lt.s32.totalorder %v552, 101
      %v1257 = vsel %vm1256, %v1253, %v1255
      %v1258 = vsel %vm1256, %v1251, %v1253
      %v1259 = vsel %vm1256, %v1249, %v1251
      %v1260 = vsel %vm1256, %v1255, %v1249
      %s1261 = scalar_lea.vmem %s9, 65
      %v1262 = vld [vmem:[%s1261] ss:$8 sm:$0xf]
      %v1264 = vlaneseq
      %v1265 = vshrl.u32 %v1264, 7
      %v1266 = vsub.s32 0, %v1265
      %v1267 = vrot.slane %v1262, %v1266
      %v1268 = vlaneseq
      %v1269 = vshrl.u32 %v1268, 7
      %v1270 = vsub.s32 1, %v1269
      %v1271 = vrot.slane %v1262, %v1270
      %v1272 = vlaneseq
      %v1273 = vshrl.u32 %v1272, 7
      %v1274 = vsub.s32 2, %v1273
      %v1275 = vrot.slane %v1262, %v1274
      %v1276 = vlaneseq
      %v1277 = vshrl.u32 %v1276, 7
      %v1278 = vsub.s32 3, %v1277
      %v1279 = vrot.slane %v1262, %v1278
      %v1284 = vmul.f32 %v1259, %v1267
      %v1285 = vmul.f32 %v1258, %v1271
      %v1286 = vmul.f32 %v1257, %v1275
      %v1287 = vmul.f32 %v1260, %v1279
      %v1288 = vpack.c.bf16 %v1284, %v1244
      %v1289 = vpack.c.bf16 %v1285, %v1245
      %v1290 = vpack.c.bf16 %v1286, %v1246
      %v1291 = vpack.c.bf16 %v1287, %v1247
      %1292 = vst [vmem:[#allocation3 + $0x100] sm:$0xff] %v1288
      %1293 = vst [vmem:[#allocation3 + $0x108] sm:$0xff] %v1289
      %1294 = vst [vmem:[#allocation3 + $0x110] sm:$0xff] %v1290
      %1295 = vst [vmem:[#allocation3 + $0x118] sm:$0xff] %v1291
      %s1296 = scalar_lea.vmem %s9, 66
      %v1297 = vld [vmem:[%s1296] ss:$8 sm:$0xf]
      %v1299 = vlaneseq
      %v1300 = vshrl.u32 %v1299, 7
      %v1301 = vsub.s32 0, %v1300
      %v1302 = vrot.slane %v1297, %v1301
      %v1303 = vlaneseq
      %v1304 = vshrl.u32 %v1303, 7
      %v1305 = vsub.s32 1, %v1304
      %v1306 = vrot.slane %v1297, %v1305
      %v1307 = vlaneseq
      %v1308 = vshrl.u32 %v1307, 7
      %v1309 = vsub.s32 2, %v1308
      %v1310 = vrot.slane %v1297, %v1309
      %v1311 = vlaneseq
      %v1312 = vshrl.u32 %v1311, 7
      %v1313 = vsub.s32 3, %v1312
      %v1314 = vrot.slane %v1297, %v1313
      %v1319 = vmul.f32 %v555, %v1302
      %v1320 = vmul.f32 %v554, %v1306
      %v1321 = vmul.f32 %v557, %v1310
      %v1322 = vmul.f32 %v556, %v1314
      %s1323 = scalar_lea.vmem %s9, 67
      %v1324 = vld [vmem:[%s1323] ss:$8 sm:$0xf]
      %v1326 = vlaneseq
      %v1327 = vshrl.u32 %v1326, 7
      %v1328 = vsub.s32 0, %v1327
      %v1329 = vrot.slane %v1324, %v1328
      %v1330 = vlaneseq
      %v1331 = vshrl.u32 %v1330, 7
      %v1332 = vsub.s32 1, %v1331
      %v1333 = vrot.slane %v1324, %v1332
      %v1334 = vlaneseq
      %v1335 = vshrl.u32 %v1334, 7
      %v1336 = vsub.s32 2, %v1335
      %v1337 = vrot.slane %v1324, %v1336
      %v1338 = vlaneseq
      %v1339 = vshrl.u32 %v1338, 7
      %v1340 = vsub.s32 3, %v1339
      %v1341 = vrot.slane %v1324, %v1340
      %v1346 = vmul.f32 %v594, %v1329
      %v1347 = vmul.f32 %v593, %v1333
      %v1348 = vmul.f32 %v596, %v1337
      %v1349 = vmul.f32 %v595, %v1341
      %v1350 = vpack.c.bf16 %v1346, %v1319
      %v1351 = vpack.c.bf16 %v1347, %v1320
      %v1352 = vpack.c.bf16 %v1348, %v1321
      %v1353 = vpack.c.bf16 %v1349, %v1322
      %1354 = vst [vmem:[#allocation3 + $0x120] sm:$0xff] %v1350
      %1355 = vst [vmem:[#allocation3 + $0x128] sm:$0xff] %v1351
      %1356 = vst [vmem:[#allocation3 + $0x130] sm:$0xff] %v1352
      %1357 = vst [vmem:[#allocation3 + $0x138] sm:$0xff] %v1353
      %s1358 = scalar_lea.vmem %s9, 68
      %v1359 = vld [vmem:[%s1358] ss:$8 sm:$0xf]
      %v1361 = vlaneseq
      %v1362 = vshrl.u32 %v1361, 7
      %v1363 = vsub.s32 0, %v1362
      %v1364 = vrot.slane %v1359, %v1363
      %v1365 = vlaneseq
      %v1366 = vshrl.u32 %v1365, 7
      %v1367 = vsub.s32 1, %v1366
      %v1368 = vrot.slane %v1359, %v1367
      %v1369 = vlaneseq
      %v1370 = vshrl.u32 %v1369, 7
      %v1371 = vsub.s32 2, %v1370
      %v1372 = vrot.slane %v1359, %v1371
      %v1373 = vlaneseq
      %v1374 = vshrl.u32 %v1373, 7
      %v1375 = vsub.s32 3, %v1374
      %v1376 = vrot.slane %v1359, %v1375
      %v1381 = vmul.f32 %v642, %v1364
      %v1382 = vmul.f32 %v641, %v1368
      %v1383 = vmul.f32 %v644, %v1372
      %v1384 = vmul.f32 %v643, %v1376
      %s1385 = scalar_lea.vmem %s9, 69
      %v1386 = vld [vmem:[%s1385] ss:$8 sm:$0xf]
      %v1388 = vlaneseq
      %v1389 = vshrl.u32 %v1388, 7
      %v1390 = vsub.s32 0, %v1389
      %v1391 = vrot.slane %v1386, %v1390
      %v1392 = vlaneseq
      %v1393 = vshrl.u32 %v1392, 7
      %v1394 = vsub.s32 1, %v1393
      %v1395 = vrot.slane %v1386, %v1394
      %v1396 = vlaneseq
      %v1397 = vshrl.u32 %v1396, 7
      %v1398 = vsub.s32 2, %v1397
      %v1399 = vrot.slane %v1386, %v1398
      %v1400 = vlaneseq
      %v1401 = vshrl.u32 %v1400, 7
      %v1402 = vsub.s32 3, %v1401
      %v1403 = vrot.slane %v1386, %v1402
      %v1408 = vmul.f32 %v682, %v1391
      %v1409 = vmul.f32 %v681, %v1395
      %v1410 = vmul.f32 %v684, %v1399
      %v1411 = vmul.f32 %v683, %v1403
      %v1412 = vpack.c.bf16 %v1408, %v1381
      %v1413 = vpack.c.bf16 %v1409, %v1382
      %v1414 = vpack.c.bf16 %v1410, %v1383
      %v1415 = vpack.c.bf16 %v1411, %v1384
      %1416 = vst [vmem:[#allocation3 + $0x140] sm:$0xff] %v1412
      %1417 = vst [vmem:[#allocation3 + $0x148] sm:$0xff] %v1413
      %1418 = vst [vmem:[#allocation3 + $0x150] sm:$0xff] %v1414
      %1419 = vst [vmem:[#allocation3 + $0x158] sm:$0xff] %v1415
      %s1420 = scalar_lea.vmem %s9, 70
      %v1421 = vld [vmem:[%s1420] ss:$8 sm:$0xf]
      %v1423 = vlaneseq
      %v1424 = vshrl.u32 %v1423, 7
      %v1425 = vsub.s32 0, %v1424
      %v1426 = vrot.slane %v1421, %v1425
      %v1427 = vlaneseq
      %v1428 = vshrl.u32 %v1427, 7
      %v1429 = vsub.s32 1, %v1428
      %v1430 = vrot.slane %v1421, %v1429
      %v1431 = vlaneseq
      %v1432 = vshrl.u32 %v1431, 7
      %v1433 = vsub.s32 2, %v1432
      %v1434 = vrot.slane %v1421, %v1433
      %v1435 = vlaneseq
      %v1436 = vshrl.u32 %v1435, 7
      %v1437 = vsub.s32 3, %v1436
      %v1438 = vrot.slane %v1421, %v1437
      %v1443 = vmul.f32 %v730, %v1426
      %v1444 = vmul.f32 %v729, %v1430
      %v1445 = vmul.f32 %v732, %v1434
      %v1446 = vmul.f32 %v731, %v1438
      %s1447 = scalar_lea.vmem %s9, 71
      %v1448 = vld [vmem:[%s1447] ss:$8 sm:$0xf]
      %v1450 = vlaneseq
      %v1451 = vshrl.u32 %v1450, 7
      %v1452 = vsub.s32 0, %v1451
      %v1453 = vrot.slane %v1448, %v1452
      %v1454 = vlaneseq
      %v1455 = vshrl.u32 %v1454, 7
      %v1456 = vsub.s32 1, %v1455
      %v1457 = vrot.slane %v1448, %v1456
      %v1458 = vlaneseq
      %v1459 = vshrl.u32 %v1458, 7
      %v1460 = vsub.s32 2, %v1459
      %v1461 = vrot.slane %v1448, %v1460
      %v1462 = vlaneseq
      %v1463 = vshrl.u32 %v1462, 7
      %v1464 = vsub.s32 3, %v1463
      %v1465 = vrot.slane %v1448, %v1464
      %v1470 = vmul.f32 %v770, %v1453
      %v1471 = vmul.f32 %v769, %v1457
      %v1472 = vmul.f32 %v772, %v1461
      %v1473 = vmul.f32 %v771, %v1465
      %v1474 = vpack.c.bf16 %v1470, %v1443
      %v1475 = vpack.c.bf16 %v1471, %v1444
      %v1476 = vpack.c.bf16 %v1472, %v1445
      %v1477 = vpack.c.bf16 %v1473, %v1446
      %1478 = vst [vmem:[#allocation3 + $0x160] sm:$0xff] %v1474
      %1479 = vst [vmem:[#allocation3 + $0x168] sm:$0xff] %v1475
      %1480 = vst [vmem:[#allocation3 + $0x170] sm:$0xff] %v1476
      %1481 = vst [vmem:[#allocation3 + $0x178] sm:$0xff] %v1477
      %s1482 = scalar_lea.vmem %s9, 96
      %v1483 = vld [vmem:[%s1482] ss:$8 sm:$0xf]
      %v1485 = vlaneseq
      %v1486 = vshrl.u32 %v1485, 7
      %v1487 = vsub.s32 0, %v1486
      %v1488 = vrot.slane %v1483, %v1487
      %v1489 = vlaneseq
      %v1490 = vshrl.u32 %v1489, 7
      %v1491 = vsub.s32 1, %v1490
      %v1492 = vrot.slane %v1483, %v1491
      %v1493 = vlaneseq
      %v1494 = vshrl.u32 %v1493, 7
      %v1495 = vsub.s32 2, %v1494
      %v1496 = vrot.slane %v1483, %v1495
      %v1497 = vlaneseq
      %v1498 = vshrl.u32 %v1497, 7
      %v1499 = vsub.s32 3, %v1498
      %v1500 = vrot.slane %v1483, %v1499
      %v1505 = vmul.f32 %v818, %v1488
      %v1506 = vmul.f32 %v817, %v1492
      %v1507 = vmul.f32 %v820, %v1496
      %v1508 = vmul.f32 %v819, %v1500
      %s1509 = scalar_lea.vmem %s9, 97
      %v1510 = vld [vmem:[%s1509] ss:$8 sm:$0xf]
      %v1512 = vlaneseq
      %v1513 = vshrl.u32 %v1512, 7
      %v1514 = vsub.s32 0, %v1513
      %v1515 = vrot.slane %v1510, %v1514
      %v1516 = vlaneseq
      %v1517 = vshrl.u32 %v1516, 7
      %v1518 = vsub.s32 1, %v1517
      %v1519 = vrot.slane %v1510, %v1518
      %v1520 = vlaneseq
      %v1521 = vshrl.u32 %v1520, 7
      %v1522 = vsub.s32 2, %v1521
      %v1523 = vrot.slane %v1510, %v1522
      %v1524 = vlaneseq
      %v1525 = vshrl.u32 %v1524, 7
      %v1526 = vsub.s32 3, %v1525
      %v1527 = vrot.slane %v1510, %v1526
      %v1532 = vmul.f32 %v858, %v1515
      %v1533 = vmul.f32 %v857, %v1519
      %v1534 = vmul.f32 %v860, %v1523
      %v1535 = vmul.f32 %v859, %v1527
      %v1536 = vpack.c.bf16 %v1532, %v1505
      %v1537 = vpack.c.bf16 %v1533, %v1506
      %v1538 = vpack.c.bf16 %v1534, %v1507
      %v1539 = vpack.c.bf16 %v1535, %v1508
      %1540 = vst [vmem:[#allocation3 + $0x180] sm:$0xff] %v1536
      %1541 = vst [vmem:[#allocation3 + $0x188] sm:$0xff] %v1537
      %1542 = vst [vmem:[#allocation3 + $0x190] sm:$0xff] %v1538
      %1543 = vst [vmem:[#allocation3 + $0x198] sm:$0xff] %v1539
      %s1544 = scalar_lea.vmem %s9, 98
      %v1545 = vld [vmem:[%s1544] ss:$8 sm:$0xf]
      %v1547 = vlaneseq
      %v1548 = vshrl.u32 %v1547, 7
      %v1549 = vsub.s32 0, %v1548
      %v1550 = vrot.slane %v1545, %v1549
      %v1551 = vlaneseq
      %v1552 = vshrl.u32 %v1551, 7
      %v1553 = vsub.s32 1, %v1552
      %v1554 = vrot.slane %v1545, %v1553
      %v1555 = vlaneseq
      %v1556 = vshrl.u32 %v1555, 7
      %v1557 = vsub.s32 2, %v1556
      %v1558 = vrot.slane %v1545, %v1557
      %v1559 = vlaneseq
      %v1560 = vshrl.u32 %v1559, 7
      %v1561 = vsub.s32 3, %v1560
      %v1562 = vrot.slane %v1545, %v1561
      %v1567 = vmul.f32 %v906, %v1550
      %v1568 = vmul.f32 %v905, %v1554
      %v1569 = vmul.f32 %v908, %v1558
      %v1570 = vmul.f32 %v907, %v1562
      %v1571 = vpack.c.bf16 0.0, %v1567
      %v1572 = vpack.c.bf16 0.0, %v1568
      %v1573 = vpack.c.bf16 0.0, %v1569
      %v1574 = vpack.c.bf16 0.0, %v1570
      %1575 = vst [vmem:[#allocation3 + $0x1a0] sm:$0xff] %v1571
      %1576 = vst [vmem:[#allocation3 + $0x1a8] sm:$0xff] %v1572
      %1577 = vst [vmem:[#allocation3 + $0x1b0] sm:$0xff] %v1573
      %1578 = vst [vmem:[#allocation3 + $0x1b8] sm:$0xff] %v1574
      %v1579 = vld [vmem:[%s5] sm:$0xf]
      %v1580 = vld [vmem:[#allocation3] sm:$0xff]
      %v1581 = vld [vmem:[#allocation3 + $0x8] sm:$0xff]
      %v1582 = vld [vmem:[#allocation3 + $0x10] sm:$0xff]
      %v1583 = vld [vmem:[#allocation3 + $0x18] sm:$0xff]
      %v1584 = vld [vmem:[#allocation3 + $0x20] sm:$0xff]
      %v1585 = vld [vmem:[#allocation3 + $0x28] sm:$0xff]
      %v1586 = vld [vmem:[#allocation3 + $0x30] sm:$0xff]
      %v1587 = vld [vmem:[#allocation3 + $0x38] sm:$0xff]
      %v1588 = vld [vmem:[#allocation3 + $0x40] sm:$0xff]
      %v1589 = vld [vmem:[#allocation3 + $0x48] sm:$0xff]
      %v1590 = vld [vmem:[#allocation3 + $0x50] sm:$0xff]
      %v1591 = vld [vmem:[#allocation3 + $0x58] sm:$0xff]
      %v1592 = vld [vmem:[#allocation3 + $0x60] sm:$0xff]
      %v1593 = vld [vmem:[#allocation3 + $0x68] sm:$0xff]
      %v1594 = vld [vmem:[#allocation3 + $0x70] sm:$0xff]
      %v1595 = vld [vmem:[#allocation3 + $0x78] sm:$0xff]
      %v1596 = vld [vmem:[#allocation3 + $0x80] sm:$0xff]
      %v1597 = vld [vmem:[#allocation3 + $0x88] sm:$0xff]
      %v1598 = vld [vmem:[#allocation3 + $0x90] sm:$0xff]
      %v1599 = vld [vmem:[#allocation3 + $0x98] sm:$0xff]
      %v1600 = vld [vmem:[#allocation3 + $0xa0] sm:$0xff]
      %v1601 = vld [vmem:[#allocation3 + $0xa8] sm:$0xff]
      %v1602 = vld [vmem:[#allocation3 + $0xb0] sm:$0xff]
      %v1603 = vld [vmem:[#allocation3 + $0xb8] sm:$0xff]
      %v1604 = vld [vmem:[#allocation3 + $0xc0] sm:$0xff]
      %v1605 = vld [vmem:[#allocation3 + $0xc8] sm:$0xff]
      %v1606 = vld [vmem:[#allocation3 + $0xd0] sm:$0xff]
      %v1607 = vld [vmem:[#allocation3 + $0xd8] sm:$0xff]
      %v1608 = vld [vmem:[#allocation3 + $0xe0] sm:$0xff]
      %v1609 = vld [vmem:[#allocation3 + $0xe8] sm:$0xff]
      %v1610 = vld [vmem:[#allocation3 + $0xf0] sm:$0xff]
      %v1611 = vld [vmem:[#allocation3 + $0xf8] sm:$0xff]
      %v1612 = vld [vmem:[#allocation3 + $0x100] sm:$0xff]
      %v1613 = vld [vmem:[#allocation3 + $0x108] sm:$0xff]
      %v1614 = vld [vmem:[#allocation3 + $0x110] sm:$0xff]
      %v1615 = vld [vmem:[#allocation3 + $0x118] sm:$0xff]
      %v1616 = vld [vmem:[#allocation3 + $0x120] sm:$0xff]
      %v1617 = vld [vmem:[#allocation3 + $0x128] sm:$0xff]
      %v1618 = vld [vmem:[#allocation3 + $0x130] sm:$0xff]
      %v1619 = vld [vmem:[#allocation3 + $0x138] sm:$0xff]
      %v1620 = vld [vmem:[#allocation3 + $0x140] sm:$0xff]
      %v1621 = vld [vmem:[#allocation3 + $0x148] sm:$0xff]
      %v1622 = vld [vmem:[#allocation3 + $0x150] sm:$0xff]
      %v1623 = vld [vmem:[#allocation3 + $0x158] sm:$0xff]
      %v1624 = vld [vmem:[#allocation3 + $0x160] sm:$0xff]
      %v1625 = vld [vmem:[#allocation3 + $0x168] sm:$0xff]
      %v1626 = vld [vmem:[#allocation3 + $0x170] sm:$0xff]
      %v1627 = vld [vmem:[#allocation3 + $0x178] sm:$0xff]
      %v1628 = vld [vmem:[#allocation3 + $0x180] sm:$0xff]
      %v1629 = vld [vmem:[#allocation3 + $0x188] sm:$0xff]
      %v1630 = vld [vmem:[#allocation3 + $0x190] sm:$0xff]
      %v1631 = vld [vmem:[#allocation3 + $0x198] sm:$0xff]
      %v1632 = vld [vmem:[#allocation3 + $0x1a0] sm:$0xff]
      %v1633 = vld [vmem:[#allocation3 + $0x1a8] sm:$0xff]
      %v1634 = vld [vmem:[#allocation3 + $0x1b0] sm:$0xff]
      %v1635 = vld [vmem:[#allocation3 + $0x1b8] sm:$0xff]
      %v1638 = vunpack.c.l.s4 1983009808
      %v1639 = vunpack.c.0.s8 %v1638
      %v1640 = vlaneseq
      %v1641 = vshrl.u32 %v1640, 7
      %v1642 = vsub.s32 %v1639, %v1641
      %v1643 = vrot.slane %v1579, %v1642
      %v1644 = vcombine.high %v1643, %v1643
      %vm1646 = vcmask 785408
      %v1648 = vsel %vm1646, %v1644, 0
      %1650 = vmatprep.subr.bf16.mxu0 %v1581
      %1651 = vmatpush1.bf16.msra.mxu0 %v1580
      %1652 = vmatprep.subr.bf16.mxu0 %v1585
      %1653 = vmatpush1.bf16.msra.mxu0 %v1584
      %1654 = vmatprep.subr.bf16.mxu0 %v1589
      %1655 = vmatpush1.bf16.msra.mxu0 %v1588
      %1656 = vmatprep.subr.bf16.mxu0 %v1593
      %1657 = vmatpush1.bf16.msra.mxu0 %v1592
      %1658 = vmatprep.subr.bf16.mxu0 %v1597
      %1659 = vmatpush1.bf16.msra.mxu0 %v1596
      %1660 = vmatprep.subr.bf16.mxu0 %v1601
      %1661 = vmatpush1.bf16.msra.mxu0 %v1600
      %1662 = vmatprep.subr.bf16.mxu0 %v1605
      %1663 = vmatpush1.bf16.msra.mxu0 %v1604
      %1664 = vmatprep.subr.bf16.mxu0 %v1609
      %1665 = vmatpush1.bf16.msra.mxu0 %v1608
      %1666 = vmatprep.subr.bf16.mxu0 %v1613
      %1667 = vmatpush1.bf16.msra.mxu0 %v1612
      %1668 = vmatprep.subr.bf16.mxu0 %v1617
      %1669 = vmatpush1.bf16.msra.mxu0 %v1616
      %1670 = vmatprep.subr.bf16.mxu0 %v1621
      %1671 = vmatpush1.bf16.msra.mxu0 %v1620
      %1672 = vmatprep.subr.bf16.mxu0 %v1625
      %1673 = vmatpush1.bf16.msra.mxu0 %v1624
      %1674 = vmatprep.subr.bf16.mxu0 %v1629
      %1675 = vmatpush1.bf16.msra.mxu0 %v1628
      %1676 = vmatprep.subr.bf16.mxu0 %v1633
      %1677 = vmatpush1.bf16.msra.mxu0 %v1632
      %1678 = vmatprep.subr.bf16.mxu0 0
      %1679 = vmatpush1.bf16.msra.mxu0 0
      %1680 = vmatprep.subr.bf16.mxu0 0
      %1681 = vmatpush1.bf16.msra.mxu0 0
      %1682 = vmatprep.mubr.bf16.mxu0 %v1648
      %1683 = vmatmul.mubr.bf16.gmra.mrb[0].mxu0 %v1643
      %v1684 = vpop.f32.mrb[0].mxu0
      %v1685 = vadd.f32 0.0, %v1684
      %v1686 = vpop.f32.mrb[0].mxu0
      %v1687 = vadd.f32 0.0, %v1686
      %v1688 = vpop.f32.mrb[0].mxu0
      %v1689 = vpop.f32.mrb[0].mxu0
      %1690 = vdwg.mxu0
      %1691 = vmatprep.subr.bf16.mxu0 %v1583
      %1692 = vmatpush1.bf16.msra.mxu0 %v1582
      %1693 = vmatprep.subr.bf16.mxu0 %v1587
      %1694 = vmatpush1.bf16.msra.mxu0 %v1586
      %1695 = vmatprep.subr.bf16.mxu0 %v1591
      %1696 = vmatpush1.bf16.msra.mxu0 %v1590
      %1697 = vmatprep.subr.bf16.mxu0 %v1595
      %1698 = vmatpush1.bf16.msra.mxu0 %v1594
      %1699 = vmatprep.subr.bf16.mxu0 %v1599
      %1700 = vmatpush1.bf16.msra.mxu0 %v1598
      %1701 = vmatprep.subr.bf16.mxu0 %v1603
      %1702 = vmatpush1.bf16.msra.mxu0 %v1602
      %1703 = vmatprep.subr.bf16.mxu0 %v1607
      %1704 = vmatpush1.bf16.msra.mxu0 %v1606
      %1705 = vmatprep.subr.bf16.mxu0 %v1611
      %1706 = vmatpush1.bf16.msra.mxu0 %v1610
      %1707 = vmatprep.subr.bf16.mxu0 %v1615
      %1708 = vmatpush1.bf16.msra.mxu0 %v1614
      %1709 = vmatprep.subr.bf16.mxu0 %v1619
      %1710 = vmatpush1.bf16.msra.mxu0 %v1618
      %1711 = vmatprep.subr.bf16.mxu0 %v1623
      %1712 = vmatpush1.bf16.msra.mxu0 %v1622
      %1713 = vmatprep.subr.bf16.mxu0 %v1627
      %1714 = vmatpush1.bf16.msra.mxu0 %v1626
      %1715 = vmatprep.subr.bf16.mxu0 %v1631
      %1716 = vmatpush1.bf16.msra.mxu0 %v1630
      %1717 = vmatprep.subr.bf16.mxu0 %v1635
      %1718 = vmatpush1.bf16.msra.mxu0 %v1634
      %1719 = vmatprep.subr.bf16.mxu0 0
      %1720 = vmatpush1.bf16.msra.mxu0 0
      %1721 = vmatprep.subr.bf16.mxu0 0
      %1722 = vmatpush1.bf16.msra.mxu0 0
      %1723 = vmatprep.mubr.bf16.mxu0 %v1648
      %1724 = vmatmul.mubr.bf16.gmra.mrb[0].mxu0 %v1643
      %v1725 = vpop.f32.mrb[0].mxu0
      %v1726 = vadd.f32 0.0, %v1725
      %v1727 = vpop.f32.mrb[0].mxu0
      %v1728 = vadd.f32 0.0, %v1727
      %v1729 = vpop.f32.mrb[0].mxu0
      %v1730 = vpop.f32.mrb[0].mxu0
      %1731 = vdwg.mxu0
      %vm1732 = vcmask 1043456
      %v1733 = vsel %vm1732, %v1685, 0.0
      %v1734 = vsel %vm1732, %v1687, 0.0
      %v1735 = vadd.f32 %v1733, %v1734
      %v1736 = vsel %vm1732, %v1726, 0.0
      %v1737 = vadd.f32 %v1735, %v1736
      %v1738 = vsel %vm1732, %v1728, 0.0
      %v1739 = vadd.f32 %v1737, %v1738
      %1740 = vadd.xlane.f32.xlu0 %v1739
      %v1741 = vpop.xlane.xlu0 %1740
      %v1742 = vmul.f32 %v1741, %v517
      %v1743 = vsub.f32 %v1685, %v1742
      %v1744 = vsub.f32 %v1687, %v1742
      %v1745 = vsub.f32 %v1726, %v1742
      %v1746 = vsub.f32 %v1728, %v1742
      %v1747 = vmul.f32 %v1743, %v1743
      %v1748 = vmul.f32 %v1744, %v1744
      %v1749 = vmul.f32 %v1745, %v1745
      %v1750 = vmul.f32 %v1746, %v1746
      %v1751 = vsel %vm1732, %v1747, 0.0
      %v1752 = vsel %vm1732, %v1748, 0.0
      %v1753 = vadd.f32 %v1751, %v1752
      %v1754 = vsel %vm1732, %v1749, 0.0
      %v1755 = vadd.f32 %v1753, %v1754
      %v1756 = vsel %vm1732, %v1750, 0.0
      %v1757 = vadd.f32 %v1755, %v1756
      %1758 = vadd.xlane.f32.xlu0 %v1757
      %v1759 = vpop.xlane.xlu0 %1758
      %v1760 = vmul.f32 %v1759, %v517
      %v1761 = vadd.f32 %v1760, 1e-05
      %v1762 = vrsqrt.pop %v1761
      %v1763 = vmul.f32 %v1743, %v1762
      %v1764 = vmul.f32 %v1744, %v1762
      %v1765 = vmul.f32 %v1745, %v1762
      %v1766 = vmul.f32 %v1746, %v1762
      %v1767 = vmax.f32 %v1763, 0.0
      %v1768 = vmax.f32 %v1764, 0.0
      %v1769 = vmax.f32 %v1765, 0.0
      %v1770 = vmax.f32 %v1766, 0.0
      %v1775 = vrot.slane %v1767, 4
      %v1776 = vrot.slane %v1768, 4
      %v1777 = vrot.slane %v1769, 4
      %v1778 = vrot.slane %v1770, 4
      %1783 = vst [vmem:[#allocation2] sm:$0xf0] %v1775
      %1784 = vst [vmem:[#allocation2 + $0x8] sm:$0xf0] %v1776
      %1785 = vst [vmem:[#allocation2 + $0x10] sm:$0xf0] %v1777
      %1786 = vst [vmem:[#allocation2 + $0x18] sm:$0xf0] %v1778
      %1787 = vst [vmem:[%s386 + $0x20] sm:$0xf0] %v1775
      %1788 = vst [vmem:[%s386 + $0x28] sm:$0xf0] %v1776
      %1789 = vst [vmem:[%s386 + $0x30] sm:$0xf0] %v1777
      %1790 = vst [vmem:[%s386 + $0x38] sm:$0xf0] %v1778
      %v1791 = vld [vmem:[#allocation2] sm:$0xff]
      %v1792 = vld [vmem:[#allocation2 + $0x8] sm:$0xff]
      %v1793 = vld [vmem:[#allocation2 + $0x10] sm:$0xff]
      %v1794 = vld [vmem:[#allocation2 + $0x18] sm:$0xff]
      %v1795 = vpack.c.bf16 %v1791, %v1791
      %v1796 = vpack.c.bf16 %v1792, %v1792
      %v1797 = vpack.c.bf16 %v1793, %v1793
      %v1798 = vpack.c.bf16 %v1794, %v1794
      %v1799 = vld [vmem:[%s2] sm:$0xf]
      %vm1800 = vcmask 64512
      %v1802 = vsel %vm1800, %v1799, 0
      %v1805 = vsel %vm1732, %v1795, 0
      %v1808 = vsel %vm1732, %v1796, 0
      %v1811 = vsel %vm1732, %v1797, 0
      %v1814 = vsel %vm1732, %v1798, 0
      %1816 = vmatprep.subr.bf16.mxu0 %v1808
      %1817 = vmatpush1.bf16.msra.mxu0 %v1805
      %1818 = vmatprep.subr.bf16.mxu0 0
      %1819 = vmatpush1.bf16.msra.mxu0 0
      %1820 = vmatprep.subr.bf16.mxu0 0
      %1821 = vmatpush1.bf16.msra.mxu0 0
      %1822 = vmatprep.subr.bf16.mxu0 0
      %1823 = vmatpush1.bf16.msra.mxu0 0
      %1824 = vmatprep.subr.bf16.mxu0 0
      %1825 = vmatpush1.bf16.msra.mxu0 0
      %1826 = vmatprep.subr.bf16.mxu0 0
      %1827 = vmatpush1.bf16.msra.mxu0 0
      %1828 = vmatprep.subr.bf16.mxu0 0
      %1829 = vmatpush1.bf16.msra.mxu0 0
      %1830 = vmatprep.subr.bf16.mxu0 0
      %1831 = vmatpush1.bf16.msra.mxu0 0
      %1832 = vmatprep.subr.bf16.mxu0 0
      %1833 = vmatpush1.bf16.msra.mxu0 0
      %1834 = vmatprep.subr.bf16.mxu0 0
      %1835 = vmatpush1.bf16.msra.mxu0 0
      %1836 = vmatprep.subr.bf16.mxu0 0
      %1837 = vmatpush1.bf16.msra.mxu0 0
      %1838 = vmatprep.subr.bf16.mxu0 0
      %1839 = vmatpush1.bf16.msra.mxu0 0
      %1840 = vmatprep.subr.bf16.mxu0 0
      %1841 = vmatpush1.bf16.msra.mxu0 0
      %1842 = vmatprep.subr.bf16.mxu0 0
      %1843 = vmatpush1.bf16.msra.mxu0 0
      %1844 = vmatprep.subr.bf16.mxu0 0
      %1845 = vmatpush1.bf16.msra.mxu0 0
      %1846 = vmatprep.subr.bf16.mxu0 0
      %1847 = vmatpush1.bf16.msra.mxu0 0
      %1848 = vmatprep.mubr.bf16.mxu0 0
      %1849 = vmatmul.mubr.bf16.gmra.mrb[0].mxu0 %v1802
      %v1850 = vpop.f32.mrb[0].mxu0
      %v1851 = vadd.f32 0.0, %v1850
      %v1852 = vpop.f32.mrb[0].mxu0
      %v1853 = vadd.f32 0.0, %v1852
      %v1854 = vpop.f32.mrb[0].mxu0
      %v1855 = vpop.f32.mrb[0].mxu0
      %1856 = vdwg.mxu0
      %1857 = vmatprep.subr.bf16.mxu0 %v1814
      %1858 = vmatpush1.bf16.msra.mxu0 %v1811
      %1859 = vmatprep.subr.bf16.mxu0 0
      %1860 = vmatpush1.bf16.msra.mxu0 0
      %1861 = vmatprep.subr.bf16.mxu0 0
      %1862 = vmatpush1.bf16.msra.mxu0 0
      %1863 = vmatprep.subr.bf16.mxu0 0
      %1864 = vmatpush1.bf16.msra.mxu0 0
      %1865 = vmatprep.subr.bf16.mxu0 0
      %1866 = vmatpush1.bf16.msra.mxu0 0
      %1867 = vmatprep.subr.bf16.mxu0 0
      %1868 = vmatpush1.bf16.msra.mxu0 0
      %1869 = vmatprep.subr.bf16.mxu0 0
      %1870 = vmatpush1.bf16.msra.mxu0 0
      %1871 = vmatprep.subr.bf16.mxu0 0
      %1872 = vmatpush1.bf16.msra.mxu0 0
      %1873 = vmatprep.subr.bf16.mxu0 0
      %1874 = vmatpush1.bf16.msra.mxu0 0
      %1875 = vmatprep.subr.bf16.mxu0 0
      %1876 = vmatpush1.bf16.msra.mxu0 0
      %1877 = vmatprep.subr.bf16.mxu0 0
      %1878 = vmatpush1.bf16.msra.mxu0 0
      %1879 = vmatprep.subr.bf16.mxu0 0
      %1880 = vmatpush1.bf16.msra.mxu0 0
      %1881 = vmatprep.subr.bf16.mxu0 0
      %1882 = vmatpush1.bf16.msra.mxu0 0
      %1883 = vmatprep.subr.bf16.mxu0 0
      %1884 = vmatpush1.bf16.msra.mxu0 0
      %1885 = vmatprep.subr.bf16.mxu0 0
      %1886 = vmatpush1.bf16.msra.mxu0 0
      %1887 = vmatprep.subr.bf16.mxu0 0
      %1888 = vmatpush1.bf16.msra.mxu0 0
      %1889 = vmatprep.mubr.bf16.mxu0 0
      %1890 = vmatmul.mubr.bf16.gmra.mrb[0].mxu0 %v1802
      %v1891 = vpop.f32.mrb[0].mxu0
      %v1892 = vadd.f32 0.0, %v1891
      %v1893 = vpop.f32.mrb[0].mxu0
      %v1894 = vadd.f32 0.0, %v1893
      %v1895 = vpop.f32.mrb[0].mxu0
      %v1896 = vpop.f32.mrb[0].mxu0
      %1897 = vdwg.mxu0
      %v1898 = vadd.f32 %v1851, %v1853
      %v1899 = vadd.f32 %v1898, %v1892
      %v1900 = vadd.f32 %v1899, %v1894
      %1901 = vadd.xlane.f32.xlu0 %v1900
      %v1902 = vpop.xlane.xlu0 %1901
      %v1903 = vmul.f32 %v1902, %v517
      %v1904 = vsub.f32 %v1851, %v1903
      %v1905 = vsub.f32 %v1853, %v1903
      %v1906 = vsub.f32 %v1892, %v1903
      %v1907 = vsub.f32 %v1894, %v1903
      %v1908 = vmul.f32 %v1904, %v1904
      %v1909 = vmul.f32 %v1905, %v1905
      %v1910 = vmul.f32 %v1906, %v1906
      %v1911 = vmul.f32 %v1907, %v1907
      %v1912 = vadd.f32 %v1908, %v1909
      %v1913 = vadd.f32 %v1912, %v1910
      %v1914 = vadd.f32 %v1913, %v1911
      %1915 = vadd.xlane.f32.xlu0 %v1914
      %v1916 = vpop.xlane.xlu0 %1915
      %v1917 = vmul.f32 %v1916, %v517
      %v1918 = vadd.f32 %v1917, 1e-05
      %v1919 = vrsqrt.pop %v1918
      %v1920 = vmul.f32 %v1904, %v1919
      %v1921 = vmul.f32 %v1905, %v1919
      %v1922 = vmul.f32 %v1906, %v1919
      %v1923 = vmul.f32 %v1907, %v1919
      %v1924 = vmax.f32 %v1920, 0.0
      %v1925 = vmax.f32 %v1921, 0.0
      %v1926 = vmax.f32 %v1922, 0.0
      %v1927 = vmax.f32 %v1923, 0.0
      %1928 = vrot.lane.b32.xlu0 %v1924, 54
      %v1929 = vpop.permute.xlu0 %1928
      %1930 = vrot.lane.b32.xlu0 %v1925, 54
      %v1931 = vpop.permute.xlu0 %1930
      %1932 = vrot.lane.b32.xlu0 %v1926, 54
      %v1933 = vpop.permute.xlu0 %1932
      %1934 = vrot.lane.b32.xlu0 %v1927, 54
      %v1935 = vpop.permute.xlu0 %1934
      %vm1936 = vcmp.lt.s32.totalorder %v552, 54
      %v1937 = vsel %vm1936, %v1933, %v1935
      %v1938 = vsel %vm1936, %v1931, %v1933
      %v1939 = vsel %vm1936, %v1929, %v1931
      %v1940 = vsel %vm1936, %v1935, %v1929
      %v1941 = vld [vmem:[%s10] ss:$8 sm:$0xf]
      %v1943 = vlaneseq
      %v1944 = vshrl.u32 %v1943, 7
      %v1945 = vsub.s32 0, %v1944
      %v1946 = vrot.slane %v1941, %v1945
      %v1947 = vlaneseq
      %v1948 = vshrl.u32 %v1947, 7
      %v1949 = vsub.s32 1, %v1948
      %v1950 = vrot.slane %v1941, %v1949
      %v1951 = vlaneseq
      %v1952 = vshrl.u32 %v1951, 7
      %v1953 = vsub.s32 2, %v1952
      %v1954 = vrot.slane %v1941, %v1953
      %v1955 = vlaneseq
      %v1956 = vshrl.u32 %v1955, 7
      %v1957 = vsub.s32 3, %v1956
      %v1958 = vrot.slane %v1941, %v1957
      %v1963 = vmul.f32 %v1939, %v1946
      %v1964 = vmul.f32 %v1938, %v1950
      %v1965 = vmul.f32 %v1937, %v1954
      %v1966 = vmul.f32 %v1940, %v1958
      %1967 = vrot.lane.b32.xlu0 %v1924, 48
      %v1968 = vpop.permute.xlu0 %1967
      %1969 = vrot.lane.b32.xlu0 %v1925, 48
      %v1970 = vpop.permute.xlu0 %1969
      %1971 = vrot.lane.b32.xlu0 %v1926, 48
      %v1972 = vpop.permute.xlu0 %1971
      %1973 = vrot.lane.b32.xlu0 %v1927, 48
      %v1974 = vpop.permute.xlu0 %1973
      %vm1975 = vcmp.lt.s32.totalorder %v552, 48
      %v1976 = vsel %vm1975, %v1972, %v1974
      %v1977 = vsel %vm1975, %v1970, %v1972
      %v1978 = vsel %vm1975, %v1968, %v1970
      %v1979 = vsel %vm1975, %v1974, %v1968
      %s1980 = scalar_lea.vmem %s10, 1
      %v1981 = vld [vmem:[%s1980] ss:$8 sm:$0xf]
      %v1983 = vlaneseq
      %v1984 = vshrl.u32 %v1983, 7
      %v1985 = vsub.s32 0, %v1984
      %v1986 = vrot.slane %v1981, %v1985
      %v1987 = vlaneseq
      %v1988 = vshrl.u32 %v1987, 7
      %v1989 = vsub.s32 1, %v1988
      %v1990 = vrot.slane %v1981, %v1989
      %v1991 = vlaneseq
      %v1992 = vshrl.u32 %v1991, 7
      %v1993 = vsub.s32 2, %v1992
      %v1994 = vrot.slane %v1981, %v1993
      %v1995 = vlaneseq
      %v1996 = vshrl.u32 %v1995, 7
      %v1997 = vsub.s32 3, %v1996
      %v1998 = vrot.slane %v1981, %v1997
      %v2003 = vmul.f32 %v1978, %v1986
      %v2004 = vmul.f32 %v1977, %v1990
      %v2005 = vmul.f32 %v1976, %v1994
      %v2006 = vmul.f32 %v1979, %v1998
      %v2007 = vpack.c.bf16 %v2003, %v1963
      %v2008 = vpack.c.bf16 %v2004, %v1964
      %v2009 = vpack.c.bf16 %v2005, %v1965
      %v2010 = vpack.c.bf16 %v2006, %v1966
      %2011 = vst [vmem:[#allocation3] sm:$0xff] %v2007
      %2012 = vst [vmem:[#allocation3 + $0x8] sm:$0xff] %v2008
      %2013 = vst [vmem:[#allocation3 + $0x10] sm:$0xff] %v2009
      %2014 = vst [vmem:[#allocation3 + $0x18] sm:$0xff] %v2010
      %2015 = vrot.lane.b32.xlu0 %v1924, 42
      %v2016 = vpop.permute.xlu0 %2015
      %2017 = vrot.lane.b32.xlu0 %v1925, 42
      %v2018 = vpop.permute.xlu0 %2017
      %2019 = vrot.lane.b32.xlu0 %v1926, 42
      %v2020 = vpop.permute.xlu0 %2019
      %2021 = vrot.lane.b32.xlu0 %v1927, 42
      %v2022 = vpop.permute.xlu0 %2021
      %vm2023 = vcmp.lt.s32.totalorder %v552, 42
      %v2024 = vsel %vm2023, %v2020, %v2022
      %v2025 = vsel %vm2023, %v2018, %v2020
      %v2026 = vsel %vm2023, %v2016, %v2018
      %v2027 = vsel %vm2023, %v2022, %v2016
      %s2028 = scalar_lea.vmem %s10, 2
      %v2029 = vld [vmem:[%s2028] ss:$8 sm:$0xf]
      %v2031 = vlaneseq
      %v2032 = vshrl.u32 %v2031, 7
      %v2033 = vsub.s32 0, %v2032
      %v2034 = vrot.slane %v2029, %v2033
      %v2035 = vlaneseq
      %v2036 = vshrl.u32 %v2035, 7
      %v2037 = vsub.s32 1, %v2036
      %v2038 = vrot.slane %v2029, %v2037
      %v2039 = vlaneseq
      %v2040 = vshrl.u32 %v2039, 7
      %v2041 = vsub.s32 2, %v2040
      %v2042 = vrot.slane %v2029, %v2041
      %v2043 = vlaneseq
      %v2044 = vshrl.u32 %v2043, 7
      %v2045 = vsub.s32 3, %v2044
      %v2046 = vrot.slane %v2029, %v2045
      %v2051 = vmul.f32 %v2026, %v2034
      %v2052 = vmul.f32 %v2025, %v2038
      %v2053 = vmul.f32 %v2024, %v2042
      %v2054 = vmul.f32 %v2027, %v2046
      %2055 = vrot.lane.b32.xlu0 %v1924, 6
      %v2056 = vpop.permute.xlu0 %2055
      %2057 = vrot.lane.b32.xlu0 %v1925, 6
      %v2058 = vpop.permute.xlu0 %2057
      %2059 = vrot.lane.b32.xlu0 %v1926, 6
      %v2060 = vpop.permute.xlu0 %2059
      %2061 = vrot.lane.b32.xlu0 %v1927, 6
      %v2062 = vpop.permute.xlu0 %2061
      %vm2063 = vcmp.lt.s32.totalorder %v552, 6
      %v2064 = vsel %vm2063, %v2060, %v2062
      %v2065 = vsel %vm2063, %v2058, %v2060
      %v2066 = vsel %vm2063, %v2056, %v2058
      %v2067 = vsel %vm2063, %v2062, %v2056
      %s2068 = scalar_lea.vmem %s10, 3
      %v2069 = vld [vmem:[%s2068] ss:$8 sm:$0xf]
      %v2071 = vlaneseq
      %v2072 = vshrl.u32 %v2071, 7
      %v2073 = vsub.s32 0, %v2072
      %v2074 = vrot.slane %v2069, %v2073
      %v2075 = vlaneseq
      %v2076 = vshrl.u32 %v2075, 7
      %v2077 = vsub.s32 1, %v2076
      %v2078 = vrot.slane %v2069, %v2077
      %v2079 = vlaneseq
      %v2080 = vshrl.u32 %v2079, 7
      %v2081 = vsub.s32 2, %v2080
      %v2082 = vrot.slane %v2069, %v2081
      %v2083 = vlaneseq
      %v2084 = vshrl.u32 %v2083, 7
      %v2085 = vsub.s32 3, %v2084
      %v2086 = vrot.slane %v2069, %v2085
      %v2091 = vmul.f32 %v2066, %v2074
      %v2092 = vmul.f32 %v2065, %v2078
      %v2093 = vmul.f32 %v2064, %v2082
      %v2094 = vmul.f32 %v2067, %v2086
      %v2095 = vpack.c.bf16 %v2091, %v2051
      %v2096 = vpack.c.bf16 %v2092, %v2052
      %v2097 = vpack.c.bf16 %v2093, %v2053
      %v2098 = vpack.c.bf16 %v2094, %v2054
      %2099 = vst [vmem:[#allocation3 + $0x20] sm:$0xff] %v2095
      %2100 = vst [vmem:[#allocation3 + $0x28] sm:$0xff] %v2096
      %2101 = vst [vmem:[#allocation3 + $0x30] sm:$0xff] %v2097
      %2102 = vst [vmem:[#allocation3 + $0x38] sm:$0xff] %v2098
      %s2103 = scalar_lea.vmem %s10, 4
      %v2104 = vld [vmem:[%s2103] ss:$8 sm:$0xf]
      %v2106 = vlaneseq
      %v2107 = vshrl.u32 %v2106, 7
      %v2108 = vsub.s32 0, %v2107
      %v2109 = vrot.slane %v2104, %v2108
      %v2110 = vlaneseq
      %v2111 = vshrl.u32 %v2110, 7
      %v2112 = vsub.s32 1, %v2111
      %v2113 = vrot.slane %v2104, %v2112
      %v2114 = vlaneseq
      %v2115 = vshrl.u32 %v2114, 7
      %v2116 = vsub.s32 2, %v2115
      %v2117 = vrot.slane %v2104, %v2116
      %v2118 = vlaneseq
      %v2119 = vshrl.u32 %v2118, 7
      %v2120 = vsub.s32 3, %v2119
      %v2121 = vrot.slane %v2104, %v2120
      %v2126 = vmul.f32 %v1925, %v2109
      %v2127 = vmul.f32 %v1926, %v2113
      %v2128 = vmul.f32 %v1927, %v2117
      %v2129 = vmul.f32 %v1924, %v2121
      %2130 = vrot.lane.b32.xlu0 %v1924, 122
      %v2131 = vpop.permute.xlu0 %2130
      %2132 = vrot.lane.b32.xlu0 %v1925, 122
      %v2133 = vpop.permute.xlu0 %2132
      %2134 = vrot.lane.b32.xlu0 %v1926, 122
      %v2135 = vpop.permute.xlu0 %2134
      %2136 = vrot.lane.b32.xlu0 %v1927, 122
      %v2137 = vpop.permute.xlu0 %2136
      %vm2138 = vcmp.lt.s32.totalorder %v552, 122
      %v2139 = vsel %vm2138, %v2135, %v2137
      %v2140 = vsel %vm2138, %v2133, %v2135
      %v2141 = vsel %vm2138, %v2131, %v2133
      %v2142 = vsel %vm2138, %v2137, %v2131
      %s2143 = scalar_lea.vmem %s10, 5
      %v2144 = vld [vmem:[%s2143] ss:$8 sm:$0xf]
      %v2146 = vlaneseq
      %v2147 = vshrl.u32 %v2146, 7
      %v2148 = vsub.s32 0, %v2147
      %v2149 = vrot.slane %v2144, %v2148
      %v2150 = vlaneseq
      %v2151 = vshrl.u32 %v2150, 7
      %v2152 = vsub.s32 1, %v2151
      %v2153 = vrot.slane %v2144, %v2152
      %v2154 = vlaneseq
      %v2155 = vshrl.u32 %v2154, 7
      %v2156 = vsub.s32 2, %v2155
      %v2157 = vrot.slane %v2144, %v2156
      %v2158 = vlaneseq
      %v2159 = vshrl.u32 %v2158, 7
      %v2160 = vsub.s32 3, %v2159
      %v2161 = vrot.slane %v2144, %v2160
      %v2166 = vmul.f32 %v2140, %v2149
      %v2167 = vmul.f32 %v2139, %v2153
      %v2168 = vmul.f32 %v2142, %v2157
      %v2169 = vmul.f32 %v2141, %v2161
      %v2170 = vpack.c.bf16 %v2166, %v2126
      %v2171 = vpack.c.bf16 %v2167, %v2127
      %v2172 = vpack.c.bf16 %v2168, %v2128
      %v2173 = vpack.c.bf16 %v2169, %v2129
      %2174 = vst [vmem:[#allocation3 + $0x40] sm:$0xff] %v2170
      %2175 = vst [vmem:[#allocation3 + $0x48] sm:$0xff] %v2171
      %2176 = vst [vmem:[#allocation3 + $0x50] sm:$0xff] %v2172
      %2177 = vst [vmem:[#allocation3 + $0x58] sm:$0xff] %v2173
      %2178 = vrot.lane.b32.xlu0 %v1924, 86
      %v2179 = vpop.permute.xlu0 %2178
      %2180 = vrot.lane.b32.xlu0 %v1925, 86
      %v2181 = vpop.permute.xlu0 %2180
      %2182 = vrot.lane.b32.xlu0 %v1926, 86
      %v2183 = vpop.permute.xlu0 %2182
      %2184 = vrot.lane.b32.xlu0 %v1927, 86
      %v2185 = vpop.permute.xlu0 %2184
      %vm2186 = vcmp.lt.s32.totalorder %v552, 86
      %v2187 = vsel %vm2186, %v2183, %v2185
      %v2188 = vsel %vm2186, %v2181, %v2183
      %v2189 = vsel %vm2186, %v2179, %v2181
      %v2190 = vsel %vm2186, %v2185, %v2179
      %s2191 = scalar_lea.vmem %s10, 6
      %v2192 = vld [vmem:[%s2191] ss:$8 sm:$0xf]
      %v2194 = vlaneseq
      %v2195 = vshrl.u32 %v2194, 7
      %v2196 = vsub.s32 0, %v2195
      %v2197 = vrot.slane %v2192, %v2196
      %v2198 = vlaneseq
      %v2199 = vshrl.u32 %v2198, 7
      %v2200 = vsub.s32 1, %v2199
      %v2201 = vrot.slane %v2192, %v2200
      %v2202 = vlaneseq
      %v2203 = vshrl.u32 %v2202, 7
      %v2204 = vsub.s32 2, %v2203
      %v2205 = vrot.slane %v2192, %v2204
      %v2206 = vlaneseq
      %v2207 = vshrl.u32 %v2206, 7
      %v2208 = vsub.s32 3, %v2207
      %v2209 = vrot.slane %v2192, %v2208
      %v2214 = vmul.f32 %v2188, %v2197
      %v2215 = vmul.f32 %v2187, %v2201
      %v2216 = vmul.f32 %v2190, %v2205
      %v2217 = vmul.f32 %v2189, %v2209
      %2218 = vrot.lane.b32.xlu0 %v1924, 80
      %v2219 = vpop.permute.xlu0 %2218
      %2220 = vrot.lane.b32.xlu0 %v1925, 80
      %v2221 = vpop.permute.xlu0 %2220
      %2222 = vrot.lane.b32.xlu0 %v1926, 80
      %v2223 = vpop.permute.xlu0 %2222
      %2224 = vrot.lane.b32.xlu0 %v1927, 80
      %v2225 = vpop.permute.xlu0 %2224
      %vm2226 = vcmp.lt.s32.totalorder %v552, 80
      %v2227 = vsel %vm2226, %v2223, %v2225
      %v2228 = vsel %vm2226, %v2221, %v2223
      %v2229 = vsel %vm2226, %v2219, %v2221
      %v2230 = vsel %vm2226, %v2225, %v2219
      %s2231 = scalar_lea.vmem %s10, 7
      %v2232 = vld [vmem:[%s2231] ss:$8 sm:$0xf]
      %v2234 = vlaneseq
      %v2235 = vshrl.u32 %v2234, 7
      %v2236 = vsub.s32 0, %v2235
      %v2237 = vrot.slane %v2232, %v2236
      %v2238 = vlaneseq
      %v2239 = vshrl.u32 %v2238, 7
      %v2240 = vsub.s32 1, %v2239
      %v2241 = vrot.slane %v2232, %v2240
      %v2242 = vlaneseq
      %v2243 = vshrl.u32 %v2242, 7
      %v2244 = vsub.s32 2, %v2243
      %v2245 = vrot.slane %v2232, %v2244
      %v2246 = vlaneseq
      %v2247 = vshrl.u32 %v2246, 7
      %v2248 = vsub.s32 3, %v2247
      %v2249 = vrot.slane %v2232, %v2248
      %v2254 = vmul.f32 %v2228, %v2237
      %v2255 = vmul.f32 %v2227, %v2241
      %v2256 = vmul.f32 %v2230, %v2245
      %v2257 = vmul.f32 %v2229, %v2249
      %v2258 = vpack.c.bf16 %v2254, %v2214
      %v2259 = vpack.c.bf16 %v2255, %v2215
      %v2260 = vpack.c.bf16 %v2256, %v2216
      %v2261 = vpack.c.bf16 %v2257, %v2217
      %2262 = vst [vmem:[#allocation3 + $0x60] sm:$0xff] %v2258
      %2263 = vst [vmem:[#allocation3 + $0x68] sm:$0xff] %v2259
      %2264 = vst [vmem:[#allocation3 + $0x70] sm:$0xff] %v2260
      %2265 = vst [vmem:[#allocation3 + $0x78] sm:$0xff] %v2261
      %2266 = vrot.lane.b32.xlu0 %v1924, 74
      %v2267 = vpop.permute.xlu0 %2266
      %2268 = vrot.lane.b32.xlu0 %v1925, 74
      %v2269 = vpop.permute.xlu0 %2268
      %2270 = vrot.lane.b32.xlu0 %v1926, 74
      %v2271 = vpop.permute.xlu0 %2270
      %2272 = vrot.lane.b32.xlu0 %v1927, 74
      %v2273 = vpop.permute.xlu0 %2272
      %vm2274 = vcmp.lt.s32.totalorder %v552, 74
      %v2275 = vsel %vm2274, %v2271, %v2273
      %v2276 = vsel %vm2274, %v2269, %v2271
      %v2277 = vsel %vm2274, %v2267, %v2269
      %v2278 = vsel %vm2274, %v2273, %v2267
      %s2279 = scalar_lea.vmem %s10, 32
      %v2280 = vld [vmem:[%s2279] ss:$8 sm:$0xf]
      %v2282 = vlaneseq
      %v2283 = vshrl.u32 %v2282, 7
      %v2284 = vsub.s32 0, %v2283
      %v2285 = vrot.slane %v2280, %v2284
      %v2286 = vlaneseq
      %v2287 = vshrl.u32 %v2286, 7
      %v2288 = vsub.s32 1, %v2287
      %v2289 = vrot.slane %v2280, %v2288
      %v2290 = vlaneseq
      %v2291 = vshrl.u32 %v2290, 7
      %v2292 = vsub.s32 2, %v2291
      %v2293 = vrot.slane %v2280, %v2292
      %v2294 = vlaneseq
      %v2295 = vshrl.u32 %v2294, 7
      %v2296 = vsub.s32 3, %v2295
      %v2297 = vrot.slane %v2280, %v2296
      %v2302 = vmul.f32 %v2276, %v2285
      %v2303 = vmul.f32 %v2275, %v2289
      %v2304 = vmul.f32 %v2278, %v2293
      %v2305 = vmul.f32 %v2277, %v2297
      %s2306 = scalar_lea.vmem %s10, 33
      %v2307 = vld [vmem:[%s2306] ss:$8 sm:$0xf]
      %v2309 = vlaneseq
      %v2310 = vshrl.u32 %v2309, 7
      %v2311 = vsub.s32 0, %v2310
      %v2312 = vrot.slane %v2307, %v2311
      %v2313 = vlaneseq
      %v2314 = vshrl.u32 %v2313, 7
      %v2315 = vsub.s32 1, %v2314
      %v2316 = vrot.slane %v2307, %v2315
      %v2317 = vlaneseq
      %v2318 = vshrl.u32 %v2317, 7
      %v2319 = vsub.s32 2, %v2318
      %v2320 = vrot.slane %v2307, %v2319
      %v2321 = vlaneseq
      %v2322 = vshrl.u32 %v2321, 7
      %v2323 = vsub.s32 3, %v2322
      %v2324 = vrot.slane %v2307, %v2323
      %v2329 = vmul.f32 %v1940, %v2312
      %v2330 = vmul.f32 %v1939, %v2316
      %v2331 = vmul.f32 %v1938, %v2320
      %v2332 = vmul.f32 %v1937, %v2324
      %v2333 = vpack.c.bf16 %v2329, %v2302
      %v2334 = vpack.c.bf16 %v2330, %v2303
      %v2335 = vpack.c.bf16 %v2331, %v2304
      %v2336 = vpack.c.bf16 %v2332, %v2305
      %2337 = vst [vmem:[#allocation3 + $0x80] sm:$0xff] %v2333
      %2338 = vst [vmem:[#allocation3 + $0x88] sm:$0xff] %v2334
      %2339 = vst [vmem:[#allocation3 + $0x90] sm:$0xff] %v2335
      %2340 = vst [vmem:[#allocation3 + $0x98] sm:$0xff] %v2336
      %s2341 = scalar_lea.vmem %s10, 34
      %v2342 = vld [vmem:[%s2341] ss:$8 sm:$0xf]
      %v2344 = vlaneseq
      %v2345 = vshrl.u32 %v2344, 7
      %v2346 = vsub.s32 0, %v2345
      %v2347 = vrot.slane %v2342, %v2346
      %v2348 = vlaneseq
      %v2349 = vshrl.u32 %v2348, 7
      %v2350 = vsub.s32 1, %v2349
      %v2351 = vrot.slane %v2342, %v2350
      %v2352 = vlaneseq
      %v2353 = vshrl.u32 %v2352, 7
      %v2354 = vsub.s32 2, %v2353
      %v2355 = vrot.slane %v2342, %v2354
      %v2356 = vlaneseq
      %v2357 = vshrl.u32 %v2356, 7
      %v2358 = vsub.s32 3, %v2357
      %v2359 = vrot.slane %v2342, %v2358
      %v2364 = vmul.f32 %v1979, %v2347
      %v2365 = vmul.f32 %v1978, %v2351
      %v2366 = vmul.f32 %v1977, %v2355
      %v2367 = vmul.f32 %v1976, %v2359
      %s2368 = scalar_lea.vmem %s10, 35
      %v2369 = vld [vmem:[%s2368] ss:$8 sm:$0xf]
      %v2371 = vlaneseq
      %v2372 = vshrl.u32 %v2371, 7
      %v2373 = vsub.s32 0, %v2372
      %v2374 = vrot.slane %v2369, %v2373
      %v2375 = vlaneseq
      %v2376 = vshrl.u32 %v2375, 7
      %v2377 = vsub.s32 1, %v2376
      %v2378 = vrot.slane %v2369, %v2377
      %v2379 = vlaneseq
      %v2380 = vshrl.u32 %v2379, 7
      %v2381 = vsub.s32 2, %v2380
      %v2382 = vrot.slane %v2369, %v2381
      %v2383 = vlaneseq
      %v2384 = vshrl.u32 %v2383, 7
      %v2385 = vsub.s32 3, %v2384
      %v2386 = vrot.slane %v2369, %v2385
      %v2391 = vmul.f32 %v2027, %v2374
      %v2392 = vmul.f32 %v2026, %v2378
      %v2393 = vmul.f32 %v2025, %v2382
      %v2394 = vmul.f32 %v2024, %v2386
      %v2395 = vpack.c.bf16 %v2391, %v2364
      %v2396 = vpack.c.bf16 %v2392, %v2365
      %v2397 = vpack.c.bf16 %v2393, %v2366
      %v2398 = vpack.c.bf16 %v2394, %v2367
      %2399 = vst [vmem:[#allocation3 + $0xa0] sm:$0xff] %v2395
      %2400 = vst [vmem:[#allocation3 + $0xa8] sm:$0xff] %v2396
      %2401 = vst [vmem:[#allocation3 + $0xb0] sm:$0xff] %v2397
      %2402 = vst [vmem:[#allocation3 + $0xb8] sm:$0xff] %v2398
      %s2403 = scalar_lea.vmem %s10, 36
      %v2404 = vld [vmem:[%s2403] ss:$8 sm:$0xf]
      %v2406 = vlaneseq
      %v2407 = vshrl.u32 %v2406, 7
      %v2408 = vsub.s32 0, %v2407
      %v2409 = vrot.slane %v2404, %v2408
      %v2410 = vlaneseq
      %v2411 = vshrl.u32 %v2410, 7
      %v2412 = vsub.s32 1, %v2411
      %v2413 = vrot.slane %v2404, %v2412
      %v2414 = vlaneseq
      %v2415 = vshrl.u32 %v2414, 7
      %v2416 = vsub.s32 2, %v2415
      %v2417 = vrot.slane %v2404, %v2416
      %v2418 = vlaneseq
      %v2419 = vshrl.u32 %v2418, 7
      %v2420 = vsub.s32 3, %v2419
      %v2421 = vrot.slane %v2404, %v2420
      %v2426 = vmul.f32 %v2067, %v2409
      %v2427 = vmul.f32 %v2066, %v2413
      %v2428 = vmul.f32 %v2065, %v2417
      %v2429 = vmul.f32 %v2064, %v2421
      %v2430 = vpack.c.bf16 %v1924, %v2426
      %v2431 = vpack.c.bf16 %v1925, %v2427
      %v2432 = vpack.c.bf16 %v1926, %v2428
      %v2433 = vpack.c.bf16 %v1927, %v2429
      %2434 = vst [vmem:[#allocation3 + $0xc0] sm:$0xff] %v2430
      %2435 = vst [vmem:[#allocation3 + $0xc8] sm:$0xff] %v2431
      %2436 = vst [vmem:[#allocation3 + $0xd0] sm:$0xff] %v2432
      %2437 = vst [vmem:[#allocation3 + $0xd8] sm:$0xff] %v2433
      %s2438 = scalar_lea.vmem %s10, 38
      %v2439 = vld [vmem:[%s2438] ss:$8 sm:$0xf]
      %v2441 = vlaneseq
      %v2442 = vshrl.u32 %v2441, 7
      %v2443 = vsub.s32 0, %v2442
      %v2444 = vrot.slane %v2439, %v2443
      %v2445 = vlaneseq
      %v2446 = vshrl.u32 %v2445, 7
      %v2447 = vsub.s32 1, %v2446
      %v2448 = vrot.slane %v2439, %v2447
      %v2449 = vlaneseq
      %v2450 = vshrl.u32 %v2449, 7
      %v2451 = vsub.s32 2, %v2450
      %v2452 = vrot.slane %v2439, %v2451
      %v2453 = vlaneseq
      %v2454 = vshrl.u32 %v2453, 7
      %v2455 = vsub.s32 3, %v2454
      %v2456 = vrot.slane %v2439, %v2455
      %v2461 = vmul.f32 %v2141, %v2444
      %v2462 = vmul.f32 %v2140, %v2448
      %v2463 = vmul.f32 %v2139, %v2452
      %v2464 = vmul.f32 %v2142, %v2456
      %s2465 = scalar_lea.vmem %s10, 39
      %v2466 = vld [vmem:[%s2465] ss:$8 sm:$0xf]
      %v2468 = vlaneseq
      %v2469 = vshrl.u32 %v2468, 7
      %v2470 = vsub.s32 0, %v2469
      %v2471 = vrot.slane %v2466, %v2470
      %v2472 = vlaneseq
      %v2473 = vshrl.u32 %v2472, 7
      %v2474 = vsub.s32 1, %v2473
      %v2475 = vrot.slane %v2466, %v2474
      %v2476 = vlaneseq
      %v2477 = vshrl.u32 %v2476, 7
      %v2478 = vsub.s32 2, %v2477
      %v2479 = vrot.slane %v2466, %v2478
      %v2480 = vlaneseq
      %v2481 = vshrl.u32 %v2480, 7
      %v2482 = vsub.s32 3, %v2481
      %v2483 = vrot.slane %v2466, %v2482
      %v2488 = vmul.f32 %v2189, %v2471
      %v2489 = vmul.f32 %v2188, %v2475
      %v2490 = vmul.f32 %v2187, %v2479
      %v2491 = vmul.f32 %v2190, %v2483
      %v2492 = vpack.c.bf16 %v2488, %v2461
      %v2493 = vpack.c.bf16 %v2489, %v2462
      %v2494 = vpack.c.bf16 %v2490, %v2463
      %v2495 = vpack.c.bf16 %v2491, %v2464
      %2496 = vst [vmem:[#allocation3 + $0xe0] sm:$0xff] %v2492
      %2497 = vst [vmem:[#allocation3 + $0xe8] sm:$0xff] %v2493
      %2498 = vst [vmem:[#allocation3 + $0xf0] sm:$0xff] %v2494
      %2499 = vst [vmem:[#allocation3 + $0xf8] sm:$0xff] %v2495
      %s2500 = scalar_lea.vmem %s10, 64
      %v2501 = vld [vmem:[%s2500] ss:$8 sm:$0xf]
      %v2503 = vlaneseq
      %v2504 = vshrl.u32 %v2503, 7
      %v2505 = vsub.s32 0, %v2504
      %v2506 = vrot.slane %v2501, %v2505
      %v2507 = vlaneseq
      %v2508 = vshrl.u32 %v2507, 7
      %v2509 = vsub.s32 1, %v2508
      %v2510 = vrot.slane %v2501, %v2509
      %v2511 = vlaneseq
      %v2512 = vshrl.u32 %v2511, 7
      %v2513 = vsub.s32 2, %v2512
      %v2514 = vrot.slane %v2501, %v2513
      %v2515 = vlaneseq
      %v2516 = vshrl.u32 %v2515, 7
      %v2517 = vsub.s32 3, %v2516
      %v2518 = vrot.slane %v2501, %v2517
      %v2523 = vmul.f32 %v2229, %v2506
      %v2524 = vmul.f32 %v2228, %v2510
      %v2525 = vmul.f32 %v2227, %v2514
      %v2526 = vmul.f32 %v2230, %v2518
      %s2527 = scalar_lea.vmem %s10, 65
      %v2528 = vld [vmem:[%s2527] ss:$8 sm:$0xf]
      %v2530 = vlaneseq
      %v2531 = vshrl.u32 %v2530, 7
      %v2532 = vsub.s32 0, %v2531
      %v2533 = vrot.slane %v2528, %v2532
      %v2534 = vlaneseq
      %v2535 = vshrl.u32 %v2534, 7
      %v2536 = vsub.s32 1, %v2535
      %v2537 = vrot.slane %v2528, %v2536
      %v2538 = vlaneseq
      %v2539 = vshrl.u32 %v2538, 7
      %v2540 = vsub.s32 2, %v2539
      %v2541 = vrot.slane %v2528, %v2540
      %v2542 = vlaneseq
      %v2543 = vshrl.u32 %v2542, 7
      %v2544 = vsub.s32 3, %v2543
      %v2545 = vrot.slane %v2528, %v2544
      %v2550 = vmul.f32 %v2277, %v2533
      %v2551 = vmul.f32 %v2276, %v2537
      %v2552 = vmul.f32 %v2275, %v2541
      %v2553 = vmul.f32 %v2278, %v2545
      %v2554 = vpack.c.bf16 %v2550, %v2523
      %v2555 = vpack.c.bf16 %v2551, %v2524
      %v2556 = vpack.c.bf16 %v2552, %v2525
      %v2557 = vpack.c.bf16 %v2553, %v2526
      %2558 = vst [vmem:[#allocation3 + $0x100] sm:$0xff] %v2554
      %2559 = vst [vmem:[#allocation3 + $0x108] sm:$0xff] %v2555
      %2560 = vst [vmem:[#allocation3 + $0x110] sm:$0xff] %v2556
      %2561 = vst [vmem:[#allocation3 + $0x118] sm:$0xff] %v2557
      %s2562 = scalar_lea.vmem %s10, 66
      %v2563 = vld [vmem:[%s2562] ss:$8 sm:$0xf]
      %v2565 = vlaneseq
      %v2566 = vshrl.u32 %v2565, 7
      %v2567 = vsub.s32 0, %v2566
      %v2568 = vrot.slane %v2563, %v2567
      %v2569 = vlaneseq
      %v2570 = vshrl.u32 %v2569, 7
      %v2571 = vsub.s32 1, %v2570
      %v2572 = vrot.slane %v2563, %v2571
      %v2573 = vlaneseq
      %v2574 = vshrl.u32 %v2573, 7
      %v2575 = vsub.s32 2, %v2574
      %v2576 = vrot.slane %v2563, %v2575
      %v2577 = vlaneseq
      %v2578 = vshrl.u32 %v2577, 7
      %v2579 = vsub.s32 3, %v2578
      %v2580 = vrot.slane %v2563, %v2579
      %v2585 = vmul.f32 %v1937, %v2568
      %v2586 = vmul.f32 %v1940, %v2572
      %v2587 = vmul.f32 %v1939, %v2576
      %v2588 = vmul.f32 %v1938, %v2580
      %s2589 = scalar_lea.vmem %s10, 67
      %v2590 = vld [vmem:[%s2589] ss:$8 sm:$0xf]
      %v2592 = vlaneseq
      %v2593 = vshrl.u32 %v2592, 7
      %v2594 = vsub.s32 0, %v2593
      %v2595 = vrot.slane %v2590, %v2594
      %v2596 = vlaneseq
      %v2597 = vshrl.u32 %v2596, 7
      %v2598 = vsub.s32 1, %v2597
      %v2599 = vrot.slane %v2590, %v2598
      %v2600 = vlaneseq
      %v2601 = vshrl.u32 %v2600, 7
      %v2602 = vsub.s32 2, %v2601
      %v2603 = vrot.slane %v2590, %v2602
      %v2604 = vlaneseq
      %v2605 = vshrl.u32 %v2604, 7
      %v2606 = vsub.s32 3, %v2605
      %v2607 = vrot.slane %v2590, %v2606
      %v2612 = vmul.f32 %v1976, %v2595
      %v2613 = vmul.f32 %v1979, %v2599
      %v2614 = vmul.f32 %v1978, %v2603
      %v2615 = vmul.f32 %v1977, %v2607
      %v2616 = vpack.c.bf16 %v2612, %v2585
      %v2617 = vpack.c.bf16 %v2613, %v2586
      %v2618 = vpack.c.bf16 %v2614, %v2587
      %v2619 = vpack.c.bf16 %v2615, %v2588
      %2620 = vst [vmem:[#allocation3 + $0x120] sm:$0xff] %v2616
      %2621 = vst [vmem:[#allocation3 + $0x128] sm:$0xff] %v2617
      %2622 = vst [vmem:[#allocation3 + $0x130] sm:$0xff] %v2618
      %2623 = vst [vmem:[#allocation3 + $0x138] sm:$0xff] %v2619
      %s2624 = scalar_lea.vmem %s10, 68
      %v2625 = vld [vmem:[%s2624] ss:$8 sm:$0xf]
      %v2627 = vlaneseq
      %v2628 = vshrl.u32 %v2627, 7
      %v2629 = vsub.s32 0, %v2628
      %v2630 = vrot.slane %v2625, %v2629
      %v2631 = vlaneseq
      %v2632 = vshrl.u32 %v2631, 7
      %v2633 = vsub.s32 1, %v2632
      %v2634 = vrot.slane %v2625, %v2633
      %v2635 = vlaneseq
      %v2636 = vshrl.u32 %v2635, 7
      %v2637 = vsub.s32 2, %v2636
      %v2638 = vrot.slane %v2625, %v2637
      %v2639 = vlaneseq
      %v2640 = vshrl.u32 %v2639, 7
      %v2641 = vsub.s32 3, %v2640
      %v2642 = vrot.slane %v2625, %v2641
      %v2647 = vmul.f32 %v2024, %v2630
      %v2648 = vmul.f32 %v2027, %v2634
      %v2649 = vmul.f32 %v2026, %v2638
      %v2650 = vmul.f32 %v2025, %v2642
      %s2651 = scalar_lea.vmem %s10, 69
      %v2652 = vld [vmem:[%s2651] ss:$8 sm:$0xf]
      %v2654 = vlaneseq
      %v2655 = vshrl.u32 %v2654, 7
      %v2656 = vsub.s32 0, %v2655
      %v2657 = vrot.slane %v2652, %v2656
      %v2658 = vlaneseq
      %v2659 = vshrl.u32 %v2658, 7
      %v2660 = vsub.s32 1, %v2659
      %v2661 = vrot.slane %v2652, %v2660
      %v2662 = vlaneseq
      %v2663 = vshrl.u32 %v2662, 7
      %v2664 = vsub.s32 2, %v2663
      %v2665 = vrot.slane %v2652, %v2664
      %v2666 = vlaneseq
      %v2667 = vshrl.u32 %v2666, 7
      %v2668 = vsub.s32 3, %v2667
      %v2669 = vrot.slane %v2652, %v2668
      %v2674 = vmul.f32 %v2064, %v2657
      %v2675 = vmul.f32 %v2067, %v2661
      %v2676 = vmul.f32 %v2066, %v2665
      %v2677 = vmul.f32 %v2065, %v2669
      %v2678 = vpack.c.bf16 %v2674, %v2647
      %v2679 = vpack.c.bf16 %v2675, %v2648
      %v2680 = vpack.c.bf16 %v2676, %v2649
      %v2681 = vpack.c.bf16 %v2677, %v2650
      %2682 = vst [vmem:[#allocation3 + $0x140] sm:$0xff] %v2678
      %2683 = vst [vmem:[#allocation3 + $0x148] sm:$0xff] %v2679
      %2684 = vst [vmem:[#allocation3 + $0x150] sm:$0xff] %v2680
      %2685 = vst [vmem:[#allocation3 + $0x158] sm:$0xff] %v2681
      %s2686 = scalar_lea.vmem %s10, 70
      %v2687 = vld [vmem:[%s2686] ss:$8 sm:$0xf]
      %v2689 = vlaneseq
      %v2690 = vshrl.u32 %v2689, 7
      %v2691 = vsub.s32 0, %v2690
      %v2692 = vrot.slane %v2687, %v2691
      %v2693 = vlaneseq
      %v2694 = vshrl.u32 %v2693, 7
      %v2695 = vsub.s32 1, %v2694
      %v2696 = vrot.slane %v2687, %v2695
      %v2697 = vlaneseq
      %v2698 = vshrl.u32 %v2697, 7
      %v2699 = vsub.s32 2, %v2698
      %v2700 = vrot.slane %v2687, %v2699
      %v2701 = vlaneseq
      %v2702 = vshrl.u32 %v2701, 7
      %v2703 = vsub.s32 3, %v2702
      %v2704 = vrot.slane %v2687, %v2703
      %v2709 = vmul.f32 %v1927, %v2692
      %v2710 = vmul.f32 %v1924, %v2696
      %v2711 = vmul.f32 %v1925, %v2700
      %v2712 = vmul.f32 %v1926, %v2704
      %s2713 = scalar_lea.vmem %s10, 71
      %v2714 = vld [vmem:[%s2713] ss:$8 sm:$0xf]
      %v2716 = vlaneseq
      %v2717 = vshrl.u32 %v2716, 7
      %v2718 = vsub.s32 0, %v2717
      %v2719 = vrot.slane %v2714, %v2718
      %v2720 = vlaneseq
      %v2721 = vshrl.u32 %v2720, 7
      %v2722 = vsub.s32 1, %v2721
      %v2723 = vrot.slane %v2714, %v2722
      %v2724 = vlaneseq
      %v2725 = vshrl.u32 %v2724, 7
      %v2726 = vsub.s32 2, %v2725
      %v2727 = vrot.slane %v2714, %v2726
      %v2728 = vlaneseq
      %v2729 = vshrl.u32 %v2728, 7
      %v2730 = vsub.s32 3, %v2729
      %v2731 = vrot.slane %v2714, %v2730
      %v2736 = vmul.f32 %v2142, %v2719
      %v2737 = vmul.f32 %v2141, %v2723
      %v2738 = vmul.f32 %v2140, %v2727
      %v2739 = vmul.f32 %v2139, %v2731
      %v2740 = vpack.c.bf16 %v2736, %v2709
      %v2741 = vpack.c.bf16 %v2737, %v2710
      %v2742 = vpack.c.bf16 %v2738, %v2711
      %v2743 = vpack.c.bf16 %v2739, %v2712
      %2744 = vst [vmem:[#allocation3 + $0x160] sm:$0xff] %v2740
      %2745 = vst [vmem:[#allocation3 + $0x168] sm:$0xff] %v2741
      %2746 = vst [vmem:[#allocation3 + $0x170] sm:$0xff] %v2742
      %2747 = vst [vmem:[#allocation3 + $0x178] sm:$0xff] %v2743
      %s2748 = scalar_lea.vmem %s10, 96
      %v2749 = vld [vmem:[%s2748] ss:$8 sm:$0xf]
      %v2751 = vlaneseq
      %v2752 = vshrl.u32 %v2751, 7
      %v2753 = vsub.s32 0, %v2752
      %v2754 = vrot.slane %v2749, %v2753
      %v2755 = vlaneseq
      %v2756 = vshrl.u32 %v2755, 7
      %v2757 = vsub.s32 1, %v2756
      %v2758 = vrot.slane %v2749, %v2757
      %v2759 = vlaneseq
      %v2760 = vshrl.u32 %v2759, 7
      %v2761 = vsub.s32 2, %v2760
      %v2762 = vrot.slane %v2749, %v2761
      %v2763 = vlaneseq
      %v2764 = vshrl.u32 %v2763, 7
      %v2765 = vsub.s32 3, %v2764
      %v2766 = vrot.slane %v2749, %v2765
      %v2771 = vmul.f32 %v2190, %v2754
      %v2772 = vmul.f32 %v2189, %v2758
      %v2773 = vmul.f32 %v2188, %v2762
      %v2774 = vmul.f32 %v2187, %v2766
      %s2775 = scalar_lea.vmem %s10, 97
      %v2776 = vld [vmem:[%s2775] ss:$8 sm:$0xf]
      %v2778 = vlaneseq
      %v2779 = vshrl.u32 %v2778, 7
      %v2780 = vsub.s32 0, %v2779
      %v2781 = vrot.slane %v2776, %v2780
      %v2782 = vlaneseq
      %v2783 = vshrl.u32 %v2782, 7
      %v2784 = vsub.s32 1, %v2783
      %v2785 = vrot.slane %v2776, %v2784
      %v2786 = vlaneseq
      %v2787 = vshrl.u32 %v2786, 7
      %v2788 = vsub.s32 2, %v2787
      %v2789 = vrot.slane %v2776, %v2788
      %v2790 = vlaneseq
      %v2791 = vshrl.u32 %v2790, 7
      %v2792 = vsub.s32 3, %v2791
      %v2793 = vrot.slane %v2776, %v2792
      %v2798 = vmul.f32 %v2230, %v2781
      %v2799 = vmul.f32 %v2229, %v2785
      %v2800 = vmul.f32 %v2228, %v2789
      %v2801 = vmul.f32 %v2227, %v2793
      %v2802 = vpack.c.bf16 %v2798, %v2771
      %v2803 = vpack.c.bf16 %v2799, %v2772
      %v2804 = vpack.c.bf16 %v2800, %v2773
      %v2805 = vpack.c.bf16 %v2801, %v2774
      %2806 = vst [vmem:[#allocation3 + $0x180] sm:$0xff] %v2802
      %2807 = vst [vmem:[#allocation3 + $0x188] sm:$0xff] %v2803
      %2808 = vst [vmem:[#allocation3 + $0x190] sm:$0xff] %v2804
      %2809 = vst [vmem:[#allocation3 + $0x198] sm:$0xff] %v2805
      %s2810 = scalar_lea.vmem %s10, 98
      %v2811 = vld [vmem:[%s2810] ss:$8 sm:$0xf]
      %v2813 = vlaneseq
      %v2814 = vshrl.u32 %v2813, 7
      %v2815 = vsub.s32 0, %v2814
      %v2816 = vrot.slane %v2811, %v2815
      %v2817 = vlaneseq
      %v2818 = vshrl.u32 %v2817, 7
      %v2819 = vsub.s32 1, %v2818
      %v2820 = vrot.slane %v2811, %v2819
      %v2821 = vlaneseq
      %v2822 = vshrl.u32 %v2821, 7
      %v2823 = vsub.s32 2, %v2822
      %v2824 = vrot.slane %v2811, %v2823
      %v2825 = vlaneseq
      %v2826 = vshrl.u32 %v2825, 7
      %v2827 = vsub.s32 3, %v2826
      %v2828 = vrot.slane %v2811, %v2827
      %v2833 = vmul.f32 %v2278, %v2816
      %v2834 = vmul.f32 %v2277, %v2820
      %v2835 = vmul.f32 %v2276, %v2824
      %v2836 = vmul.f32 %v2275, %v2828
      %v2837 = vpack.c.bf16 0.0, %v2833
      %v2838 = vpack.c.bf16 0.0, %v2834
      %v2839 = vpack.c.bf16 0.0, %v2835
      %v2840 = vpack.c.bf16 0.0, %v2836
      %2841 = vst [vmem:[#allocation3 + $0x1a0] sm:$0xff] %v2837
      %2842 = vst [vmem:[#allocation3 + $0x1a8] sm:$0xff] %v2838
      %2843 = vst [vmem:[#allocation3 + $0x1b0] sm:$0xff] %v2839
      %2844 = vst [vmem:[#allocation3 + $0x1b8] sm:$0xff] %v2840
      %v2845 = vld [vmem:[%s6] sm:$0xf]
      %v2846 = vld [vmem:[#allocation3] sm:$0xff]
      %v2847 = vld [vmem:[#allocation3 + $0x8] sm:$0xff]
      %v2848 = vld [vmem:[#allocation3 + $0x10] sm:$0xff]
      %v2849 = vld [vmem:[#allocation3 + $0x18] sm:$0xff]
      %v2850 = vld [vmem:[#allocation3 + $0x20] sm:$0xff]
      %v2851 = vld [vmem:[#allocation3 + $0x28] sm:$0xff]
      %v2852 = vld [vmem:[#allocation3 + $0x30] sm:$0xff]
      %v2853 = vld [vmem:[#allocation3 + $0x38] sm:$0xff]
      %v2854 = vld [vmem:[#allocation3 + $0x40] sm:$0xff]
      %v2855 = vld [vmem:[#allocation3 + $0x48] sm:$0xff]
      %v2856 = vld [vmem:[#allocation3 + $0x50] sm:$0xff]
      %v2857 = vld [vmem:[#allocation3 + $0x58] sm:$0xff]
      %v2858 = vld [vmem:[#allocation3 + $0x60] sm:$0xff]
      %v2859 = vld [vmem:[#allocation3 + $0x68] sm:$0xff]
      %v2860 = vld [vmem:[#allocation3 + $0x70] sm:$0xff]
      %v2861 = vld [vmem:[#allocation3 + $0x78] sm:$0xff]
      %v2862 = vld [vmem:[#allocation3 + $0x80] sm:$0xff]
      %v2863 = vld [vmem:[#allocation3 + $0x88] sm:$0xff]
      %v2864 = vld [vmem:[#allocation3 + $0x90] sm:$0xff]
      %v2865 = vld [vmem:[#allocation3 + $0x98] sm:$0xff]
      %v2866 = vld [vmem:[#allocation3 + $0xa0] sm:$0xff]
      %v2867 = vld [vmem:[#allocation3 + $0xa8] sm:$0xff]
      %v2868 = vld [vmem:[#allocation3 + $0xb0] sm:$0xff]
      %v2869 = vld [vmem:[#allocation3 + $0xb8] sm:$0xff]
      %v2870 = vld [vmem:[#allocation3 + $0xc0] sm:$0xff]
      %v2871 = vld [vmem:[#allocation3 + $0xc8] sm:$0xff]
      %v2872 = vld [vmem:[#allocation3 + $0xd0] sm:$0xff]
      %v2873 = vld [vmem:[#allocation3 + $0xd8] sm:$0xff]
      %v2874 = vld [vmem:[#allocation3 + $0xe0] sm:$0xff]
      %v2875 = vld [vmem:[#allocation3 + $0xe8] sm:$0xff]
      %v2876 = vld [vmem:[#allocation3 + $0xf0] sm:$0xff]
      %v2877 = vld [vmem:[#allocation3 + $0xf8] sm:$0xff]
      %v2878 = vld [vmem:[#allocation3 + $0x100] sm:$0xff]
      %v2879 = vld [vmem:[#allocation3 + $0x108] sm:$0xff]
      %v2880 = vld [vmem:[#allocation3 + $0x110] sm:$0xff]
      %v2881 = vld [vmem:[#allocation3 + $0x118] sm:$0xff]
      %v2882 = vld [vmem:[#allocation3 + $0x120] sm:$0xff]
      %v2883 = vld [vmem:[#allocation3 + $0x128] sm:$0xff]
      %v2884 = vld [vmem:[#allocation3 + $0x130] sm:$0xff]
      %v2885 = vld [vmem:[#allocation3 + $0x138] sm:$0xff]
      %v2886 = vld [vmem:[#allocation3 + $0x140] sm:$0xff]
      %v2887 = vld [vmem:[#allocation3 + $0x148] sm:$0xff]
      %v2888 = vld [vmem:[#allocation3 + $0x150] sm:$0xff]
      %v2889 = vld [vmem:[#allocation3 + $0x158] sm:$0xff]
      %v2890 = vld [vmem:[#allocation3 + $0x160] sm:$0xff]
      %v2891 = vld [vmem:[#allocation3 + $0x168] sm:$0xff]
      %v2892 = vld [vmem:[#allocation3 + $0x170] sm:$0xff]
      %v2893 = vld [vmem:[#allocation3 + $0x178] sm:$0xff]
      %v2894 = vld [vmem:[#allocation3 + $0x180] sm:$0xff]
      %v2895 = vld [vmem:[#allocation3 + $0x188] sm:$0xff]
      %v2896 = vld [vmem:[#allocation3 + $0x190] sm:$0xff]
      %v2897 = vld [vmem:[#allocation3 + $0x198] sm:$0xff]
      %v2898 = vld [vmem:[#allocation3 + $0x1a0] sm:$0xff]
      %v2899 = vld [vmem:[#allocation3 + $0x1a8] sm:$0xff]
      %v2900 = vld [vmem:[#allocation3 + $0x1b0] sm:$0xff]
      %v2901 = vld [vmem:[#allocation3 + $0x1b8] sm:$0xff]
      %v2904 = vunpack.c.l.s4 1983009808
      %v2905 = vunpack.c.0.s8 %v2904
      %v2906 = vlaneseq
      %v2907 = vshrl.u32 %v2906, 7
      %v2908 = vsub.s32 %v2905, %v2907
      %v2909 = vrot.slane %v2845, %v2908
      %v2910 = vcombine.high %v2909, %v2909
      %v2913 = vsel %vm1646, %v2910, 0
      %2915 = vmatprep.subr.bf16.mxu0 %v2847
      %2916 = vmatpush1.bf16.msra.mxu0 %v2846
      %2917 = vmatprep.subr.bf16.mxu0 %v2851
      %2918 = vmatpush1.bf16.msra.mxu0 %v2850
      %2919 = vmatprep.subr.bf16.mxu0 %v2855
      %2920 = vmatpush1.bf16.msra.mxu0 %v2854
      %2921 = vmatprep.subr.bf16.mxu0 %v2859
      %2922 = vmatpush1.bf16.msra.mxu0 %v2858
      %2923 = vmatprep.subr.bf16.mxu0 %v2863
      %2924 = vmatpush1.bf16.msra.mxu0 %v2862
      %2925 = vmatprep.subr.bf16.mxu0 %v2867
      %2926 = vmatpush1.bf16.msra.mxu0 %v2866
      %2927 = vmatprep.subr.bf16.mxu0 %v2871
      %2928 = vmatpush1.bf16.msra.mxu0 %v2870
      %2929 = vmatprep.subr.bf16.mxu0 %v2875
      %2930 = vmatpush1.bf16.msra.mxu0 %v2874
      %2931 = vmatprep.subr.bf16.mxu0 %v2879
      %2932 = vmatpush1.bf16.msra.mxu0 %v2878
      %2933 = vmatprep.subr.bf16.mxu0 %v2883
      %2934 = vmatpush1.bf16.msra.mxu0 %v2882
      %2935 = vmatprep.subr.bf16.mxu0 %v2887
      %2936 = vmatpush1.bf16.msra.mxu0 %v2886
      %2937 = vmatprep.subr.bf16.mxu0 %v2891
      %2938 = vmatpush1.bf16.msra.mxu0 %v2890
      %2939 = vmatprep.subr.bf16.mxu0 %v2895
      %2940 = vmatpush1.bf16.msra.mxu0 %v2894
      %2941 = vmatprep.subr.bf16.mxu0 %v2899
      %2942 = vmatpush1.bf16.msra.mxu0 %v2898
      %2943 = vmatprep.subr.bf16.mxu0 0
      %2944 = vmatpush1.bf16.msra.mxu0 0
      %2945 = vmatprep.subr.bf16.mxu0 0
      %2946 = vmatpush1.bf16.msra.mxu0 0
      %2947 = vmatprep.mubr.bf16.mxu0 %v2913
      %2948 = vmatmul.mubr.bf16.gmra.mrb[0].mxu0 %v2909
      %v2949 = vpop.f32.mrb[0].mxu0
      %v2950 = vadd.f32 0.0, %v2949
      %v2951 = vpop.f32.mrb[0].mxu0
      %v2952 = vadd.f32 0.0, %v2951
      %v2953 = vpop.f32.mrb[0].mxu0
      %v2954 = vpop.f32.mrb[0].mxu0
      %2955 = vdwg.mxu0
      %2956 = vmatprep.subr.bf16.mxu0 %v2849
      %2957 = vmatpush1.bf16.msra.mxu0 %v2848
      %2958 = vmatprep.subr.bf16.mxu0 %v2853
      %2959 = vmatpush1.bf16.msra.mxu0 %v2852
      %2960 = vmatprep.subr.bf16.mxu0 %v2857
      %2961 = vmatpush1.bf16.msra.mxu0 %v2856
      %2962 = vmatprep.subr.bf16.mxu0 %v2861
      %2963 = vmatpush1.bf16.msra.mxu0 %v2860
      %2964 = vmatprep.subr.bf16.mxu0 %v2865
      %2965 = vmatpush1.bf16.msra.mxu0 %v2864
      %2966 = vmatprep.subr.bf16.mxu0 %v2869
      %2967 = vmatpush1.bf16.msra.mxu0 %v2868
      %2968 = vmatprep.subr.bf16.mxu0 %v2873
      %2969 = vmatpush1.bf16.msra.mxu0 %v2872
      %2970 = vmatprep.subr.bf16.mxu0 %v2877
      %2971 = vmatpush1.bf16.msra.mxu0 %v2876
      %2972 = vmatprep.subr.bf16.mxu0 %v2881
      %2973 = vmatpush1.bf16.msra.mxu0 %v2880
      %2974 = vmatprep.subr.bf16.mxu0 %v2885
      %2975 = vmatpush1.bf16.msra.mxu0 %v2884
      %2976 = vmatprep.subr.bf16.mxu0 %v2889
      %2977 = vmatpush1.bf16.msra.mxu0 %v2888
      %2978 = vmatprep.subr.bf16.mxu0 %v2893
      %2979 = vmatpush1.bf16.msra.mxu0 %v2892
      %2980 = vmatprep.subr.bf16.mxu0 %v2897
      %2981 = vmatpush1.bf16.msra.mxu0 %v2896
      %2982 = vmatprep.subr.bf16.mxu0 %v2901
      %2983 = vmatpush1.bf16.msra.mxu0 %v2900
      %2984 = vmatprep.subr.bf16.mxu0 0
      %2985 = vmatpush1.bf16.msra.mxu0 0
      %2986 = vmatprep.subr.bf16.mxu0 0
      %2987 = vmatpush1.bf16.msra.mxu0 0
      %2988 = vmatprep.mubr.bf16.mxu0 %v2913
      %2989 = vmatmul.mubr.bf16.gmra.mrb[0].mxu0 %v2909
      %v2990 = vpop.f32.mrb[0].mxu0
      %v2991 = vadd.f32 0.0, %v2990
      %v2992 = vpop.f32.mrb[0].mxu0
      %v2993 = vadd.f32 0.0, %v2992
      %v2994 = vpop.f32.mrb[0].mxu0
      %v2995 = vpop.f32.mrb[0].mxu0
      %2996 = vdwg.mxu0
      %v2997 = vsel %vm1732, %v2950, 0.0
      %v2998 = vsel %vm1732, %v2952, 0.0
      %v2999 = vadd.f32 %v2997, %v2998
      %v3000 = vsel %vm1732, %v2991, 0.0
      %v3001 = vadd.f32 %v2999, %v3000
      %v3002 = vsel %vm1732, %v2993, 0.0
      %v3003 = vadd.f32 %v3001, %v3002
      %3004 = vadd.xlane.f32.xlu0 %v3003
      %v3005 = vpop.xlane.xlu0 %3004
      %v3006 = vmul.f32 %v3005, %v517
      %v3007 = vsub.f32 %v2950, %v3006
      %v3008 = vsub.f32 %v2952, %v3006
      %v3009 = vsub.f32 %v2991, %v3006
      %v3010 = vsub.f32 %v2993, %v3006
      %v3011 = vmul.f32 %v3007, %v3007
      %v3012 = vmul.f32 %v3008, %v3008
      %v3013 = vmul.f32 %v3009, %v3009
      %v3014 = vmul.f32 %v3010, %v3010
      %v3015 = vsel %vm1732, %v3011, 0.0
      %v3016 = vsel %vm1732, %v3012, 0.0
      %v3017 = vadd.f32 %v3015, %v3016
      %v3018 = vsel %vm1732, %v3013, 0.0
      %v3019 = vadd.f32 %v3017, %v3018
      %v3020 = vsel %vm1732, %v3014, 0.0
      %v3021 = vadd.f32 %v3019, %v3020
      %3022 = vadd.xlane.f32.xlu0 %v3021
      %v3023 = vpop.xlane.xlu0 %3022
      %v3024 = vmul.f32 %v3023, %v517
      %v3025 = vadd.f32 %v3024, 1e-05
      %v3026 = vrsqrt.pop %v3025
      %v3027 = vmul.f32 %v3007, %v3026
      %v3028 = vmul.f32 %v3008, %v3026
      %v3029 = vmul.f32 %v3009, %v3026
      %v3030 = vmul.f32 %v3010, %v3026
      %v3031 = vmax.f32 %v3027, 0.0
      %v3032 = vmax.f32 %v3028, 0.0
      %v3033 = vmax.f32 %v3029, 0.0
      %v3034 = vmax.f32 %v3030, 0.0
      %3035 = vst [vmem:[#allocation2 + $0x20] sm:$0xf] %v3031
      %3036 = vst [vmem:[#allocation2 + $0x28] sm:$0xf] %v3032
      %3037 = vst [vmem:[#allocation2 + $0x30] sm:$0xf] %v3033
      %3038 = vst [vmem:[#allocation2 + $0x38] sm:$0xf] %v3034
      %3039 = vst [vmem:[%s386 + $0x20] sm:$0xf] %v3031
      %3040 = vst [vmem:[%s386 + $0x28] sm:$0xf] %v3032
      %3041 = vst [vmem:[%s386 + $0x30] sm:$0xf] %v3033
      %3042 = vst [vmem:[%s386 + $0x38] sm:$0xf] %v3034
      %v3043 = vld [vmem:[#allocation2] sm:$0xff]
      %v3044 = vld [vmem:[#allocation2 + $0x8] sm:$0xff]
      %v3045 = vld [vmem:[#allocation2 + $0x10] sm:$0xff]
      %v3046 = vld [vmem:[#allocation2 + $0x18] sm:$0xff]
      %v3047 = vld [vmem:[#allocation2 + $0x20] sm:$0xf]
      %v3048 = vld [vmem:[#allocation2 + $0x28] sm:$0xf]
      %v3049 = vld [vmem:[#allocation2 + $0x30] sm:$0xf]
      %v3050 = vld [vmem:[#allocation2 + $0x38] sm:$0xf]
      %v3051 = vpack.c.bf16 %v3047, %v3043
      %v3052 = vpack.c.bf16 %v3048, %v3044
      %v3053 = vpack.c.bf16 %v3049, %v3045
      %v3054 = vpack.c.bf16 %v3050, %v3046
      %v3055 = vld [vmem:[%s3] sm:$0xf]
      %vm3056 = vcmask 97280
      %v3058 = vsel %vm3056, %v3055, 0
      %vm3060 = vcmask 1045504
      %v3062 = vsel %vm3060, %v3051, 0
      %v3065 = vsel %vm3060, %v3052, 0
      %v3068 = vsel %vm3060, %v3053, 0
      %v3071 = vsel %vm3060, %v3054, 0
      %3073 = vmatprep.subr.bf16.mxu0 %v3065
      %3074 = vmatpush1.bf16.msra.mxu0 %v3062
      %3075 = vmatprep.subr.bf16.mxu0 0
      %3076 = vmatpush1.bf16.msra.mxu0 0
      %3077 = vmatprep.subr.bf16.mxu0 0
      %3078 = vmatpush1.bf16.msra.mxu0 0
      %3079 = vmatprep.subr.bf16.mxu0 0
      %3080 = vmatpush1.bf16.msra.mxu0 0
      %3081 = vmatprep.subr.bf16.mxu0 0
      %3082 = vmatpush1.bf16.msra.mxu0 0
      %3083 = vmatprep.subr.bf16.mxu0 0
      %3084 = vmatpush1.bf16.msra.mxu0 0
      %3085 = vmatprep.subr.bf16.mxu0 0
      %3086 = vmatpush1.bf16.msra.mxu0 0
      %3087 = vmatprep.subr.bf16.mxu0 0
      %3088 = vmatpush1.bf16.msra.mxu0 0
      %3089 = vmatprep.subr.bf16.mxu0 0
      %3090 = vmatpush1.bf16.msra.mxu0 0
      %3091 = vmatprep.subr.bf16.mxu0 0
      %3092 = vmatpush1.bf16.msra.mxu0 0
      %3093 = vmatprep.subr.bf16.mxu0 0
      %3094 = vmatpush1.bf16.msra.mxu0 0
      %3095 = vmatprep.subr.bf16.mxu0 0
      %3096 = vmatpush1.bf16.msra.mxu0 0
      %3097 = vmatprep.subr.bf16.mxu0 0
      %3098 = vmatpush1.bf16.msra.mxu0 0
      %3099 = vmatprep.subr.bf16.mxu0 0
      %3100 = vmatpush1.bf16.msra.mxu0 0
      %3101 = vmatprep.subr.bf16.mxu0 0
      %3102 = vmatpush1.bf16.msra.mxu0 0
      %3103 = vmatprep.subr.bf16.mxu0 0
      %3104 = vmatpush1.bf16.msra.mxu0 0
      %3105 = vmatprep.mubr.bf16.mxu0 0
      %3106 = vmatmul.mubr.bf16.gmra.mrb[0].mxu0 %v3058
      %v3107 = vpop.f32.mrb[0].mxu0
      %v3108 = vadd.f32 0.0, %v3107
      %v3109 = vpop.f32.mrb[0].mxu0
      %v3110 = vadd.f32 0.0, %v3109
      %v3111 = vpop.f32.mrb[0].mxu0
      %v3112 = vpop.f32.mrb[0].mxu0
      %3113 = vdwg.mxu0
      %3114 = vmatprep.subr.bf16.mxu0 %v3071
      %3115 = vmatpush1.bf16.msra.mxu0 %v3068
      %3116 = vmatprep.subr.bf16.mxu0 0
      %3117 = vmatpush1.bf16.msra.mxu0 0
      %3118 = vmatprep.subr.bf16.mxu0 0
      %3119 = vmatpush1.bf16.msra.mxu0 0
      %3120 = vmatprep.subr.bf16.mxu0 0
      %3121 = vmatpush1.bf16.msra.mxu0 0
      %3122 = vmatprep.subr.bf16.mxu0 0
      %3123 = vmatpush1.bf16.msra.mxu0 0
      %3124 = vmatprep.subr.bf16.mxu0 0
      %3125 = vmatpush1.bf16.msra.mxu0 0
      %3126 = vmatprep.subr.bf16.mxu0 0
      %3127 = vmatpush1.bf16.msra.mxu0 0
      %3128 = vmatprep.subr.bf16.mxu0 0
      %3129 = vmatpush1.bf16.msra.mxu0 0
      %3130 = vmatprep.subr.bf16.mxu0 0
      %3131 = vmatpush1.bf16.msra.mxu0 0
      %3132 = vmatprep.subr.bf16.mxu0 0
      %3133 = vmatpush1.bf16.msra.mxu0 0
      %3134 = vmatprep.subr.bf16.mxu0 0
      %3135 = vmatpush1.bf16.msra.mxu0 0
      %3136 = vmatprep.subr.bf16.mxu0 0
      %3137 = vmatpush1.bf16.msra.mxu0 0
      %3138 = vmatprep.subr.bf16.mxu0 0
      %3139 = vmatpush1.bf16.msra.mxu0 0
      %3140 = vmatprep.subr.bf16.mxu0 0
      %3141 = vmatpush1.bf16.msra.mxu0 0
      %3142 = vmatprep.subr.bf16.mxu0 0
      %3143 = vmatpush1.bf16.msra.mxu0 0
      %3144 = vmatprep.subr.bf16.mxu0 0
      %3145 = vmatpush1.bf16.msra.mxu0 0
      %3146 = vmatprep.mubr.bf16.mxu0 0
      %3147 = vmatmul.mubr.bf16.gmra.mrb[0].mxu0 %v3058
      %v3148 = vpop.f32.mrb[0].mxu0
      %v3149 = vadd.f32 0.0, %v3148
      %v3150 = vpop.f32.mrb[0].mxu0
      %v3151 = vadd.f32 0.0, %v3150
      %v3152 = vpop.f32.mrb[0].mxu0
      %v3153 = vpop.f32.mrb[0].mxu0
      %3154 = vdwg.mxu0
      %v3155 = vadd.f32 %v3108, %v3110
      %v3156 = vadd.f32 %v3155, %v3149
      %v3157 = vadd.f32 %v3156, %v3151
      %3158 = vadd.xlane.f32.xlu0 %v3157
      %v3159 = vpop.xlane.xlu0 %3158
      %v3160 = vmul.f32 %v3159, %v517
      %v3161 = vsub.f32 %v3108, %v3160
      %v3162 = vsub.f32 %v3110, %v3160
      %v3163 = vsub.f32 %v3149, %v3160
      %v3164 = vsub.f32 %v3151, %v3160
      %v3165 = vmul.f32 %v3161, %v3161
      %v3166 = vmul.f32 %v3162, %v3162
      %v3167 = vmul.f32 %v3163, %v3163
      %v3168 = vmul.f32 %v3164, %v3164
      %v3169 = vadd.f32 %v3165, %v3166
      %v3170 = vadd.f32 %v3169, %v3167
      %v3171 = vadd.f32 %v3170, %v3168
      %3172 = vadd.xlane.f32.xlu0 %v3171
      %v3173 = vpop.xlane.xlu0 %3172
      %v3174 = vmul.f32 %v3173, %v517
      %v3175 = vadd.f32 %v3174, 1e-05
      %v3176 = vrsqrt.pop %v3175
      %v3177 = vmul.f32 %v3161, %v3176
      %v3178 = vmul.f32 %v3162, %v3176
      %v3179 = vmul.f32 %v3163, %v3176
      %v3180 = vmul.f32 %v3164, %v3176
      %v3181 = vmax.f32 %v3177, 0.0
      %v3182 = vmax.f32 %v3178, 0.0
      %v3183 = vmax.f32 %v3179, 0.0
      %v3184 = vmax.f32 %v3180, 0.0
      %v3185 = vld [vmem:[%s7] sm:$0x3]
      %v3186 = vpack.c.bf16 %v3181, %v3181
      %v3187 = vpack.c.bf16 %v3182, %v3182
      %v3188 = vpack.c.bf16 %v3183, %v3183
      %v3189 = vpack.c.bf16 %v3184, %v3184
      %v3191 = vsel %vm1800, %v3185, 0
      %v3194 = vsel %vm1732, %v3186, 0
      %v3197 = vsel %vm1732, %v3187, 0
      %v3200 = vsel %vm1732, %v3188, 0
      %v3203 = vsel %vm1732, %v3189, 0
      %3205 = vmatprep.subr.bf16.mxu0 %v3197
      %3206 = vmatpush1.bf16.msra.mxu0 %v3194
      %3207 = vmatprep.subr.bf16.mxu0 0
      %3208 = vmatpush1.bf16.msra.mxu0 0
      %3209 = vmatprep.subr.bf16.mxu0 0
      %3210 = vmatpush1.bf16.msra.mxu0 0
      %3211 = vmatprep.subr.bf16.mxu0 0
      %3212 = vmatpush1.bf16.msra.mxu0 0
      %3213 = vmatprep.subr.bf16.mxu0 0
      %3214 = vmatpush1.bf16.msra.mxu0 0
      %3215 = vmatprep.subr.bf16.mxu0 0
      %3216 = vmatpush1.bf16.msra.mxu0 0
      %3217 = vmatprep.subr.bf16.mxu0 0
      %3218 = vmatpush1.bf16.msra.mxu0 0
      %3219 = vmatprep.subr.bf16.mxu0 0
      %3220 = vmatpush1.bf16.msra.mxu0 0
      %3221 = vmatprep.subr.bf16.mxu0 0
      %3222 = vmatpush1.bf16.msra.mxu0 0
      %3223 = vmatprep.subr.bf16.mxu0 0
      %3224 = vmatpush1.bf16.msra.mxu0 0
      %3225 = vmatprep.subr.bf16.mxu0 0
      %3226 = vmatpush1.bf16.msra.mxu0 0
      %3227 = vmatprep.subr.bf16.mxu0 0
      %3228 = vmatpush1.bf16.msra.mxu0 0
      %3229 = vmatprep.subr.bf16.mxu0 0
      %3230 = vmatpush1.bf16.msra.mxu0 0
      %3231 = vmatprep.subr.bf16.mxu0 0
      %3232 = vmatpush1.bf16.msra.mxu0 0
      %3233 = vmatprep.subr.bf16.mxu0 0
      %3234 = vmatpush1.bf16.msra.mxu0 0
      %3235 = vmatprep.subr.bf16.mxu0 0
      %3236 = vmatpush1.bf16.msra.mxu0 0
      %3237 = vmatprep.mubr.bf16.mxu0 0
      %3238 = vmatmul.mubr.bf16.gmra.mrb[0].mxu0 %v3191
      %v3239 = vpop.f32.mrb[0].mxu0
      %v3240 = vadd.f32 0.0, %v3239
      %v3241 = vpop.f32.mrb[0].mxu0
      %v3242 = vadd.f32 0.0, %v3241
      %v3243 = vpop.f32.mrb[0].mxu0
      %v3244 = vpop.f32.mrb[0].mxu0
      %3245 = vdwg.mxu0
      %3246 = vmatprep.subr.bf16.mxu0 %v3203
      %3247 = vmatpush1.bf16.msra.mxu0 %v3200
      %3248 = vmatprep.subr.bf16.mxu0 0
      %3249 = vmatpush1.bf16.msra.mxu0 0
      %3250 = vmatprep.subr.bf16.mxu0 0
      %3251 = vmatpush1.bf16.msra.mxu0 0
      %3252 = vmatprep.subr.bf16.mxu0 0
      %3253 = vmatpush1.bf16.msra.mxu0 0
      %3254 = vmatprep.subr.bf16.mxu0 0
      %3255 = vmatpush1.bf16.msra.mxu0 0
      %3256 = vmatprep.subr.bf16.mxu0 0
      %3257 = vmatpush1.bf16.msra.mxu0 0
      %3258 = vmatprep.subr.bf16.mxu0 0
      %3259 = vmatpush1.bf16.msra.mxu0 0
      %3260 = vmatprep.subr.bf16.mxu0 0
      %3261 = vmatpush1.bf16.msra.mxu0 0
      %3262 = vmatprep.subr.bf16.mxu0 0
      %3263 = vmatpush1.bf16.msra.mxu0 0
      %3264 = vmatprep.subr.bf16.mxu0 0
      %3265 = vmatpush1.bf16.msra.mxu0 0
      %3266 = vmatprep.subr.bf16.mxu0 0
      %3267 = vmatpush1.bf16.msra.mxu0 0
      %3268 = vmatprep.subr.bf16.mxu0 0
      %3269 = vmatpush1.bf16.msra.mxu0 0
      %3270 = vmatprep.subr.bf16.mxu0 0
      %3271 = vmatpush1.bf16.msra.mxu0 0
      %3272 = vmatprep.subr.bf16.mxu0 0
      %3273 = vmatpush1.bf16.msra.mxu0 0
      %3274 = vmatprep.subr.bf16.mxu0 0
      %3275 = vmatpush1.bf16.msra.mxu0 0
      %3276 = vmatprep.subr.bf16.mxu0 0
      %3277 = vmatpush1.bf16.msra.mxu0 0
      %3278 = vmatprep.mubr.bf16.mxu0 0
      %3279 = vmatmul.mubr.bf16.gmra.mrb[0].mxu0 %v3191
      %v3280 = vpop.f32.mrb[0].mxu0
      %v3281 = vadd.f32 0.0, %v3280
      %v3282 = vpop.f32.mrb[0].mxu0
      %v3283 = vadd.f32 0.0, %v3282
      %v3284 = vpop.f32.mrb[0].mxu0
      %v3285 = vpop.f32.mrb[0].mxu0
      %3286 = vdwg.mxu0
      %v3287 = vsel %vm1732, %v3240, 0.0
      %v3288 = vsel %vm1732, %v3242, 0.0
      %v3289 = vadd.f32 %v3287, %v3288
      %v3290 = vsel %vm1732, %v3281, 0.0
      %v3291 = vadd.f32 %v3289, %v3290
      %v3292 = vsel %vm1732, %v3283, 0.0
      %v3293 = vadd.f32 %v3291, %v3292
      %3294 = vadd.xlane.f32.xlu0 %v3293
      %v3295 = vpop.xlane.xlu0 %3294
      %v3296 = vmul.f32 %v3295, %v517
      %v3297 = vsub.f32 %v3240, %v3296
      %v3298 = vsub.f32 %v3242, %v3296
      %v3299 = vsub.f32 %v3281, %v3296
      %v3300 = vsub.f32 %v3283, %v3296
      %v3301 = vmul.f32 %v3297, %v3297
      %v3302 = vmul.f32 %v3298, %v3298
      %v3303 = vmul.f32 %v3299, %v3299
      %v3304 = vmul.f32 %v3300, %v3300
      %v3305 = vsel %vm1732, %v3301, 0.0
      %v3306 = vsel %vm1732, %v3302, 0.0
      %v3307 = vadd.f32 %v3305, %v3306
      %v3308 = vsel %vm1732, %v3303, 0.0
      %v3309 = vadd.f32 %v3307, %v3308
      %v3310 = vsel %vm1732, %v3304, 0.0
      %v3311 = vadd.f32 %v3309, %v3310
      %3312 = vadd.xlane.f32.xlu0 %v3311
      %v3313 = vpop.xlane.xlu0 %3312
      %v3314 = vmul.f32 %v3313, %v517
      %v3315 = vadd.f32 %v3314, 1e-05
      %v3316 = vrsqrt.pop %v3315
      %v3317 = vmul.f32 %v3297, %v3316
      %v3318 = vmul.f32 %v3298, %v3316
      %v3319 = vmul.f32 %v3299, %v3316
      %v3320 = vmul.f32 %v3300, %v3316
      %v3321 = vmax.f32 %v3317, 0.0
      %v3322 = vmax.f32 %v3318, 0.0
      %v3323 = vmax.f32 %v3319, 0.0
      %v3324 = vmax.f32 %v3320, 0.0
      %v3329 = vrot.slane %v3321, 4
      %v3330 = vrot.slane %v3322, 4
      %v3331 = vrot.slane %v3323, 4
      %v3332 = vrot.slane %v3324, 4
      %3337 = vst [vmem:[#allocation2 + $0x20] sm:$0xf0] %v3329
      %3338 = vst [vmem:[#allocation2 + $0x28] sm:$0xf0] %v3330
      %3339 = vst [vmem:[#allocation2 + $0x30] sm:$0xf0] %v3331
      %3340 = vst [vmem:[#allocation2 + $0x38] sm:$0xf0] %v3332
      %3341 = vst [vmem:[%s386] sm:$0xf0] %v3329
      %3342 = vst [vmem:[%s386 + $0x8] sm:$0xf0] %v3330
      %3343 = vst [vmem:[%s386 + $0x10] sm:$0xf0] %v3331
      %3344 = vst [vmem:[%s386 + $0x18] sm:$0xf0] %v3332
      %v3345 = vld [vmem:[#allocation2] sm:$0xff]
      %v3346 = vld [vmem:[#allocation2 + $0x8] sm:$0xff]
      %v3347 = vld [vmem:[#allocation2 + $0x10] sm:$0xff]
      %v3348 = vld [vmem:[#allocation2 + $0x18] sm:$0xff]
      %v3349 = vld [vmem:[#allocation2 + $0x20] sm:$0xff]
      %v3350 = vld [vmem:[#allocation2 + $0x28] sm:$0xff]
      %v3351 = vld [vmem:[#allocation2 + $0x30] sm:$0xff]
      %v3352 = vld [vmem:[#allocation2 + $0x38] sm:$0xff]
      %v3353 = vpack.c.bf16 %v3349, %v3345
      %v3354 = vpack.c.bf16 %v3350, %v3346
      %v3355 = vpack.c.bf16 %v3351, %v3347
      %v3356 = vpack.c.bf16 %v3352, %v3348
      %v3357 = vld [vmem:[%s4] sm:$0xf]
      %vm3358 = vcmask 130048
      %v3360 = vsel %vm3358, %v3357, 0
      %3362 = vmatprep.subr.bf16.mxu0 %v3354
      %3363 = vmatpush1.bf16.msra.mxu0 %v3353
      %3364 = vmatprep.subr.bf16.mxu0 0
      %3365 = vmatpush1.bf16.msra.mxu0 0
      %3366 = vmatprep.subr.bf16.mxu0 0
      %3367 = vmatpush1.bf16.msra.mxu0 0
      %3368 = vmatprep.subr.bf16.mxu0 0
      %3369 = vmatpush1.bf16.msra.mxu0 0
      %3370 = vmatprep.subr.bf16.mxu0 0
      %3371 = vmatpush1.bf16.msra.mxu0 0
      %3372 = vmatprep.subr.bf16.mxu0 0
      %3373 = vmatpush1.bf16.msra.mxu0 0
      %3374 = vmatprep.subr.bf16.mxu0 0
      %3375 = vmatpush1.bf16.msra.mxu0 0
      %3376 = vmatprep.subr.bf16.mxu0 0
      %3377 = vmatpush1.bf16.msra.mxu0 0
      %3378 = vmatprep.subr.bf16.mxu0 0
      %3379 = vmatpush1.bf16.msra.mxu0 0
      %3380 = vmatprep.subr.bf16.mxu0 0
      %3381 = vmatpush1.bf16.msra.mxu0 0
      %3382 = vmatprep.subr.bf16.mxu0 0
      %3383 = vmatpush1.bf16.msra.mxu0 0
      %3384 = vmatprep.subr.bf16.mxu0 0
      %3385 = vmatpush1.bf16.msra.mxu0 0
      %3386 = vmatprep.subr.bf16.mxu0 0
      %3387 = vmatpush1.bf16.msra.mxu0 0
      %3388 = vmatprep.subr.bf16.mxu0 0
      %3389 = vmatpush1.bf16.msra.mxu0 0
      %3390 = vmatprep.subr.bf16.mxu0 0
      %3391 = vmatpush1.bf16.msra.mxu0 0
      %3392 = vmatprep.subr.bf16.mxu0 0
      %3393 = vmatpush1.bf16.msra.mxu0 0
      %3394 = vmatprep.mubr.bf16.mxu0 0
      %3395 = vmatmul.mubr.bf16.gmra.mrb[0].mxu0 %v3360
      %v3396 = vpop.f32.mrb[0].mxu0
      %v3397 = vadd.f32 0.0, %v3396
      %v3398 = vpop.f32.mrb[0].mxu0
      %v3399 = vadd.f32 0.0, %v3398
      %v3400 = vpop.f32.mrb[0].mxu0
      %v3401 = vpop.f32.mrb[0].mxu0
      %3402 = vdwg.mxu0
      %3403 = vmatprep.subr.bf16.mxu0 %v3356
      %3404 = vmatpush1.bf16.msra.mxu0 %v3355
      %3405 = vmatprep.subr.bf16.mxu0 0
      %3406 = vmatpush1.bf16.msra.mxu0 0
      %3407 = vmatprep.subr.bf16.mxu0 0
      %3408 = vmatpush1.bf16.msra.mxu0 0
      %3409 = vmatprep.subr.bf16.mxu0 0
      %3410 = vmatpush1.bf16.msra.mxu0 0
      %3411 = vmatprep.subr.bf16.mxu0 0
      %3412 = vmatpush1.bf16.msra.mxu0 0
      %3413 = vmatprep.subr.bf16.mxu0 0
      %3414 = vmatpush1.bf16.msra.mxu0 0
      %3415 = vmatprep.subr.bf16.mxu0 0
      %3416 = vmatpush1.bf16.msra.mxu0 0
      %3417 = vmatprep.subr.bf16.mxu0 0
      %3418 = vmatpush1.bf16.msra.mxu0 0
      %3419 = vmatprep.subr.bf16.mxu0 0
      %3420 = vmatpush1.bf16.msra.mxu0 0
      %3421 = vmatprep.subr.bf16.mxu0 0
      %3422 = vmatpush1.bf16.msra.mxu0 0
      %3423 = vmatprep.subr.bf16.mxu0 0
      %3424 = vmatpush1.bf16.msra.mxu0 0
      %3425 = vmatprep.subr.bf16.mxu0 0
      %3426 = vmatpush1.bf16.msra.mxu0 0
      %3427 = vmatprep.subr.bf16.mxu0 0
      %3428 = vmatpush1.bf16.msra.mxu0 0
      %3429 = vmatprep.subr.bf16.mxu0 0
      %3430 = vmatpush1.bf16.msra.mxu0 0
      %3431 = vmatprep.subr.bf16.mxu0 0
      %3432 = vmatpush1.bf16.msra.mxu0 0
      %3433 = vmatprep.subr.bf16.mxu0 0
      %3434 = vmatpush1.bf16.msra.mxu0 0
      %3435 = vmatprep.mubr.bf16.mxu0 0
      %3436 = vmatmul.mubr.bf16.gmra.mrb[0].mxu0 %v3360
      %v3437 = vpop.f32.mrb[0].mxu0
      %v3438 = vadd.f32 0.0, %v3437
      %v3439 = vpop.f32.mrb[0].mxu0
      %v3440 = vadd.f32 0.0, %v3439
      %v3441 = vpop.f32.mrb[0].mxu0
      %v3442 = vpop.f32.mrb[0].mxu0
      %3443 = vdwg.mxu0
      %v3444 = vadd.f32 %v3397, %v3399
      %v3445 = vadd.f32 %v3444, %v3438
      %v3446 = vadd.f32 %v3445, %v3440
      %3447 = vadd.xlane.f32.xlu0 %v3446
      %v3448 = vpop.xlane.xlu0 %3447
      %v3449 = vmul.f32 %v3448, %v517
      %v3450 = vsub.f32 %v3397, %v3449
      %v3451 = vsub.f32 %v3399, %v3449
      %v3452 = vsub.f32 %v3438, %v3449
      %v3453 = vsub.f32 %v3440, %v3449
      %v3454 = vmul.f32 %v3450, %v3450
      %v3455 = vmul.f32 %v3451, %v3451
      %v3456 = vmul.f32 %v3452, %v3452
      %v3457 = vmul.f32 %v3453, %v3453
      %v3458 = vadd.f32 %v3454, %v3455
      %v3459 = vadd.f32 %v3458, %v3456
      %v3460 = vadd.f32 %v3459, %v3457
      %3461 = vadd.xlane.f32.xlu0 %v3460
      %v3462 = vpop.xlane.xlu0 %3461
      %v3463 = vmul.f32 %v3462, %v517
      %v3464 = vadd.f32 %v3463, 1e-05
      %v3465 = vrsqrt.pop %v3464
      %v3466 = vmul.f32 %v3450, %v3465
      %v3467 = vmul.f32 %v3451, %v3465
      %v3468 = vmul.f32 %v3452, %v3465
      %v3469 = vmul.f32 %v3453, %v3465
      %v3470 = vmax.f32 %v3466, 0.0
      %v3471 = vmax.f32 %v3467, 0.0
      %v3472 = vmax.f32 %v3468, 0.0
      %v3473 = vmax.f32 %v3469, 0.0
      %v3474 = vld [vmem:[%s8] sm:$0x3]
      %v3475 = vpack.c.bf16 %v3470, %v3470
      %v3476 = vpack.c.bf16 %v3471, %v3471
      %v3477 = vpack.c.bf16 %v3472, %v3472
      %v3478 = vpack.c.bf16 %v3473, %v3473
      %v3480 = vsel %vm1800, %v3474, 0
      %v3483 = vsel %vm1732, %v3475, 0
      %v3486 = vsel %vm1732, %v3476, 0
      %v3489 = vsel %vm1732, %v3477, 0
      %v3492 = vsel %vm1732, %v3478, 0
      %3494 = vmatprep.subr.bf16.mxu0 %v3486
      %3495 = vmatpush1.bf16.msra.mxu0 %v3483
      %3496 = vmatprep.subr.bf16.mxu0 0
      %3497 = vmatpush1.bf16.msra.mxu0 0
      %3498 = vmatprep.subr.bf16.mxu0 0
      %3499 = vmatpush1.bf16.msra.mxu0 0
      %3500 = vmatprep.subr.bf16.mxu0 0
      %3501 = vmatpush1.bf16.msra.mxu0 0
      %3502 = vmatprep.subr.bf16.mxu0 0
      %3503 = vmatpush1.bf16.msra.mxu0 0
      %3504 = vmatprep.subr.bf16.mxu0 0
      %3505 = vmatpush1.bf16.msra.mxu0 0
      %3506 = vmatprep.subr.bf16.mxu0 0
      %3507 = vmatpush1.bf16.msra.mxu0 0
      %3508 = vmatprep.subr.bf16.mxu0 0
      %3509 = vmatpush1.bf16.msra.mxu0 0
      %3510 = vmatprep.subr.bf16.mxu0 0
      %3511 = vmatpush1.bf16.msra.mxu0 0
      %3512 = vmatprep.subr.bf16.mxu0 0
      %3513 = vmatpush1.bf16.msra.mxu0 0
      %3514 = vmatprep.subr.bf16.mxu0 0
      %3515 = vmatpush1.bf16.msra.mxu0 0
      %3516 = vmatprep.subr.bf16.mxu0 0
      %3517 = vmatpush1.bf16.msra.mxu0 0
      %3518 = vmatprep.subr.bf16.mxu0 0
      %3519 = vmatpush1.bf16.msra.mxu0 0
      %3520 = vmatprep.subr.bf16.mxu0 0
      %3521 = vmatpush1.bf16.msra.mxu0 0
      %3522 = vmatprep.subr.bf16.mxu0 0
      %3523 = vmatpush1.bf16.msra.mxu0 0
      %3524 = vmatprep.subr.bf16.mxu0 0
      %3525 = vmatpush1.bf16.msra.mxu0 0
      %3526 = vmatprep.mubr.bf16.mxu0 0
      %3527 = vmatmul.mubr.bf16.gmra.mrb[0].mxu0 %v3480
      %v3528 = vpop.f32.mrb[0].mxu0
      %v3529 = vadd.f32 0.0, %v3528
      %v3530 = vpop.f32.mrb[0].mxu0
      %v3531 = vadd.f32 0.0, %v3530
      %v3532 = vpop.f32.mrb[0].mxu0
      %v3533 = vpop.f32.mrb[0].mxu0
      %3534 = vdwg.mxu0
      %3535 = vmatprep.subr.bf16.mxu0 %v3492
      %3536 = vmatpush1.bf16.msra.mxu0 %v3489
      %3537 = vmatprep.subr.bf16.mxu0 0
      %3538 = vmatpush1.bf16.msra.mxu0 0
      %3539 = vmatprep.subr.bf16.mxu0 0
      %3540 = vmatpush1.bf16.msra.mxu0 0
      %3541 = vmatprep.subr.bf16.mxu0 0
      %3542 = vmatpush1.bf16.msra.mxu0 0
      %3543 = vmatprep.subr.bf16.mxu0 0
      %3544 = vmatpush1.bf16.msra.mxu0 0
      %3545 = vmatprep.subr.bf16.mxu0 0
      %3546 = vmatpush1.bf16.msra.mxu0 0
      %3547 = vmatprep.subr.bf16.mxu0 0
      %3548 = vmatpush1.bf16.msra.mxu0 0
      %3549 = vmatprep.subr.bf16.mxu0 0
      %3550 = vmatpush1.bf16.msra.mxu0 0
      %3551 = vmatprep.subr.bf16.mxu0 0
      %3552 = vmatpush1.bf16.msra.mxu0 0
      %3553 = vmatprep.subr.bf16.mxu0 0
      %3554 = vmatpush1.bf16.msra.mxu0 0
      %3555 = vmatprep.subr.bf16.mxu0 0
      %3556 = vmatpush1.bf16.msra.mxu0 0
      %3557 = vmatprep.subr.bf16.mxu0 0
      %3558 = vmatpush1.bf16.msra.mxu0 0
      %3559 = vmatprep.subr.bf16.mxu0 0
      %3560 = vmatpush1.bf16.msra.mxu0 0
      %3561 = vmatprep.subr.bf16.mxu0 0
      %3562 = vmatpush1.bf16.msra.mxu0 0
      %3563 = vmatprep.subr.bf16.mxu0 0
      %3564 = vmatpush1.bf16.msra.mxu0 0
      %3565 = vmatprep.subr.bf16.mxu0 0
      %3566 = vmatpush1.bf16.msra.mxu0 0
      %3567 = vmatprep.mubr.bf16.mxu0 0
      %3568 = vmatmul.mubr.bf16.gmra.mrb[0].mxu0 %v3480
      %v3569 = vpop.f32.mrb[0].mxu0
      %v3570 = vadd.f32 0.0, %v3569
      %v3571 = vpop.f32.mrb[0].mxu0
      %v3572 = vadd.f32 0.0, %v3571
      %v3573 = vpop.f32.mrb[0].mxu0
      %v3574 = vpop.f32.mrb[0].mxu0
      %3575 = vdwg.mxu0
      %v3576 = vsel %vm1732, %v3529, 0.0
      %v3577 = vsel %vm1732, %v3531, 0.0
      %v3578 = vadd.f32 %v3576, %v3577
      %v3579 = vsel %vm1732, %v3570, 0.0
      %v3580 = vadd.f32 %v3578, %v3579
      %v3581 = vsel %vm1732, %v3572, 0.0
      %v3582 = vadd.f32 %v3580, %v3581
      %3583 = vadd.xlane.f32.xlu0 %v3582
      %v3584 = vpop.xlane.xlu0 %3583
      %v3585 = vmul.f32 %v3584, %v517
      %v3586 = vsub.f32 %v3529, %v3585
      %v3587 = vsub.f32 %v3531, %v3585
      %v3588 = vsub.f32 %v3570, %v3585
      %v3589 = vsub.f32 %v3572, %v3585
      %v3590 = vmul.f32 %v3586, %v3586
      %v3591 = vmul.f32 %v3587, %v3587
      %v3592 = vmul.f32 %v3588, %v3588
      %v3593 = vmul.f32 %v3589, %v3589
      %v3594 = vsel %vm1732, %v3590, 0.0
      %v3595 = vsel %vm1732, %v3591, 0.0
      %v3596 = vadd.f32 %v3594, %v3595
      %v3597 = vsel %vm1732, %v3592, 0.0
      %v3598 = vadd.f32 %v3596, %v3597
      %v3599 = vsel %vm1732, %v3593, 0.0
      %v3600 = vadd.f32 %v3598, %v3599
      %3601 = vadd.xlane.f32.xlu0 %v3600
      %v3602 = vpop.xlane.xlu0 %3601
      %v3603 = vmul.f32 %v3602, %v517
      %v3604 = vadd.f32 %v3603, 1e-05
      %v3605 = vrsqrt.pop %v3604
      %v3606 = vmul.f32 %v3586, %v3605
      %v3607 = vmul.f32 %v3587, %v3605
      %v3608 = vmul.f32 %v3588, %v3605
      %v3609 = vmul.f32 %v3589, %v3605
      %v3610 = vmax.f32 %v3606, 0.0
      %v3611 = vmax.f32 %v3607, 0.0
      %v3612 = vmax.f32 %v3608, 0.0
      %v3613 = vmax.f32 %v3609, 0.0
      %3614 = vst [vmem:[#allocation2 + $0x40] sm:$0xf] %v3610
      %3615 = vst [vmem:[#allocation2 + $0x48] sm:$0xf] %v3611
      %3616 = vst [vmem:[#allocation2 + $0x50] sm:$0xf] %v3612
      %3617 = vst [vmem:[#allocation2 + $0x58] sm:$0xf] %v3613
      %3618 = vst [vmem:[%s386] sm:$0xf] %v3610
      %3619 = vst [vmem:[%s386 + $0x8] sm:$0xf] %v3611
      %3620 = vst [vmem:[%s386 + $0x10] sm:$0xf] %v3612
      %3621 = vst [vmem:[%s386 + $0x18] sm:$0xf] %v3613
      %p3622 = scmp.lt.s32.totalorder %s22, 1
      %s3623 = scalar_select %p3622, %s22, 1
      %s3624 = smul.addr %s3623, 12
      %s3625 = smul.addr %s3624, 8
      %s3626 = scalar_lea.vmem %s11, %s3625
      // Predicated region
      $region65: #{dense_aspp_block.1} parent=63 // pred_check
        %p3627 = pneg %p276
      $region66: #{dense_aspp_block.1} parent=63 // pred_check_branch
        %3629 = sbr.rel (%p3627) target = $region68
      $region67: #{dense_aspp_block.1} parent=63 // pred_region
        _
      $region68: #{dense_aspp_block.1} parent=63 // pred_fallthru
        _
    $region64: #{dense_aspp_block.1} parent=5 // pred_fallthru
      _
    %p3630 = scmp.le.s32.totalorder 2, %s17
    // Predicated region
    $region69: #{dense_aspp_block.1} parent=5 // pred_check
      %p3631 = pneg %p3630
    $region70: #{dense_aspp_block.1} parent=5 // pred_check_branch
      %3633 = sbr.rel (%p3631) target = $region72
    $region71: #{dense_aspp_block.1} parent=5 // pred_region
      %s3634 = ssub.s32 %s17, 2
      // Predicated region
      $region73: #{dense_aspp_block.1} parent=71 // pred_check
        %p3635 = pneg %p282
      $region74: #{dense_aspp_block.1} parent=71 // pred_check_branch
        %3637 = sbr.rel (%p3635) target = $region76
      $region75: #{dense_aspp_block.1} parent=71 // pred_region
        %p3638 = scmp.lt.s32.totalorder %s23, 1
        %s3639 = scalar_select %p3638, %s23, 1
        %s3640 = smul.addr %s3639, 12
        %s3641 = smul.addr %s3640, 8
        %s3642 = scalar_lea.vmem %s11, %s3641
      $region76: #{dense_aspp_block.1} parent=71 // pred_fallthru
        _
    $region72: #{dense_aspp_block.1} parent=5 // pred_fallthru
      _
  $region6: #{dense_aspp_block.1} parent=0 // loop_footer
    %s21 = sadd.s32 1, %s17
  $region7: #{dense_aspp_block.1} parent=0 // loop_footer_branch
    %16 = sbr.rel target = $region3
  $region8: #{dense_aspp_block.1} parent=0 // loop_exit
    _

</llo_original>
